<compile_context>
chip_gen: v7x
topology: tpu7x:2x2x1
jax: 0.10.0
libtpu: 0.0.40
codegen_flags: <defaults>
</compile_context>

<pallas_src>
import functools

import jax
import jax.numpy as jnp
from jax.experimental import pallas as pl
from jax.experimental.pallas import tpu as pltpu


def _round_up(x, m):
    return (x + m - 1) // m * m


def _pick_row_tile(ho, wo, target_m):
    """Largest divisor of `ho` with tile_rows * wo <= target_m (min 1)."""
    th = max(1, min(ho, max(1, target_m // max(wo, 1))))
    while ho % th:
        th -= 1
    return th


def conv_bn_act_kernel(x_ref, w_ref, b_ref, o_ref, *, stride):
    """Fused conv + folded-BN + ReLU for one (batch, cout-tile, row-tile) step.

    x_ref: (1, Hp, Wp, Cin)   whole padded NHWC image (bf16), resident in VMEM
    w_ref: (K, K, Cin, TCO)   BN-folded conv weight tile, HWIO (bf16)
    b_ref: (1, TCO)           folded BN bias (f32)
    o_ref: (1, TH, Wo, TCO)   output tile
    """
    K = w_ref.shape[0]
    Cin = x_ref.shape[3]
    _, TH, Wo, TCO = o_ref.shape

    # Starting padded-input row for this output row-tile.
    row0 = pl.program_id(2) * (TH * stride)
    if (TH * stride) % 8 == 0:
        row0 = pl.multiple_of(row0, 8)

    acc = jnp.zeros((TH * Wo, TCO), jnp.float32)
    # Static K x K tap loop; each tap is a (TH*Wo, Cin) x (Cin, TCO) MXU matmul
    # accumulated in f32.  Patches are read straight from the VMEM ref.
    for kh in range(K):
        for kw in range(K):
            if stride == 1:
                patch = x_ref[0, pl.ds(row0 + kh, TH), pl.ds(kw, Wo), :]
            else:
                patch = x_ref[
                    0,
                    pl.ds(row0 + kh, TH, stride),
                    pl.ds(kw, Wo, stride),
                    :,
                ]
            acc = acc + jnp.dot(
                patch.reshape(TH * Wo, Cin),
                w_ref[kh, kw],
                preferred_element_type=jnp.float32,
            )

    # Epilogue: folded-BN bias + ReLU in f32; cast only at the final store.
    y = jnp.maximum(acc + b_ref[...], 0.0)
    o_ref[...] = y.reshape(1, TH, Wo, TCO).astype(o_ref.dtype)


def conv_bn_act_nhwc(x_nhwc, w_hwio, bn_scale, bn_bias, *, stride):
    """Wrapper: folds BN, pads/tiles channels, runs the fused Pallas kernel."""
    N, H, W, Cin = x_nhwc.shape
    K = w_hwio.shape[0]
    Cout = w_hwio.shape[3]
    p = K // 2
    Hp, Wp = H + 2 * p, W + 2 * p
    Ho = (H + 2 * p - K) // stride + 1
    Wo = (W + 2 * p - K) // stride + 1

    # Lane-dense output channels.
    cout_pad = _round_up(Cout, 128)
    tco = 256 if cout_pad % 256 == 0 else 128
    # Keep the per-tile f32 accumulator around 16-32 vregs.
    target_m = 128 if tco == 256 else 256
    th = _pick_row_tile(Ho, Wo, target_m)
    n_co = cout_pad // tco
    n_ho = Ho // th

    # Fold BN scale into the conv weights (weights are tiny -> free); pad Cout;
    # bf16 operands for the MXU.
    w_f32 = w_hwio.astype(jnp.float32) * bn_scale.astype(jnp.float32)[None, None, None, :]
    w_fold = jnp.pad(
        w_f32, ((0, 0), (0, 0), (0, 0), (0, cout_pad - Cout))
    ).astype(jnp.bfloat16)
    bias = jnp.pad(bn_bias.astype(jnp.float32), (0, cout_pad - Cout)).reshape(1, cout_pad)

    # Cast first so the halo pad is written at bf16 width (pad fuses with the
    # cast/transpose in XLA).
    # TODO(synk): for very large feature maps the halo could be handled
    #             in-kernel (masking) to avoid materializing a padded copy.
    x_pad = jnp.pad(x_nhwc.astype(jnp.bfloat16), ((0, 0), (p, p), (p, p), (0, 0)))

    out_dtype = x_nhwc.dtype
    flops = 2 * N * Ho * Wo * K * K * Cin * cout_pad
    bytes_accessed = (
        x_pad.size * x_pad.dtype.itemsize
        + w_fold.size * w_fold.dtype.itemsize
        + bias.size * bias.dtype.itemsize
        + N * Ho * Wo * cout_pad * jnp.dtype(out_dtype).itemsize
    )

    kernel = functools.partial(conv_bn_act_kernel, stride=stride)

    y_pad = pl.pallas_call(
        kernel,
        out_shape=jax.ShapeDtypeStruct((N, Ho, Wo, cout_pad), out_dtype),
        grid=(N, n_co, n_ho),
        in_specs=[
            # Whole padded image; index_map is constant in (co, ho) so the
            # block stays resident in VMEM across those grid axes (one DMA
            # per batch element).
            pl.BlockSpec((1, Hp, Wp, Cin), lambda n, co, ho: (n, 0, 0, 0)),
            pl.BlockSpec((K, K, Cin, tco), lambda n, co, ho: (0, 0, 0, co)),
            pl.BlockSpec((1, tco), lambda n, co, ho: (0, co)),
        ],
        out_specs=pl.BlockSpec((1, th, Wo, tco), lambda n, co, ho: (n, ho, 0, co)),
        compiler_params=pltpu.CompilerParams(
            dimension_semantics=("parallel", "parallel", "parallel"),
            vmem_limit_bytes=32 * 1024 * 1024,
        ),
        cost_estimate=pl.CostEstimate(
            flops=flops, transcendentals=0, bytes_accessed=bytes_accessed
        ),
    )(x_pad, w_fold, bias)

    # Drop the channel padding.
    return y_pad[..., :Cout]


def conv_bn_act_nchw(x_nchw, w_hwio, bn_scale, bn_bias, *, stride):
    """PyTorch-facing wrapper: accepts/returns NCHW like the nn.Module."""
    x_nhwc = jnp.transpose(x_nchw, (0, 2, 3, 1))
    y_nhwc = conv_bn_act_nhwc(x_nhwc, w_hwio, bn_scale, bn_bias, stride=stride)
    return jnp.transpose(y_nhwc, (0, 3, 1, 2))


def reference_nchw(x_nchw, w_hwio, bn_scale, bn_bias, *, stride):
    """Pure-JAX f32 reference (XLA conv) for correctness checking."""
    K = w_hwio.shape[0]
    p = K // 2
    x_nhwc = jnp.transpose(x_nchw, (0, 2, 3, 1))
    y = jax.lax.conv_general_dilated(
        x_nhwc,
        w_hwio,
        window_strides=(stride, stride),
        padding=[(p, p), (p, p)],
        dimension_numbers=("NHWC", "HWIO", "NHWC"),
    )
    y = y * bn_scale.reshape(1, 1, 1, -1) + bn_bias.reshape(1, 1, 1, -1)
    y = jnp.maximum(y, 0.0)
    return jnp.transpose(y, (0, 3, 1, 2))


if __name__ == "__main__":
    # Small shapes consistent with ConvBnAct: N=2, Cin=4, Cout=8, H=W=16, K=3.
    N, Cin, Cout, H, W, K, stride = 2, 4, 8, 16, 16, 3, 1
    eps = 1e-5

    key = jax.random.PRNGKey(0)
    kx, kw, kg, kb, km, kv = jax.random.split(key, 6)

    x_nchw = jax.random.normal(kx, (N, Cin, H, W), jnp.float32)
    # Conv weight (no bias), generated directly in HWIO layout.
    w_hwio = 0.1 * jax.random.normal(kw, (K, K, Cin, Cout), jnp.float32)

    # Deterministic BatchNorm parameters / running stats (eval mode).
    gamma = 1.0 + 0.1 * jax.random.normal(kg, (Cout,), jnp.float32)
    beta = 0.1 * jax.random.normal(kb, (Cout,), jnp.float32)
    running_mean = 0.05 * jax.random.normal(km, (Cout,), jnp.float32)
    running_var = 1.0 + 0.1 * jax.nn.sigmoid(jax.random.normal(kv, (Cout,), jnp.float32))

    bn_scale = gamma / jnp.sqrt(running_var + eps)
    bn_bias = beta - running_mean * bn_scale

    y = conv_bn_act_nchw(x_nchw, w_hwio, bn_scale, bn_bias, stride=stride)
    y = jax.block_until_ready(y)

    y_ref = reference_nchw(x_nchw, w_hwio, bn_scale, bn_bias, stride=stride)
    assert y.shape == (N, Cout, H, W), y.shape
    # bf16 MXU operands (f32 accumulation) => loosened tolerance vs f32 ref.
    assert jnp.allclose(y, y_ref, rtol=5e-2, atol=5e-2), "mismatch vs reference"

    print("KERNEL_OK")
</pallas_src>

<mosaic_0001>
module attributes {stable_mosaic.version = 11 : i64} {
  func.func @conv_bn_act_kernel(%arg0: i32, %arg1: i32, %arg2: i32, %arg3: memref<1x18x18x4xbf16, #tpu.memory_space<vmem>>, %arg4: memref<3x3x4x128xbf16, #tpu.memory_space<vmem>>, %arg5: memref<1x128xf32, #tpu.memory_space<vmem>>, %arg6: memref<1x16x16x128xf32, #tpu.memory_space<vmem>>) attributes {dimension_semantics = [#tpu.dimension_semantics<parallel>, #tpu.dimension_semantics<parallel>, #tpu.dimension_semantics<parallel>], iteration_bounds = array<i64: 2, 1, 1>, scalar_prefetch = 0 : i64, scratch_operands = 0 : i64, tpu.core_type = #tpu.core_type<tc>, window_params = [{transform_indices = @transform_0, window_bounds = array<i64: 1, 18, 18, 4>}, {transform_indices = @transform_1, window_bounds = array<i64: 3, 3, 4, 128>}, {transform_indices = @transform_2, window_bounds = array<i64: 1, 128>}, {transform_indices = @transform_3, window_bounds = array<i64: 1, 16, 16, 128>}]} {
    %c16_i32 = arith.constant 16 : i32
    %0 = arith.muli %arg2, %c16_i32 : i32
    %1 = tpu.assume_multiple %0, 8 : i32
    %cst = arith.constant 0.000000e+00 : f32
    %2 = vector.broadcast %cst : f32 to vector<256x128xf32>
    %c0_i32 = arith.constant 0 : i32
    %3 = arith.addi %1, %c0_i32 : i32
    %c0 = arith.constant 0 : index
    %4 = arith.index_cast %3 : i32 to index
    %c0_0 = arith.constant 0 : index
    %c0_1 = arith.constant 0 : index
    %5 = vector.load %arg3[%c0, %4, %c0_0, %c0_1] : memref<1x18x18x4xbf16, #tpu.memory_space<vmem>>, vector<1x16x16x4xbf16>
    %6 = vector.shape_cast %5 : vector<1x16x16x4xbf16> to vector<16x16x4xbf16>
    %7 = vector.shape_cast %6 : vector<16x16x4xbf16> to vector<256x4xbf16>
    %c0_2 = arith.constant 0 : index
    %c0_3 = arith.constant 0 : index
    %c0_4 = arith.constant 0 : index
    %c0_5 = arith.constant 0 : index
    %8 = vector.load %arg4[%c0_2, %c0_3, %c0_4, %c0_5] : memref<3x3x4x128xbf16, #tpu.memory_space<vmem>>, vector<1x1x4x128xbf16>
    %9 = vector.shape_cast %8 : vector<1x1x4x128xbf16> to vector<4x128xbf16>
    %cst_6 = arith.constant dense<0.000000e+00> : vector<256x128xf32>
    %10 = tpu.matmul %7, %9, %cst_6 {dimension_numbers = #tpu.dot_dimension_numbers<[1], [0], [0], [1], [0, 0, 1, 1], [], []>} : vector<256x4xbf16>, vector<4x128xbf16>, vector<256x128xf32> -> vector<256x128xf32>
    %11 = arith.addf %2, %10 : vector<256x128xf32>
    %c0_i32_7 = arith.constant 0 : i32
    %12 = arith.addi %1, %c0_i32_7 : i32
    %c0_8 = arith.constant 0 : index
    %13 = arith.index_cast %12 : i32 to index
    %c1 = arith.constant 1 : index
    %c0_9 = arith.constant 0 : index
    %14 = vector.load %arg3[%c0_8, %13, %c1, %c0_9] : memref<1x18x18x4xbf16, #tpu.memory_space<vmem>>, vector<1x16x16x4xbf16>
    %15 = vector.shape_cast %14 : vector<1x16x16x4xbf16> to vector<16x16x4xbf16>
    %16 = vector.shape_cast %15 : vector<16x16x4xbf16> to vector<256x4xbf16>
    %c0_10 = arith.constant 0 : index
    %c1_11 = arith.constant 1 : index
    %c0_12 = arith.constant 0 : index
    %c0_13 = arith.constant 0 : index
    %17 = vector.load %arg4[%c0_10, %c1_11, %c0_12, %c0_13] : memref<3x3x4x128xbf16, #tpu.memory_space<vmem>>, vector<1x1x4x128xbf16>
    %18 = vector.shape_cast %17 : vector<1x1x4x128xbf16> to vector<4x128xbf16>
    %cst_14 = arith.constant dense<0.000000e+00> : vector<256x128xf32>
    %19 = tpu.matmul %16, %18, %cst_14 {dimension_numbers = #tpu.dot_dimension_numbers<[1], [0], [0], [1], [0, 0, 1, 1], [], []>} : vector<256x4xbf16>, vector<4x128xbf16>, vector<256x128xf32> -> vector<256x128xf32>
    %20 = arith.addf %11, %19 : vector<256x128xf32>
    %c0_i32_15 = arith.constant 0 : i32
    %21 = arith.addi %1, %c0_i32_15 : i32
    %c0_16 = arith.constant 0 : index
    %22 = arith.index_cast %21 : i32 to index
    %c2 = arith.constant 2 : index
    %c0_17 = arith.constant 0 : index
    %23 = vector.load %arg3[%c0_16, %22, %c2, %c0_17] : memref<1x18x18x4xbf16, #tpu.memory_space<vmem>>, vector<1x16x16x4xbf16>
    %24 = vector.shape_cast %23 : vector<1x16x16x4xbf16> to vector<16x16x4xbf16>
    %25 = vector.shape_cast %24 : vector<16x16x4xbf16> to vector<256x4xbf16>
    %c0_18 = arith.constant 0 : index
    %c2_19 = arith.constant 2 : index
    %c0_20 = arith.constant 0 : index
    %c0_21 = arith.constant 0 : index
    %26 = vector.load %arg4[%c0_18, %c2_19, %c0_20, %c0_21] : memref<3x3x4x128xbf16, #tpu.memory_space<vmem>>, vector<1x1x4x128xbf16>
    %27 = vector.shape_cast %26 : vector<1x1x4x128xbf16> to vector<4x128xbf16>
    %cst_22 = arith.constant dense<0.000000e+00> : vector<256x128xf32>
    %28 = tpu.matmul %25, %27, %cst_22 {dimension_numbers = #tpu.dot_dimension_numbers<[1], [0], [0], [1], [0, 0, 1, 1], [], []>} : vector<256x4xbf16>, vector<4x128xbf16>, vector<256x128xf32> -> vector<256x128xf32>
    %29 = arith.addf %20, %28 : vector<256x128xf32>
    %c1_i32 = arith.constant 1 : i32
    %30 = arith.addi %1, %c1_i32 : i32
    %c0_23 = arith.constant 0 : index
    %31 = arith.index_cast %30 : i32 to index
    %c0_24 = arith.constant 0 : index
    %c0_25 = arith.constant 0 : index
    %32 = vector.load %arg3[%c0_23, %31, %c0_24, %c0_25] : memref<1x18x18x4xbf16, #tpu.memory_space<vmem>>, vector<1x16x16x4xbf16>
    %33 = vector.shape_cast %32 : vector<1x16x16x4xbf16> to vector<16x16x4xbf16>
    %34 = vector.shape_cast %33 : vector<16x16x4xbf16> to vector<256x4xbf16>
    %c1_26 = arith.constant 1 : index
    %c0_27 = arith.constant 0 : index
    %c0_28 = arith.constant 0 : index
    %c0_29 = arith.constant 0 : index
    %35 = vector.load %arg4[%c1_26, %c0_27, %c0_28, %c0_29] : memref<3x3x4x128xbf16, #tpu.memory_space<vmem>>, vector<1x1x4x128xbf16>
    %36 = vector.shape_cast %35 : vector<1x1x4x128xbf16> to vector<4x128xbf16>
    %cst_30 = arith.constant dense<0.000000e+00> : vector<256x128xf32>
    %37 = tpu.matmul %34, %36, %cst_30 {dimension_numbers = #tpu.dot_dimension_numbers<[1], [0], [0], [1], [0, 0, 1, 1], [], []>} : vector<256x4xbf16>, vector<4x128xbf16>, vector<256x128xf32> -> vector<256x128xf32>
    %38 = arith.addf %29, %37 : vector<256x128xf32>
    %c1_i32_31 = arith.constant 1 : i32
    %39 = arith.addi %1, %c1_i32_31 : i32
    %c0_32 = arith.constant 0 : index
    %40 = arith.index_cast %39 : i32 to index
    %c1_33 = arith.constant 1 : index
    %c0_34 = arith.constant 0 : index
    %41 = vector.load %arg3[%c0_32, %40, %c1_33, %c0_34] : memref<1x18x18x4xbf16, #tpu.memory_space<vmem>>, vector<1x16x16x4xbf16>
    %42 = vector.shape_cast %41 : vector<1x16x16x4xbf16> to vector<16x16x4xbf16>
    %43 = vector.shape_cast %42 : vector<16x16x4xbf16> to vector<256x4xbf16>
    %c1_35 = arith.constant 1 : index
    %c1_36 = arith.constant 1 : index
    %c0_37 = arith.constant 0 : index
    %c0_38 = arith.constant 0 : index
    %44 = vector.load %arg4[%c1_35, %c1_36, %c0_37, %c0_38] : memref<3x3x4x128xbf16, #tpu.memory_space<vmem>>, vector<1x1x4x128xbf16>
    %45 = vector.shape_cast %44 : vector<1x1x4x128xbf16> to vector<4x128xbf16>
    %cst_39 = arith.constant dense<0.000000e+00> : vector<256x128xf32>
    %46 = tpu.matmul %43, %45, %cst_39 {dimension_numbers = #tpu.dot_dimension_numbers<[1], [0], [0], [1], [0, 0, 1, 1], [], []>} : vector<256x4xbf16>, vector<4x128xbf16>, vector<256x128xf32> -> vector<256x128xf32>
    %47 = arith.addf %38, %46 : vector<256x128xf32>
    %c1_i32_40 = arith.constant 1 : i32
    %48 = arith.addi %1, %c1_i32_40 : i32
    %c0_41 = arith.constant 0 : index
    %49 = arith.index_cast %48 : i32 to index
    %c2_42 = arith.constant 2 : index
    %c0_43 = arith.constant 0 : index
    %50 = vector.load %arg3[%c0_41, %49, %c2_42, %c0_43] : memref<1x18x18x4xbf16, #tpu.memory_space<vmem>>, vector<1x16x16x4xbf16>
    %51 = vector.shape_cast %50 : vector<1x16x16x4xbf16> to vector<16x16x4xbf16>
    %52 = vector.shape_cast %51 : vector<16x16x4xbf16> to vector<256x4xbf16>
    %c1_44 = arith.constant 1 : index
    %c2_45 = arith.constant 2 : index
    %c0_46 = arith.constant 0 : index
    %c0_47 = arith.constant 0 : index
    %53 = vector.load %arg4[%c1_44, %c2_45, %c0_46, %c0_47] : memref<3x3x4x128xbf16, #tpu.memory_space<vmem>>, vector<1x1x4x128xbf16>
    %54 = vector.shape_cast %53 : vector<1x1x4x128xbf16> to vector<4x128xbf16>
    %cst_48 = arith.constant dense<0.000000e+00> : vector<256x128xf32>
    %55 = tpu.matmul %52, %54, %cst_48 {dimension_numbers = #tpu.dot_dimension_numbers<[1], [0], [0], [1], [0, 0, 1, 1], [], []>} : vector<256x4xbf16>, vector<4x128xbf16>, vector<256x128xf32> -> vector<256x128xf32>
    %56 = arith.addf %47, %55 : vector<256x128xf32>
    %c2_i32 = arith.constant 2 : i32
    %57 = arith.addi %1, %c2_i32 : i32
    %c0_49 = arith.constant 0 : index
    %58 = arith.index_cast %57 : i32 to index
    %c0_50 = arith.constant 0 : index
    %c0_51 = arith.constant 0 : index
    %59 = vector.load %arg3[%c0_49, %58, %c0_50, %c0_51] : memref<1x18x18x4xbf16, #tpu.memory_space<vmem>>, vector<1x16x16x4xbf16>
    %60 = vector.shape_cast %59 : vector<1x16x16x4xbf16> to vector<16x16x4xbf16>
    %61 = vector.shape_cast %60 : vector<16x16x4xbf16> to vector<256x4xbf16>
    %c2_52 = arith.constant 2 : index
    %c0_53 = arith.constant 0 : index
    %c0_54 = arith.constant 0 : index
    %c0_55 = arith.constant 0 : index
    %62 = vector.load %arg4[%c2_52, %c0_53, %c0_54, %c0_55] : memref<3x3x4x128xbf16, #tpu.memory_space<vmem>>, vector<1x1x4x128xbf16>
    %63 = vector.shape_cast %62 : vector<1x1x4x128xbf16> to vector<4x128xbf16>
    %cst_56 = arith.constant dense<0.000000e+00> : vector<256x128xf32>
    %64 = tpu.matmul %61, %63, %cst_56 {dimension_numbers = #tpu.dot_dimension_numbers<[1], [0], [0], [1], [0, 0, 1, 1], [], []>} : vector<256x4xbf16>, vector<4x128xbf16>, vector<256x128xf32> -> vector<256x128xf32>
    %65 = arith.addf %56, %64 : vector<256x128xf32>
    %c2_i32_57 = arith.constant 2 : i32
    %66 = arith.addi %1, %c2_i32_57 : i32
    %c0_58 = arith.constant 0 : index
    %67 = arith.index_cast %66 : i32 to index
    %c1_59 = arith.constant 1 : index
    %c0_60 = arith.constant 0 : index
    %68 = vector.load %arg3[%c0_58, %67, %c1_59, %c0_60] : memref<1x18x18x4xbf16, #tpu.memory_space<vmem>>, vector<1x16x16x4xbf16>
    %69 = vector.shape_cast %68 : vector<1x16x16x4xbf16> to vector<16x16x4xbf16>
    %70 = vector.shape_cast %69 : vector<16x16x4xbf16> to vector<256x4xbf16>
    %c2_61 = arith.constant 2 : index
    %c1_62 = arith.constant 1 : index
    %c0_63 = arith.constant 0 : index
    %c0_64 = arith.constant 0 : index
    %71 = vector.load %arg4[%c2_61, %c1_62, %c0_63, %c0_64] : memref<3x3x4x128xbf16, #tpu.memory_space<vmem>>, vector<1x1x4x128xbf16>
    %72 = vector.shape_cast %71 : vector<1x1x4x128xbf16> to vector<4x128xbf16>
    %cst_65 = arith.constant dense<0.000000e+00> : vector<256x128xf32>
    %73 = tpu.matmul %70, %72, %cst_65 {dimension_numbers = #tpu.dot_dimension_numbers<[1], [0], [0], [1], [0, 0, 1, 1], [], []>} : vector<256x4xbf16>, vector<4x128xbf16>, vector<256x128xf32> -> vector<256x128xf32>
    %74 = arith.addf %65, %73 : vector<256x128xf32>
    %c2_i32_66 = arith.constant 2 : i32
    %75 = arith.addi %1, %c2_i32_66 : i32
    %c0_67 = arith.constant 0 : index
    %76 = arith.index_cast %75 : i32 to index
    %c2_68 = arith.constant 2 : index
    %c0_69 = arith.constant 0 : index
    %77 = vector.load %arg3[%c0_67, %76, %c2_68, %c0_69] : memref<1x18x18x4xbf16, #tpu.memory_space<vmem>>, vector<1x16x16x4xbf16>
    %78 = vector.shape_cast %77 : vector<1x16x16x4xbf16> to vector<16x16x4xbf16>
    %79 = vector.shape_cast %78 : vector<16x16x4xbf16> to vector<256x4xbf16>
    %c2_70 = arith.constant 2 : index
    %c2_71 = arith.constant 2 : index
    %c0_72 = arith.constant 0 : index
    %c0_73 = arith.constant 0 : index
    %80 = vector.load %arg4[%c2_70, %c2_71, %c0_72, %c0_73] : memref<3x3x4x128xbf16, #tpu.memory_space<vmem>>, vector<1x1x4x128xbf16>
    %81 = vector.shape_cast %80 : vector<1x1x4x128xbf16> to vector<4x128xbf16>
    %cst_74 = arith.constant dense<0.000000e+00> : vector<256x128xf32>
    %82 = tpu.matmul %79, %81, %cst_74 {dimension_numbers = #tpu.dot_dimension_numbers<[1], [0], [0], [1], [0, 0, 1, 1], [], []>} : vector<256x4xbf16>, vector<4x128xbf16>, vector<256x128xf32> -> vector<256x128xf32>
    %83 = arith.addf %74, %82 : vector<256x128xf32>
    %c0_75 = arith.constant 0 : index
    %c0_76 = arith.constant 0 : index
    %84 = vector.load %arg5[%c0_75, %c0_76] : memref<1x128xf32, #tpu.memory_space<vmem>>, vector<1x128xf32>
    %85 = vector.broadcast %84 : vector<1x128xf32> to vector<256x128xf32>
    %86 = arith.addf %83, %85 : vector<256x128xf32>
    %cst_77 = arith.constant 0.000000e+00 : f32
    %87 = vector.broadcast %cst_77 : f32 to vector<256x128xf32>
    %88 = arith.maximumf %86, %87 : vector<256x128xf32>
    %89 = vector.shape_cast %88 : vector<256x128xf32> to vector<1x16x16x128xf32>
    %c0_78 = arith.constant 0 : index
    %c0_79 = arith.constant 0 : index
    %c0_80 = arith.constant 0 : index
    %c0_81 = arith.constant 0 : index
    %90 = vector.load %arg6[%c0_78, %c0_79, %c0_80, %c0_81] : memref<1x16x16x128xf32, #tpu.memory_space<vmem>>, vector<1x16x16x128xf32>
    tpu.vector_store %arg6[%c0_78, %c0_79, %c0_80, %c0_81], %89 {strides = array<i32>} : memref<1x16x16x128xf32, #tpu.memory_space<vmem>>, vector<1x16x16x128xf32>,
    return
  }
  func.func @transform_0(%arg0: i32, %arg1: i32, %arg2: i32) -> (i32, i32, i32, i32) {
    %c0_i32 = arith.constant 0 : i32
    %c0_i32_0 = arith.constant 0 : i32
    %c0_i32_1 = arith.constant 0 : i32
    %c0_i32_2 = arith.constant 0 : i32
    return %arg0, %c0_i32, %c0_i32_0, %c0_i32_1 : i32, i32, i32, i32
  }
  func.func @transform_1(%arg0: i32, %arg1: i32, %arg2: i32) -> (i32, i32, i32, i32) {
    %c0_i32 = arith.constant 0 : i32
    %c0_i32_0 = arith.constant 0 : i32
    %c0_i32_1 = arith.constant 0 : i32
    %c0_i32_2 = arith.constant 0 : i32
    return %c0_i32, %c0_i32_0, %c0_i32_1, %arg1 : i32, i32, i32, i32
  }
  func.func @transform_2(%arg0: i32, %arg1: i32, %arg2: i32) -> (i32, i32) {
    %c0_i32 = arith.constant 0 : i32
    %c0_i32_0 = arith.constant 0 : i32
    return %c0_i32, %arg1 : i32, i32
  }
  func.func @transform_3(%arg0: i32, %arg1: i32, %arg2: i32) -> (i32, i32, i32, i32) {
    %c0_i32 = arith.constant 0 : i32
    %c0_i32_0 = arith.constant 0 : i32
    return %arg0, %arg2, %c0_i32, %arg1 : i32, i32, i32, i32
  }
}

</mosaic_0001>

<llo_original>
// kernel: tpu_custom_call.1
$region0: #{tpu_custom_call.1}
  #allocation0 [shape = 'u32[]', space=smem, size = 0x4, offset = 0x4, fixed_abs, tag = 'smem constant byte address 0x4 - core index']
  #allocation1 [shape = 'u32[144,128]{1,0:T(1,128)}', space=vmem, size = 0x12000, scoped, tag = 'internal scratch']
  %s0 = inlined_call_operand.vmem [shape: bf16[2,18,18,4], index: 0, kind: input, shape index: {}]
  %s1 = inlined_call_operand.vmem [shape: bf16[3,3,4,128], index: 1, kind: input, shape index: {}]
  %s2 = inlined_call_operand.vmem [shape: f32[1,128], index: 2, kind: input, shape index: {}]
  %s3 = inlined_call_operand.hbm [shape: f32[2,16,16,128], index: 3, kind: output, shape index: {}]
  %s4 = sld [smem:[#allocation0]]
  $region45: #{tpu_custom_call.1} parent=0
    _
  %s6 = ssub.s32 1, %s4
  %s7 = scalar_select 0, %s6, %s4
  $region1: #{tpu_custom_call.1} parent=0
    #allocation2 [shape = 'u8[262144]{0}', space=vmem, size = 0x40000, scoped, tag = 'output window, operand 0']
    #allocation3 [shape = 's32[2]{0}', space=sflag, size = 0x8, scoped, tag = 'scoped memory for tpu_custom_call.1']
    %8 = vsyncpa [#allocation3], 0
    %s9 = scalar_lea.sflag [#allocation3], 1
    %10 = vsyncpa %s9, 0
    loop: start=0, step=1, limit=4
    $region2: #{tpu_custom_call.1} parent=1 // loop_pre_header
      _
    $region3: #{tpu_custom_call.1} parent=1 // loop_header
      %s12 = sphi 0, %s16
      %p13 = scmp.ge.s32.totalorder %s12, 4
      %s19 = sphi 0, %s38
      %s20 = sphi 0, %s34
      %s21 = sphi 0, %s30
      %s22 = sphi 0, %s19
      %s23 = sphi 0, %s20
      %s24 = sphi 0, %s21
      %s25 = sphi 0, %s22
      %s26 = sphi 0, %s23
      %s27 = sphi 0, %s24
      %s41 = sphi 0, %s43
      %s44 = sphi 0, %s41
      %s45 = sphi 0, %s44
      %s61 = sphi 0, %s45
      %s67 = sphi 0, %s69
      %s70 = sphi 0, %s67
      %s71 = sphi 0, %s70
      %s87 = sphi 0, %s71
      %s93 = sphi 0, %s95
      %s96 = sphi 0, %s93
      %s97 = sphi 0, %s96
      %s113 = sphi 0, %s97
      %s123 = sphi 0, %s125
      %s126 = sphi 0, %s123
      %s127 = sphi 0, %s126
      %s143 = sphi 0, %s127
    $region4: #{tpu_custom_call.1} parent=1 // loop_header_branch
      %15 = sbr.rel (%p13) target = $region8
    $region5: #{tpu_custom_call.1} parent=1 // loop_body
      %s17 = ssub.s32 %s12, 1
      %s18 = ssub.s32 %s12, 2
      %s28 = sadd.s32 1, %s21
      %p29 = scmp.ge.s32.totalorder %s28, 1
      %s30 = scalar_select %p29, 0, %s28
      %s31 = sadd.s32 1, %s20
      %s32 = scalar_select %p29, %s31, %s20
      %p33 = scmp.ge.s32.totalorder %s32, 1
      %s34 = scalar_select %p33, 0, %s32
      %s35 = sadd.s32 1, %s19
      %s36 = scalar_select %p33, %s35, %s19
      %p37 = scmp.ge.s32.totalorder %s36, 2
      %s38 = scalar_select %p37, 0, %s36
      %s39 = ssub.s32 %s19, %s38
      %p40 = scmp.eq.s32.totalorder %s39, 0
      %s42 = sadd.s32 %s41, 1
      %s43 = scalar_select %p40, %s41, %s42
      %p46 = pneg %p40
      %p47 = scmp.eq.s32.totalorder %s12, 1
      %p48 = por %p46, %p47
      %p49 = scmp.ne.s32.totalorder %s41, %s44
      %p50 = scmp.eq.s32.totalorder %s12, 0
      %p51 = por %p49, %p50
      %p52 = scmp.ne.s32.totalorder %s41, %s44
      %p53 = scmp.eq.s32.totalorder %s17, 1
      %p54 = por %p52, %p53
      %p55 = scmp.ne.s32.totalorder %s44, %s45
      %p56 = scmp.eq.s32.totalorder %s17, 0
      %p57 = por %p55, %p56
      %p58 = scmp.ne.s32.totalorder %s44, %s45
      %p59 = scmp.eq.s32.totalorder %s18, 1
      %p60 = por %p58, %p59
      %p62 = scmp.ne.s32.totalorder %s45, %s61
      %p63 = scmp.eq.s32.totalorder %s18, 0
      %p64 = por %p62, %p63
      %s65 = ssub.s32 %s20, %s34
      %p66 = scmp.eq.s32.totalorder %s65, 0
      %s68 = sadd.s32 %s67, 1
      %s69 = scalar_select %p66, %s67, %s68
      %p72 = pneg %p66
      %p73 = scmp.eq.s32.totalorder %s12, 1
      %p74 = por %p72, %p73
      %p75 = scmp.ne.s32.totalorder %s67, %s70
      %p76 = scmp.eq.s32.totalorder %s12, 0
      %p77 = por %p75, %p76
      %p78 = scmp.ne.s32.totalorder %s67, %s70
      %p79 = scmp.eq.s32.totalorder %s17, 1
      %p80 = por %p78, %p79
      %p81 = scmp.ne.s32.totalorder %s70, %s71
      %p82 = scmp.eq.s32.totalorder %s17, 0
      %p83 = por %p81, %p82
      %p84 = scmp.ne.s32.totalorder %s70, %s71
      %p85 = scmp.eq.s32.totalorder %s18, 1
      %p86 = por %p84, %p85
      %p88 = scmp.ne.s32.totalorder %s71, %s87
      %p89 = scmp.eq.s32.totalorder %s18, 0
      %p90 = por %p88, %p89
      %s91 = ssub.s32 %s20, %s34
      %p92 = scmp.eq.s32.totalorder %s91, 0
      %s94 = sadd.s32 %s93, 1
      %s95 = scalar_select %p92, %s93, %s94
      %p98 = pneg %p92
      %p99 = scmp.eq.s32.totalorder %s12, 1
      %p100 = por %p98, %p99
      %p101 = scmp.ne.s32.totalorder %s93, %s96
      %p102 = scmp.eq.s32.totalorder %s12, 0
      %p103 = por %p101, %p102
      %p104 = scmp.ne.s32.totalorder %s93, %s96
      %p105 = scmp.eq.s32.totalorder %s17, 1
      %p106 = por %p104, %p105
      %p107 = scmp.ne.s32.totalorder %s96, %s97
      %p108 = scmp.eq.s32.totalorder %s17, 0
      %p109 = por %p107, %p108
      %p110 = scmp.ne.s32.totalorder %s96, %s97
      %p111 = scmp.eq.s32.totalorder %s18, 1
      %p112 = por %p110, %p111
      %p114 = scmp.ne.s32.totalorder %s97, %s113
      %p115 = scmp.eq.s32.totalorder %s18, 0
      %p116 = por %p114, %p115
      %s117 = ssub.s32 %s19, %s38
      %s118 = ssub.s32 %s21, %s30
      %s119 = sor.u32 %s117, %s118
      %s120 = ssub.s32 %s20, %s34
      %s121 = sor.u32 %s119, %s120
      %p122 = scmp.eq.s32.totalorder %s121, 0
      %s124 = sadd.s32 %s123, 1
      %s125 = scalar_select %p122, %s123, %s124
      %p128 = pneg %p122
      %p129 = scmp.eq.s32.totalorder %s12, 1
      %p130 = por %p128, %p129
      %p131 = scmp.ne.s32.totalorder %s123, %s126
      %p132 = scmp.eq.s32.totalorder %s12, 0
      %p133 = por %p131, %p132
      %p134 = scmp.ne.s32.totalorder %s123, %s126
      %p135 = scmp.eq.s32.totalorder %s17, 1
      %p136 = por %p134, %p135
      %p137 = scmp.ne.s32.totalorder %s126, %s127
      %p138 = scmp.eq.s32.totalorder %s17, 0
      %p139 = por %p137, %p138
      %p140 = scmp.ne.s32.totalorder %s126, %s127
      %p141 = scmp.eq.s32.totalorder %s18, 1
      %p142 = por %p140, %p141
      %p144 = scmp.ne.s32.totalorder %s127, %s143
      %p145 = scmp.eq.s32.totalorder %s18, 0
      %p146 = por %p144, %p145
      %p147 = scmp.le.s32.totalorder 1, %s12
      %p148 = scmp.lt.s32.totalorder %s12, 3
      %p149 = pnand %p147, %p148
      %p150 = pneg %p149
      // Predicated region
      $region9: #{tpu_custom_call.1} parent=5 // pred_check
        _
      $region10: #{tpu_custom_call.1} parent=5 // pred_check_branch
        %152 = sbr.rel (%p149) target = $region12
      $region11: #{tpu_custom_call.1} parent=5 // pred_region
        %s153 = ssub.s32 %s12, 1
        // Predicated region
        $region13: #{tpu_custom_call.1} parent=11 // pred_check
          %p154 = pneg %p83
        $region14: #{tpu_custom_call.1} parent=11 // pred_check_branch
          %156 = sbr.rel (%p154) target = $region16
        $region15: #{tpu_custom_call.1} parent=11 // pred_region
          %p157 = scmp.lt.s32.totalorder %s23, 0
          %s158 = scalar_select %p157, %s23, 0
          %s159 = smul.addr %s158, 2
          %s160 = scalar_lea.vmem %s1, %s159
        $region16: #{tpu_custom_call.1} parent=11 // pred_fallthru
          _
        // Predicated region
        $region17: #{tpu_custom_call.1} parent=11 // pred_check
          %p161 = pneg %p109
        $region18: #{tpu_custom_call.1} parent=11 // pred_check_branch
          %163 = sbr.rel (%p161) target = $region20
        $region19: #{tpu_custom_call.1} parent=11 // pred_region
          %p164 = scmp.lt.s32.totalorder %s23, 0
          %s165 = scalar_select %p164, %s23, 0
          %s166 = scalar_lea.vmem %s2, %s165
        $region20: #{tpu_custom_call.1} parent=11 // pred_fallthru
          _
      $region12: #{tpu_custom_call.1} parent=5 // pred_fallthru
        _
      %p167 = scmp.lt.s32.totalorder %s12, 2
      // Predicated region
      $region21: #{tpu_custom_call.1} parent=5 // pred_check
        %p168 = pneg %p167
      $region22: #{tpu_custom_call.1} parent=5 // pred_check_branch
        %170 = sbr.rel (%p168) target = $region24
      $region23: #{tpu_custom_call.1} parent=5 // pred_region
        // Predicated region
        $region25: #{tpu_custom_call.1} parent=23 // pred_check
          %p171 = pneg %p51
        $region26: #{tpu_custom_call.1} parent=23 // pred_check_branch
          %173 = sbr.rel (%p171) target = $region28
        $region27: #{tpu_custom_call.1} parent=23 // pred_region
          %p174 = scmp.lt.s32.totalorder %s19, 1
          %s175 = scalar_select %p174, %s19, 1
          %s176 = smul.addr %s175, 54
          %s177 = smul.addr %s176, 4
          %s178 = scalar_lea.vmem %s0, %s177
        $region28: #{tpu_custom_call.1} parent=23 // pred_fallthru
          _
      $region24: #{tpu_custom_call.1} parent=5 // pred_fallthru
        _
      %p179 = scmp.le.s32.totalorder 1, %s12
      %p180 = scmp.lt.s32.totalorder %s12, 3
      %p181 = pnand %p179, %p180
      %p182 = pneg %p181
      // Predicated region
      $region29: #{tpu_custom_call.1} parent=5 // pred_check
        _
      $region30: #{tpu_custom_call.1} parent=5 // pred_check_branch
        %184 = sbr.rel (%p181) target = $region32
      $region31: #{tpu_custom_call.1} parent=5 // pred_region
        %s185 = ssub.s32 %s12, 1
        %p186 = scmp.lt.s32.totalorder %s22, 1
        %s187 = scalar_select %p186, %s22, 1
        %s188 = smul.addr %s187, 54
        %s189 = smul.addr %s188, 4
        %s190 = scalar_lea.vmem %s0, %s189
        %p191 = pneg %p57
        %p192 = pneg %p54
        %p193 = scmp.lt.s32.totalorder %s23, 0
        %s194 = scalar_select %p193, %s23, 0
        %s195 = smul.addr %s194, 2
        %s196 = scalar_lea.vmem %s1, %s195
        %p197 = pneg %p83
        %p198 = pneg %p80
        %p199 = scmp.lt.s32.totalorder %s23, 0
        %s200 = scalar_select %p199, %s23, 0
        %s201 = scalar_lea.vmem %s2, %s200
        %p202 = pneg %p109
        %p203 = pneg %p106
        %p204 = pneg %p139
        %p205 = pneg %p136
        %s206 = sand.u32 %s126, 1
        %s207 = scalar_lea.sflag [#allocation3], %s206
        %s208 = sand.u32 %s126, 1
        %s209 = smul.addr %s208, 256
        %s210 = scalar_lea.vmem [#allocation2], %s209
        %p211 = scmp.lt.s32.totalorder %s22, 1
        %s212 = scalar_select %p211, %s22, 1
        %s213 = smul.addr %s212, 54
        %s214 = smul.addr %s213, 4
        %s215 = scalar_lea.vmem %s0, %s214
        %p216 = scmp.lt.s32.totalorder %s23, 0
        %s217 = scalar_select %p216, %s23, 0
        %s218 = smul.addr %s217, 2
        %s219 = scalar_lea.vmem %s1, %s218
        %p220 = scmp.lt.s32.totalorder %s23, 0
        %s221 = scalar_select %p220, %s23, 0
        %s222 = scalar_lea.vmem %s2, %s221
        %s223 = smul.u32 16, %s24
        %s225 = smul.u32 %s24, 16
        %s226 = smul.u32 %s225, 3
        %s227 = smul.addr %s226, 4
        %s228 = scalar_lea.vmem %s215, %s227
        %v229 = vld [vmem:[%s228] sm:$0xf]
        %v230 = vld [vmem:[%s228 + $0x4] sm:$0xf]
        %v231 = vld [vmem:[%s228 + $0xc] sm:$0xf]
        %v232 = vld [vmem:[%s228 + $0x10] sm:$0xf]
        %v233 = vld [vmem:[%s228 + $0x18] sm:$0xf]
        %v234 = vld [vmem:[%s228 + $0x1c] sm:$0xf]
        %v235 = vld [vmem:[%s228 + $0x24] sm:$0xf]
        %v236 = vld [vmem:[%s228 + $0x28] sm:$0xf]
        %v237 = vld [vmem:[%s228 + $0x30] sm:$0xf]
        %v238 = vld [vmem:[%s228 + $0x34] sm:$0xf]
        %v239 = vld [vmem:[%s228 + $0x3c] sm:$0xf]
        %v240 = vld [vmem:[%s228 + $0x40] sm:$0xf]
        %v241 = vld [vmem:[%s228 + $0x48] sm:$0xf]
        %v242 = vld [vmem:[%s228 + $0x4c] sm:$0xf]
        %v243 = vld [vmem:[%s228 + $0x54] sm:$0xf]
        %v244 = vld [vmem:[%s228 + $0x58] sm:$0xf]
        %v245 = vld [vmem:[%s228 + $0x60] sm:$0xf]
        %v246 = vld [vmem:[%s228 + $0x64] sm:$0xf]
        %v247 = vld [vmem:[%s228 + $0x6c] sm:$0xf]
        %v248 = vld [vmem:[%s228 + $0x70] sm:$0xf]
        %v249 = vld [vmem:[%s228 + $0x78] sm:$0xf]
        %v250 = vld [vmem:[%s228 + $0x7c] sm:$0xf]
        %v251 = vld [vmem:[%s228 + $0x84] sm:$0xf]
        %v252 = vld [vmem:[%s228 + $0x88] sm:$0xf]
        %v253 = vld [vmem:[%s228 + $0x90] sm:$0xf]
        %v254 = vld [vmem:[%s228 + $0x94] sm:$0xf]
        %v255 = vld [vmem:[%s228 + $0x9c] sm:$0xf]
        %v256 = vld [vmem:[%s228 + $0xa0] sm:$0xf]
        %v257 = vld [vmem:[%s228 + $0xa8] sm:$0xf]
        %v258 = vld [vmem:[%s228 + $0xac] sm:$0xf]
        %v259 = vld [vmem:[%s228 + $0xb4] sm:$0xf]
        %v260 = vld [vmem:[%s228 + $0xb8] sm:$0xf]
        %v261 = vld [vmem:[%s219] sm:$0x3]
        %v262 = vld [vmem:[%s228 + $0x8] sm:$0x1]
        %v263 = vld [vmem:[%s228 + $0x14] sm:$0x1]
        %v264 = vld [vmem:[%s228 + $0x20] sm:$0x1]
        %v265 = vld [vmem:[%s228 + $0x2c] sm:$0x1]
        %v266 = vld [vmem:[%s228 + $0x38] sm:$0x1]
        %v267 = vld [vmem:[%s228 + $0x44] sm:$0x1]
        %v268 = vld [vmem:[%s228 + $0x50] sm:$0x1]
        %v269 = vld [vmem:[%s228 + $0x5c] sm:$0x1]
        %v270 = vld [vmem:[%s228 + $0x68] sm:$0x1]
        %v271 = vld [vmem:[%s228 + $0x74] sm:$0x1]
        %v272 = vld [vmem:[%s228 + $0x80] sm:$0x1]
        %v273 = vld [vmem:[%s228 + $0x8c] sm:$0x1]
        %v274 = vld [vmem:[%s228 + $0x98] sm:$0x1]
        %v275 = vld [vmem:[%s228 + $0xa4] sm:$0x1]
        %v276 = vld [vmem:[%s228 + $0xb0] sm:$0x1]
        %v277 = vld [vmem:[%s228 + $0xbc] sm:$0x1]
        %vm278 = vsmask.f32 3328
        %vm279 = vsmask.f32 7440
        %vm280 = vmor %vm278, %vm279
        %v282 = vshrl.u32 %v229, 16
        %v284 = vrot.slane %v282, 4
        %v285 = vshll.u32 %v229, 16
        %v287 = vrot.slane %v285, 5
        %v288 = vor.u32 %v284, %v287
        %v289 = vrot.slane %v288, 4
        %v291 = vshll.u32 %v230, 16
        %v293 = vrot.slane %v291, 5
        %v294 = vsel %vm280, %v289, %v293
        %v295 = vshrl.u32 %v230, 16
        %v297 = vrot.slane %v295, 4
        %v298 = vor.u32 %v297, %v293
        %v299 = vrot.slane %v298, 4
        %v301 = vshll.u32 %v262, 16
        %v303 = vrot.slane %v301, 5
        %v304 = vsel %vm280, %v299, %v303
        %v306 = vshrl.u32 %v231, 16
        %v308 = vrot.slane %v306, 4
        %v309 = vshll.u32 %v231, 16
        %v311 = vrot.slane %v309, 5
        %v312 = vor.u32 %v308, %v311
        %v313 = vrot.slane %v312, 4
        %v315 = vshll.u32 %v232, 16
        %v317 = vrot.slane %v315, 5
        %v318 = vsel %vm280, %v313, %v317
        %v319 = vshrl.u32 %v232, 16
        %v321 = vrot.slane %v319, 4
        %v322 = vor.u32 %v321, %v317
        %v323 = vrot.slane %v322, 4
        %v325 = vshll.u32 %v263, 16
        %v327 = vrot.slane %v325, 5
        %v328 = vsel %vm280, %v323, %v327
        %v330 = vshrl.u32 %v233, 16
        %v332 = vrot.slane %v330, 4
        %v333 = vshll.u32 %v233, 16
        %v335 = vrot.slane %v333, 5
        %v336 = vor.u32 %v332, %v335
        %v337 = vrot.slane %v336, 4
        %v339 = vshll.u32 %v234, 16
        %v341 = vrot.slane %v339, 5
        %v342 = vsel %vm280, %v337, %v341
        %v343 = vshrl.u32 %v234, 16
        %v345 = vrot.slane %v343, 4
        %v346 = vor.u32 %v345, %v341
        %v347 = vrot.slane %v346, 4
        %v349 = vshll.u32 %v264, 16
        %v351 = vrot.slane %v349, 5
        %v352 = vsel %vm280, %v347, %v351
        %v354 = vshrl.u32 %v235, 16
        %v356 = vrot.slane %v354, 4
        %v357 = vshll.u32 %v235, 16
        %v359 = vrot.slane %v357, 5
        %v360 = vor.u32 %v356, %v359
        %v361 = vrot.slane %v360, 4
        %v363 = vshll.u32 %v236, 16
        %v365 = vrot.slane %v363, 5
        %v366 = vsel %vm280, %v361, %v365
        %v367 = vshrl.u32 %v236, 16
        %v369 = vrot.slane %v367, 4
        %v370 = vor.u32 %v369, %v365
        %v371 = vrot.slane %v370, 4
        %v373 = vshll.u32 %v265, 16
        %v375 = vrot.slane %v373, 5
        %v376 = vsel %vm280, %v371, %v375
        %v378 = vshrl.u32 %v237, 16
        %v380 = vrot.slane %v378, 4
        %v381 = vshll.u32 %v237, 16
        %v383 = vrot.slane %v381, 5
        %v384 = vor.u32 %v380, %v383
        %v385 = vrot.slane %v384, 4
        %v387 = vshll.u32 %v238, 16
        %v389 = vrot.slane %v387, 5
        %v390 = vsel %vm280, %v385, %v389
        %v391 = vshrl.u32 %v238, 16
        %v393 = vrot.slane %v391, 4
        %v394 = vor.u32 %v393, %v389
        %v395 = vrot.slane %v394, 4
        %v397 = vshll.u32 %v266, 16
        %v399 = vrot.slane %v397, 5
        %v400 = vsel %vm280, %v395, %v399
        %v402 = vshrl.u32 %v239, 16
        %v404 = vrot.slane %v402, 4
        %v405 = vshll.u32 %v239, 16
        %v407 = vrot.slane %v405, 5
        %v408 = vor.u32 %v404, %v407
        %v409 = vrot.slane %v408, 4
        %v411 = vshll.u32 %v240, 16
        %v413 = vrot.slane %v411, 5
        %v414 = vsel %vm280, %v409, %v413
        %v415 = vshrl.u32 %v240, 16
        %v417 = vrot.slane %v415, 4
        %v418 = vor.u32 %v417, %v413
        %v419 = vrot.slane %v418, 4
        %v421 = vshll.u32 %v267, 16
        %v423 = vrot.slane %v421, 5
        %v424 = vsel %vm280, %v419, %v423
        %v426 = vshrl.u32 %v241, 16
        %v428 = vrot.slane %v426, 4
        %v429 = vshll.u32 %v241, 16
        %v431 = vrot.slane %v429, 5
        %v432 = vor.u32 %v428, %v431
        %v433 = vrot.slane %v432, 4
        %v435 = vshll.u32 %v242, 16
        %v437 = vrot.slane %v435, 5
        %v438 = vsel %vm280, %v433, %v437
        %v439 = vshrl.u32 %v242, 16
        %v441 = vrot.slane %v439, 4
        %v442 = vor.u32 %v441, %v437
        %v443 = vrot.slane %v442, 4
        %v445 = vshll.u32 %v268, 16
        %v447 = vrot.slane %v445, 5
        %v448 = vsel %vm280, %v443, %v447
        %v450 = vshrl.u32 %v243, 16
        %v452 = vrot.slane %v450, 4
        %v453 = vshll.u32 %v243, 16
        %v455 = vrot.slane %v453, 5
        %v456 = vor.u32 %v452, %v455
        %v457 = vrot.slane %v456, 4
        %v459 = vshll.u32 %v244, 16
        %v461 = vrot.slane %v459, 5
        %v462 = vsel %vm280, %v457, %v461
        %v463 = vshrl.u32 %v244, 16
        %v465 = vrot.slane %v463, 4
        %v466 = vor.u32 %v465, %v461
        %v467 = vrot.slane %v466, 4
        %v469 = vshll.u32 %v269, 16
        %v471 = vrot.slane %v469, 5
        %v472 = vsel %vm280, %v467, %v471
        %v474 = vshrl.u32 %v245, 16
        %v476 = vrot.slane %v474, 4
        %v477 = vshll.u32 %v245, 16
        %v479 = vrot.slane %v477, 5
        %v480 = vor.u32 %v476, %v479
        %v481 = vrot.slane %v480, 4
        %v483 = vshll.u32 %v246, 16
        %v485 = vrot.slane %v483, 5
        %v486 = vsel %vm280, %v481, %v485
        %v487 = vshrl.u32 %v246, 16
        %v489 = vrot.slane %v487, 4
        %v490 = vor.u32 %v489, %v485
        %v491 = vrot.slane %v490, 4
        %v493 = vshll.u32 %v270, 16
        %v495 = vrot.slane %v493, 5
        %v496 = vsel %vm280, %v491, %v495
        %v498 = vshrl.u32 %v247, 16
        %v500 = vrot.slane %v498, 4
        %v501 = vshll.u32 %v247, 16
        %v503 = vrot.slane %v501, 5
        %v504 = vor.u32 %v500, %v503
        %v505 = vrot.slane %v504, 4
        %v507 = vshll.u32 %v248, 16
        %v509 = vrot.slane %v507, 5
        %v510 = vsel %vm280, %v505, %v509
        %v511 = vshrl.u32 %v248, 16
        %v513 = vrot.slane %v511, 4
        %v514 = vor.u32 %v513, %v509
        %v515 = vrot.slane %v514, 4
        %v517 = vshll.u32 %v271, 16
        %v519 = vrot.slane %v517, 5
        %v520 = vsel %vm280, %v515, %v519
        %v522 = vshrl.u32 %v249, 16
        %v524 = vrot.slane %v522, 4
        %v525 = vshll.u32 %v249, 16
        %v527 = vrot.slane %v525, 5
        %v528 = vor.u32 %v524, %v527
        %v529 = vrot.slane %v528, 4
        %v531 = vshll.u32 %v250, 16
        %v533 = vrot.slane %v531, 5
        %v534 = vsel %vm280, %v529, %v533
        %v535 = vshrl.u32 %v250, 16
        %v537 = vrot.slane %v535, 4
        %v538 = vor.u32 %v537, %v533
        %v539 = vrot.slane %v538, 4
        %v541 = vshll.u32 %v272, 16
        %v543 = vrot.slane %v541, 5
        %v544 = vsel %vm280, %v539, %v543
        %v546 = vshrl.u32 %v251, 16
        %v548 = vrot.slane %v546, 4
        %v549 = vshll.u32 %v251, 16
        %v551 = vrot.slane %v549, 5
        %v552 = vor.u32 %v548, %v551
        %v553 = vrot.slane %v552, 4
        %v555 = vshll.u32 %v252, 16
        %v557 = vrot.slane %v555, 5
        %v558 = vsel %vm280, %v553, %v557
        %v559 = vshrl.u32 %v252, 16
        %v561 = vrot.slane %v559, 4
        %v562 = vor.u32 %v561, %v557
        %v563 = vrot.slane %v562, 4
        %v565 = vshll.u32 %v273, 16
        %v567 = vrot.slane %v565, 5
        %v568 = vsel %vm280, %v563, %v567
        %v570 = vshrl.u32 %v253, 16
        %v572 = vrot.slane %v570, 4
        %v573 = vshll.u32 %v253, 16
        %v575 = vrot.slane %v573, 5
        %v576 = vor.u32 %v572, %v575
        %v577 = vrot.slane %v576, 4
        %v579 = vshll.u32 %v254, 16
        %v581 = vrot.slane %v579, 5
        %v582 = vsel %vm280, %v577, %v581
        %v583 = vshrl.u32 %v254, 16
        %v585 = vrot.slane %v583, 4
        %v586 = vor.u32 %v585, %v581
        %v587 = vrot.slane %v586, 4
        %v589 = vshll.u32 %v274, 16
        %v591 = vrot.slane %v589, 5
        %v592 = vsel %vm280, %v587, %v591
        %v594 = vshrl.u32 %v255, 16
        %v596 = vrot.slane %v594, 4
        %v597 = vshll.u32 %v255, 16
        %v599 = vrot.slane %v597, 5
        %v600 = vor.u32 %v596, %v599
        %v601 = vrot.slane %v600, 4
        %v603 = vshll.u32 %v256, 16
        %v605 = vrot.slane %v603, 5
        %v606 = vsel %vm280, %v601, %v605
        %v607 = vshrl.u32 %v256, 16
        %v609 = vrot.slane %v607, 4
        %v610 = vor.u32 %v609, %v605
        %v611 = vrot.slane %v610, 4
        %v613 = vshll.u32 %v275, 16
        %v615 = vrot.slane %v613, 5
        %v616 = vsel %vm280, %v611, %v615
        %v618 = vshrl.u32 %v257, 16
        %v620 = vrot.slane %v618, 4
        %v621 = vshll.u32 %v257, 16
        %v623 = vrot.slane %v621, 5
        %v624 = vor.u32 %v620, %v623
        %v625 = vrot.slane %v624, 4
        %v627 = vshll.u32 %v258, 16
        %v629 = vrot.slane %v627, 5
        %v630 = vsel %vm280, %v625, %v629
        %v631 = vshrl.u32 %v258, 16
        %v633 = vrot.slane %v631, 4
        %v634 = vor.u32 %v633, %v629
        %v635 = vrot.slane %v634, 4
        %v637 = vshll.u32 %v276, 16
        %v639 = vrot.slane %v637, 5
        %v640 = vsel %vm280, %v635, %v639
        %v642 = vshrl.u32 %v259, 16
        %v644 = vrot.slane %v642, 4
        %v645 = vshll.u32 %v259, 16
        %v647 = vrot.slane %v645, 5
        %v648 = vor.u32 %v644, %v647
        %v649 = vrot.slane %v648, 4
        %v651 = vshll.u32 %v260, 16
        %v653 = vrot.slane %v651, 5
        %v654 = vsel %vm280, %v649, %v653
        %v655 = vshrl.u32 %v260, 16
        %v657 = vrot.slane %v655, 4
        %v658 = vor.u32 %v657, %v653
        %v659 = vrot.slane %v658, 4
        %v661 = vshll.u32 %v277, 16
        %v663 = vrot.slane %v661, 5
        %v664 = vsel %vm280, %v659, %v663
        %s665 = scalar_lea.vmem %s219, 2
        %v666 = vld [vmem:[%s665] sm:$0x3]
        %v667 = vunpack.c.l.b16 %v294
        %v668 = vunpack.c.l.b16 %v304
        %v669 = vunpack.c.l.b16 %v318
        %v670 = vunpack.c.l.b16 %v328
        %v671 = vunpack.c.l.b16 %v342
        %v672 = vunpack.c.l.b16 %v352
        %v673 = vunpack.c.l.b16 %v366
        %v674 = vunpack.c.l.b16 %v376
        %v675 = vunpack.c.l.b16 %v390
        %v676 = vunpack.c.l.b16 %v400
        %v677 = vunpack.c.l.b16 %v414
        %v678 = vunpack.c.l.b16 %v424
        %v679 = vunpack.c.l.b16 %v438
        %v680 = vunpack.c.l.b16 %v448
        %v681 = vunpack.c.l.b16 %v462
        %v682 = vunpack.c.l.b16 %v472
        %v683 = vunpack.c.l.b16 %v486
        %v684 = vunpack.c.l.b16 %v496
        %v685 = vunpack.c.l.b16 %v510
        %v686 = vunpack.c.l.b16 %v520
        %v687 = vunpack.c.l.b16 %v534
        %v688 = vunpack.c.l.b16 %v544
        %v689 = vunpack.c.l.b16 %v558
        %v690 = vunpack.c.l.b16 %v568
        %v691 = vunpack.c.l.b16 %v582
        %v692 = vunpack.c.l.b16 %v592
        %v693 = vunpack.c.l.b16 %v606
        %v694 = vunpack.c.l.b16 %v616
        %v695 = vunpack.c.l.b16 %v630
        %v696 = vunpack.c.l.b16 %v640
        %v697 = vunpack.c.l.b16 %v654
        %v698 = vunpack.c.l.b16 %v664
        %v699 = vpack.c.b16 %v668, %v667
        %v700 = vpack.c.b16 %v670, %v669
        %v701 = vpack.c.b16 %v672, %v671
        %v702 = vpack.c.b16 %v674, %v673
        %v703 = vpack.c.b16 %v676, %v675
        %v704 = vpack.c.b16 %v678, %v677
        %v705 = vpack.c.b16 %v680, %v679
        %v706 = vpack.c.b16 %v682, %v681
        %v707 = vpack.c.b16 %v684, %v683
        %v708 = vpack.c.b16 %v686, %v685
        %v709 = vpack.c.b16 %v688, %v687
        %v710 = vpack.c.b16 %v690, %v689
        %v711 = vpack.c.b16 %v692, %v691
        %v712 = vpack.c.b16 %v694, %v693
        %v713 = vpack.c.b16 %v696, %v695
        %v714 = vpack.c.b16 %v698, %v697
        %vm715 = vcmask 31744
        %v717 = vsel %vm715, %v699, 0
        %v720 = vsel %vm715, %v700, 0
        %v723 = vsel %vm715, %v701, 0
        %v726 = vsel %vm715, %v702, 0
        %v729 = vsel %vm715, %v703, 0
        %v732 = vsel %vm715, %v704, 0
        %v735 = vsel %vm715, %v705, 0
        %v738 = vsel %vm715, %v706, 0
        %v741 = vsel %vm715, %v707, 0
        %v744 = vsel %vm715, %v708, 0
        %v747 = vsel %vm715, %v709, 0
        %v750 = vsel %vm715, %v710, 0
        %v753 = vsel %vm715, %v711, 0
        %v756 = vsel %vm715, %v712, 0
        %v759 = vsel %vm715, %v713, 0
        %v762 = vsel %vm715, %v714, 0
        %vm764 = vcmask 1041408
        %v766 = vsel %vm764, %v666, 0
        %768 = vmatprep.subr.bf16.mxu0 0
        %769 = vmatpush1.bf16.msra.mxu0 %v766
        %770 = vmatprep.subr.bf16.mxu0 0
        %771 = vmatpush1.bf16.msra.mxu0 0
        %772 = vmatprep.subr.bf16.mxu0 0
        %773 = vmatpush1.bf16.msra.mxu0 0
        %774 = vmatprep.subr.bf16.mxu0 0
        %775 = vmatpush1.bf16.msra.mxu0 0
        %776 = vmatprep.subr.bf16.mxu0 0
        %777 = vmatpush1.bf16.msra.mxu0 0
        %778 = vmatprep.subr.bf16.mxu0 0
        %779 = vmatpush1.bf16.msra.mxu0 0
        %780 = vmatprep.subr.bf16.mxu0 0
        %781 = vmatpush1.bf16.msra.mxu0 0
        %782 = vmatprep.subr.bf16.mxu0 0
        %783 = vmatpush1.bf16.msra.mxu0 0
        %784 = vmatprep.subr.bf16.mxu0 0
        %785 = vmatpush1.bf16.msra.mxu0 0
        %786 = vmatprep.subr.bf16.mxu0 0
        %787 = vmatpush1.bf16.msra.mxu0 0
        %788 = vmatprep.subr.bf16.mxu0 0
        %789 = vmatpush1.bf16.msra.mxu0 0
        %790 = vmatprep.subr.bf16.mxu0 0
        %791 = vmatpush1.bf16.msra.mxu0 0
        %792 = vmatprep.subr.bf16.mxu0 0
        %793 = vmatpush1.bf16.msra.mxu0 0
        %794 = vmatprep.subr.bf16.mxu0 0
        %795 = vmatpush1.bf16.msra.mxu0 0
        %796 = vmatprep.subr.bf16.mxu0 0
        %797 = vmatpush1.bf16.msra.mxu0 0
        %798 = vmatprep.subr.bf16.mxu0 0
        %799 = vmatpush1.bf16.msra.mxu0 0
        %800 = vmatprep.mubr.bf16.mxu0 0
        %801 = vmatmul.mubr.bf16.gmra.mrb[0].mxu0 %v717
        %v802 = vpop.f32.mrb[0].mxu0
        %v803 = vadd.f32 0.0, %v802
        %v804 = vpop.f32.mrb[0].mxu0
        %v805 = vpop.f32.mrb[0].mxu0
        %v806 = vadd.f32 0.0, %v805
        %v807 = vpop.f32.mrb[0].mxu0
        %808 = vmatprep.mubr.bf16.mxu0 0
        %809 = vmatmul.mubr.bf16.gmra.mrb[0].mxu0 %v720
        %v810 = vpop.f32.mrb[0].mxu0
        %v811 = vadd.f32 0.0, %v810
        %v812 = vpop.f32.mrb[0].mxu0
        %v813 = vpop.f32.mrb[0].mxu0
        %v814 = vadd.f32 0.0, %v813
        %v815 = vpop.f32.mrb[0].mxu0
        %816 = vmatprep.mubr.bf16.mxu0 0
        %817 = vmatmul.mubr.bf16.gmra.mrb[0].mxu0 %v723
        %v818 = vpop.f32.mrb[0].mxu0
        %v819 = vadd.f32 0.0, %v818
        %v820 = vpop.f32.mrb[0].mxu0
        %v821 = vpop.f32.mrb[0].mxu0
        %v822 = vadd.f32 0.0, %v821
        %v823 = vpop.f32.mrb[0].mxu0
        %824 = vmatprep.mubr.bf16.mxu0 0
        %825 = vmatmul.mubr.bf16.gmra.mrb[0].mxu0 %v726
        %v826 = vpop.f32.mrb[0].mxu0
        %v827 = vadd.f32 0.0, %v826
        %v828 = vpop.f32.mrb[0].mxu0
        %v829 = vpop.f32.mrb[0].mxu0
        %v830 = vadd.f32 0.0, %v829
        %v831 = vpop.f32.mrb[0].mxu0
        %832 = vmatprep.mubr.bf16.mxu0 0
        %833 = vmatmul.mubr.bf16.gmra.mrb[0].mxu0 %v729
        %v834 = vpop.f32.mrb[0].mxu0
        %v835 = vadd.f32 0.0, %v834
        %v836 = vpop.f32.mrb[0].mxu0
        %v837 = vpop.f32.mrb[0].mxu0
        %v838 = vadd.f32 0.0, %v837
        %v839 = vpop.f32.mrb[0].mxu0
        %840 = vmatprep.mubr.bf16.mxu0 0
        %841 = vmatmul.mubr.bf16.gmra.mrb[0].mxu0 %v732
        %v842 = vpop.f32.mrb[0].mxu0
        %v843 = vadd.f32 0.0, %v842
        %v844 = vpop.f32.mrb[0].mxu0
        %v845 = vpop.f32.mrb[0].mxu0
        %v846 = vadd.f32 0.0, %v845
        %v847 = vpop.f32.mrb[0].mxu0
        %848 = vmatprep.mubr.bf16.mxu0 0
        %849 = vmatmul.mubr.bf16.gmra.mrb[0].mxu0 %v735
        %v850 = vpop.f32.mrb[0].mxu0
        %v851 = vadd.f32 0.0, %v850
        %v852 = vpop.f32.mrb[0].mxu0
        %v853 = vpop.f32.mrb[0].mxu0
        %v854 = vadd.f32 0.0, %v853
        %v855 = vpop.f32.mrb[0].mxu0
        %856 = vmatprep.mubr.bf16.mxu0 0
        %857 = vmatmul.mubr.bf16.gmra.mrb[0].mxu0 %v738
        %v858 = vpop.f32.mrb[0].mxu0
        %v859 = vadd.f32 0.0, %v858
        %v860 = vpop.f32.mrb[0].mxu0
        %v861 = vpop.f32.mrb[0].mxu0
        %v862 = vadd.f32 0.0, %v861
        %v863 = vpop.f32.mrb[0].mxu0
        %864 = vmatprep.mubr.bf16.mxu0 0
        %865 = vmatmul.mubr.bf16.gmra.mrb[0].mxu0 %v741
        %v866 = vpop.f32.mrb[0].mxu0
        %v867 = vadd.f32 0.0, %v866
        %v868 = vpop.f32.mrb[0].mxu0
        %v869 = vpop.f32.mrb[0].mxu0
        %v870 = vadd.f32 0.0, %v869
        %v871 = vpop.f32.mrb[0].mxu0
        %872 = vmatprep.mubr.bf16.mxu0 0
        %873 = vmatmul.mubr.bf16.gmra.mrb[0].mxu0 %v744
        %v874 = vpop.f32.mrb[0].mxu0
        %v875 = vadd.f32 0.0, %v874
        %v876 = vpop.f32.mrb[0].mxu0
        %v877 = vpop.f32.mrb[0].mxu0
        %v878 = vadd.f32 0.0, %v877
        %v879 = vpop.f32.mrb[0].mxu0
        %880 = vmatprep.mubr.bf16.mxu0 0
        %881 = vmatmul.mubr.bf16.gmra.mrb[0].mxu0 %v747
        %v882 = vpop.f32.mrb[0].mxu0
        %v883 = vadd.f32 0.0, %v882
        %v884 = vpop.f32.mrb[0].mxu0
        %v885 = vpop.f32.mrb[0].mxu0
        %v886 = vadd.f32 0.0, %v885
        %v887 = vpop.f32.mrb[0].mxu0
        %888 = vmatprep.mubr.bf16.mxu0 0
        %889 = vmatmul.mubr.bf16.gmra.mrb[0].mxu0 %v750
        %v890 = vpop.f32.mrb[0].mxu0
        %v891 = vadd.f32 0.0, %v890
        %v892 = vpop.f32.mrb[0].mxu0
        %v893 = vpop.f32.mrb[0].mxu0
        %v894 = vadd.f32 0.0, %v893
        %v895 = vpop.f32.mrb[0].mxu0
        %896 = vmatprep.mubr.bf16.mxu0 0
        %897 = vmatmul.mubr.bf16.gmra.mrb[0].mxu0 %v753
        %v898 = vpop.f32.mrb[0].mxu0
        %v899 = vadd.f32 0.0, %v898
        %v900 = vpop.f32.mrb[0].mxu0
        %v901 = vpop.f32.mrb[0].mxu0
        %v902 = vadd.f32 0.0, %v901
        %v903 = vpop.f32.mrb[0].mxu0
        %904 = vmatprep.mubr.bf16.mxu0 0
        %905 = vmatmul.mubr.bf16.gmra.mrb[0].mxu0 %v756
        %v906 = vpop.f32.mrb[0].mxu0
        %v907 = vadd.f32 0.0, %v906
        %v908 = vpop.f32.mrb[0].mxu0
        %v909 = vpop.f32.mrb[0].mxu0
        %v910 = vadd.f32 0.0, %v909
        %v911 = vpop.f32.mrb[0].mxu0
        %912 = vmatprep.mubr.bf16.mxu0 0
        %913 = vmatmul.mubr.bf16.gmra.mrb[0].mxu0 %v759
        %v914 = vpop.f32.mrb[0].mxu0
        %v915 = vadd.f32 0.0, %v914
        %v916 = vpop.f32.mrb[0].mxu0
        %v917 = vpop.f32.mrb[0].mxu0
        %v918 = vadd.f32 0.0, %v917
        %v919 = vpop.f32.mrb[0].mxu0
        %920 = vmatprep.mubr.bf16.mxu0 0
        %921 = vmatmul.mubr.bf16.gmra.mrb[0].mxu0 %v762
        %v922 = vpop.f32.mrb[0].mxu0
        %v923 = vadd.f32 0.0, %v922
        %v924 = vpop.f32.mrb[0].mxu0
        %v925 = vpop.f32.mrb[0].mxu0
        %v926 = vadd.f32 0.0, %v925
        %v927 = vpop.f32.mrb[0].mxu0
        %928 = vdwg.mxu0
        %v961 = vunpack.c.l.b16 %v229
        %v962 = vunpack.c.l.b16 %v230
        %v963 = vunpack.c.l.b16 %v231
        %v964 = vunpack.c.l.b16 %v232
        %v965 = vunpack.c.l.b16 %v233
        %v966 = vunpack.c.l.b16 %v234
        %v967 = vunpack.c.l.b16 %v235
        %v968 = vunpack.c.l.b16 %v236
        %v969 = vunpack.c.l.b16 %v237
        %v970 = vunpack.c.l.b16 %v238
        %v971 = vunpack.c.l.b16 %v239
        %v972 = vunpack.c.l.b16 %v240
        %v973 = vunpack.c.l.b16 %v241
        %v974 = vunpack.c.l.b16 %v242
        %v975 = vunpack.c.l.b16 %v243
        %v976 = vunpack.c.l.b16 %v244
        %v977 = vunpack.c.l.b16 %v245
        %v978 = vunpack.c.l.b16 %v246
        %v979 = vunpack.c.l.b16 %v247
        %v980 = vunpack.c.l.b16 %v248
        %v981 = vunpack.c.l.b16 %v249
        %v982 = vunpack.c.l.b16 %v250
        %v983 = vunpack.c.l.b16 %v251
        %v984 = vunpack.c.l.b16 %v252
        %v985 = vunpack.c.l.b16 %v253
        %v986 = vunpack.c.l.b16 %v254
        %v987 = vunpack.c.l.b16 %v255
        %v988 = vunpack.c.l.b16 %v256
        %v989 = vunpack.c.l.b16 %v257
        %v990 = vunpack.c.l.b16 %v258
        %v991 = vunpack.c.l.b16 %v259
        %v992 = vunpack.c.l.b16 %v260
        %v993 = vpack.c.b16 %v962, %v961
        %v994 = vpack.c.b16 %v964, %v963
        %v995 = vpack.c.b16 %v966, %v965
        %v996 = vpack.c.b16 %v968, %v967
        %v997 = vpack.c.b16 %v970, %v969
        %v998 = vpack.c.b16 %v972, %v971
        %v999 = vpack.c.b16 %v974, %v973
        %v1000 = vpack.c.b16 %v976, %v975
        %v1001 = vpack.c.b16 %v978, %v977
        %v1002 = vpack.c.b16 %v980, %v979
        %v1003 = vpack.c.b16 %v982, %v981
        %v1004 = vpack.c.b16 %v984, %v983
        %v1005 = vpack.c.b16 %v986, %v985
        %v1006 = vpack.c.b16 %v988, %v987
        %v1007 = vpack.c.b16 %v990, %v989
        %v1008 = vpack.c.b16 %v992, %v991
        %v1010 = vsel %vm715, %v993, 0
        %v1013 = vsel %vm715, %v994, 0
        %v1016 = vsel %vm715, %v995, 0
        %v1019 = vsel %vm715, %v996, 0
        %v1022 = vsel %vm715, %v997, 0
        %v1025 = vsel %vm715, %v998, 0
        %v1028 = vsel %vm715, %v999, 0
        %v1031 = vsel %vm715, %v1000, 0
        %v1034 = vsel %vm715, %v1001, 0
        %v1037 = vsel %vm715, %v1002, 0
        %v1040 = vsel %vm715, %v1003, 0
        %v1043 = vsel %vm715, %v1004, 0
        %v1046 = vsel %vm715, %v1005, 0
        %v1049 = vsel %vm715, %v1006, 0
        %v1052 = vsel %vm715, %v1007, 0
        %v1055 = vsel %vm715, %v1008, 0
        %v1058 = vsel %vm764, %v261, 0
        %1060 = vmatprep.subr.bf16.mxu0 0
        %1061 = vmatpush1.bf16.msra.mxu0 %v1058
        %1062 = vmatprep.subr.bf16.mxu0 0
        %1063 = vmatpush1.bf16.msra.mxu0 0
        %1064 = vmatprep.subr.bf16.mxu0 0
        %1065 = vmatpush1.bf16.msra.mxu0 0
        %1066 = vmatprep.subr.bf16.mxu0 0
        %1067 = vmatpush1.bf16.msra.mxu0 0
        %1068 = vmatprep.subr.bf16.mxu0 0
        %1069 = vmatpush1.bf16.msra.mxu0 0
        %1070 = vmatprep.subr.bf16.mxu0 0
        %1071 = vmatpush1.bf16.msra.mxu0 0
        %1072 = vmatprep.subr.bf16.mxu0 0
        %1073 = vmatpush1.bf16.msra.mxu0 0
        %1074 = vmatprep.subr.bf16.mxu0 0
        %1075 = vmatpush1.bf16.msra.mxu0 0
        %1076 = vmatprep.subr.bf16.mxu0 0
        %1077 = vmatpush1.bf16.msra.mxu0 0
        %1078 = vmatprep.subr.bf16.mxu0 0
        %1079 = vmatpush1.bf16.msra.mxu0 0
        %1080 = vmatprep.subr.bf16.mxu0 0
        %1081 = vmatpush1.bf16.msra.mxu0 0
        %1082 = vmatprep.subr.bf16.mxu0 0
        %1083 = vmatpush1.bf16.msra.mxu0 0
        %1084 = vmatprep.subr.bf16.mxu0 0
        %1085 = vmatpush1.bf16.msra.mxu0 0
        %1086 = vmatprep.subr.bf16.mxu0 0
        %1087 = vmatpush1.bf16.msra.mxu0 0
        %1088 = vmatprep.subr.bf16.mxu0 0
        %1089 = vmatpush1.bf16.msra.mxu0 0
        %1090 = vmatprep.subr.bf16.mxu0 0
        %1091 = vmatpush1.bf16.msra.mxu0 0
        %1092 = vmatprep.mubr.bf16.mxu0 0
        %1093 = vmatmul.mubr.bf16.gmra.mrb[0].mxu0 %v1010
        %v1094 = vpop.f32.mrb[0].mxu0
        %v1095 = vadd.f32 %v803, %v1094
        %v1096 = vpop.f32.mrb[0].mxu0
        %v1097 = vpop.f32.mrb[0].mxu0
        %v1098 = vadd.f32 %v806, %v1097
        %v1099 = vpop.f32.mrb[0].mxu0
        %1100 = vmatprep.mubr.bf16.mxu0 0
        %1101 = vmatmul.mubr.bf16.gmra.mrb[0].mxu0 %v1013
        %v1102 = vpop.f32.mrb[0].mxu0
        %v1103 = vadd.f32 %v811, %v1102
        %v1104 = vpop.f32.mrb[0].mxu0
        %v1105 = vpop.f32.mrb[0].mxu0
        %v1106 = vadd.f32 %v814, %v1105
        %v1107 = vpop.f32.mrb[0].mxu0
        %1108 = vmatprep.mubr.bf16.mxu0 0
        %1109 = vmatmul.mubr.bf16.gmra.mrb[0].mxu0 %v1016
        %v1110 = vpop.f32.mrb[0].mxu0
        %v1111 = vadd.f32 %v819, %v1110
        %v1112 = vpop.f32.mrb[0].mxu0
        %v1113 = vpop.f32.mrb[0].mxu0
        %v1114 = vadd.f32 %v822, %v1113
        %v1115 = vpop.f32.mrb[0].mxu0
        %1116 = vmatprep.mubr.bf16.mxu0 0
        %1117 = vmatmul.mubr.bf16.gmra.mrb[0].mxu0 %v1019
        %v1118 = vpop.f32.mrb[0].mxu0
        %v1119 = vadd.f32 %v827, %v1118
        %v1120 = vpop.f32.mrb[0].mxu0
        %v1121 = vpop.f32.mrb[0].mxu0
        %v1122 = vadd.f32 %v830, %v1121
        %v1123 = vpop.f32.mrb[0].mxu0
        %1124 = vmatprep.mubr.bf16.mxu0 0
        %1125 = vmatmul.mubr.bf16.gmra.mrb[0].mxu0 %v1022
        %v1126 = vpop.f32.mrb[0].mxu0
        %v1127 = vadd.f32 %v835, %v1126
        %v1128 = vpop.f32.mrb[0].mxu0
        %v1129 = vpop.f32.mrb[0].mxu0
        %v1130 = vadd.f32 %v838, %v1129
        %v1131 = vpop.f32.mrb[0].mxu0
        %1132 = vmatprep.mubr.bf16.mxu0 0
        %1133 = vmatmul.mubr.bf16.gmra.mrb[0].mxu0 %v1025
        %v1134 = vpop.f32.mrb[0].mxu0
        %v1135 = vadd.f32 %v843, %v1134
        %v1136 = vpop.f32.mrb[0].mxu0
        %v1137 = vpop.f32.mrb[0].mxu0
        %v1138 = vadd.f32 %v846, %v1137
        %v1139 = vpop.f32.mrb[0].mxu0
        %1140 = vmatprep.mubr.bf16.mxu0 0
        %1141 = vmatmul.mubr.bf16.gmra.mrb[0].mxu0 %v1028
        %v1142 = vpop.f32.mrb[0].mxu0
        %v1143 = vadd.f32 %v851, %v1142
        %v1144 = vpop.f32.mrb[0].mxu0
        %v1145 = vpop.f32.mrb[0].mxu0
        %v1146 = vadd.f32 %v854, %v1145
        %v1147 = vpop.f32.mrb[0].mxu0
        %1148 = vmatprep.mubr.bf16.mxu0 0
        %1149 = vmatmul.mubr.bf16.gmra.mrb[0].mxu0 %v1031
        %v1150 = vpop.f32.mrb[0].mxu0
        %v1151 = vadd.f32 %v859, %v1150
        %v1152 = vpop.f32.mrb[0].mxu0
        %v1153 = vpop.f32.mrb[0].mxu0
        %v1154 = vadd.f32 %v862, %v1153
        %v1155 = vpop.f32.mrb[0].mxu0
        %1156 = vmatprep.mubr.bf16.mxu0 0
        %1157 = vmatmul.mubr.bf16.gmra.mrb[0].mxu0 %v1034
        %v1158 = vpop.f32.mrb[0].mxu0
        %v1159 = vadd.f32 %v867, %v1158
        %v1160 = vpop.f32.mrb[0].mxu0
        %v1161 = vpop.f32.mrb[0].mxu0
        %v1162 = vadd.f32 %v870, %v1161
        %v1163 = vpop.f32.mrb[0].mxu0
        %1164 = vmatprep.mubr.bf16.mxu0 0
        %1165 = vmatmul.mubr.bf16.gmra.mrb[0].mxu0 %v1037
        %v1166 = vpop.f32.mrb[0].mxu0
        %v1167 = vadd.f32 %v875, %v1166
        %v1168 = vpop.f32.mrb[0].mxu0
        %v1169 = vpop.f32.mrb[0].mxu0
        %v1170 = vadd.f32 %v878, %v1169
        %v1171 = vpop.f32.mrb[0].mxu0
        %1172 = vmatprep.mubr.bf16.mxu0 0
        %1173 = vmatmul.mubr.bf16.gmra.mrb[0].mxu0 %v1040
        %v1174 = vpop.f32.mrb[0].mxu0
        %v1175 = vadd.f32 %v883, %v1174
        %v1176 = vpop.f32.mrb[0].mxu0
        %v1177 = vpop.f32.mrb[0].mxu0
        %v1178 = vadd.f32 %v886, %v1177
        %v1179 = vpop.f32.mrb[0].mxu0
        %1180 = vmatprep.mubr.bf16.mxu0 0
        %1181 = vmatmul.mubr.bf16.gmra.mrb[0].mxu0 %v1043
        %v1182 = vpop.f32.mrb[0].mxu0
        %v1183 = vadd.f32 %v891, %v1182
        %v1184 = vpop.f32.mrb[0].mxu0
        %v1185 = vpop.f32.mrb[0].mxu0
        %v1186 = vadd.f32 %v894, %v1185
        %v1187 = vpop.f32.mrb[0].mxu0
        %1188 = vmatprep.mubr.bf16.mxu0 0
        %1189 = vmatmul.mubr.bf16.gmra.mrb[0].mxu0 %v1046
        %v1190 = vpop.f32.mrb[0].mxu0
        %v1191 = vadd.f32 %v899, %v1190
        %v1192 = vpop.f32.mrb[0].mxu0
        %v1193 = vpop.f32.mrb[0].mxu0
        %v1194 = vadd.f32 %v902, %v1193
        %v1195 = vpop.f32.mrb[0].mxu0
        %1196 = vmatprep.mubr.bf16.mxu0 0
        %1197 = vmatmul.mubr.bf16.gmra.mrb[0].mxu0 %v1049
        %v1198 = vpop.f32.mrb[0].mxu0
        %v1199 = vadd.f32 %v907, %v1198
        %v1200 = vpop.f32.mrb[0].mxu0
        %v1201 = vpop.f32.mrb[0].mxu0
        %v1202 = vadd.f32 %v910, %v1201
        %v1203 = vpop.f32.mrb[0].mxu0
        %1204 = vmatprep.mubr.bf16.mxu0 0
        %1205 = vmatmul.mubr.bf16.gmra.mrb[0].mxu0 %v1052
        %v1206 = vpop.f32.mrb[0].mxu0
        %v1207 = vadd.f32 %v915, %v1206
        %v1208 = vpop.f32.mrb[0].mxu0
        %v1209 = vpop.f32.mrb[0].mxu0
        %v1210 = vadd.f32 %v918, %v1209
        %v1211 = vpop.f32.mrb[0].mxu0
        %1212 = vmatprep.mubr.bf16.mxu0 0
        %1213 = vmatmul.mubr.bf16.gmra.mrb[0].mxu0 %v1055
        %v1214 = vpop.f32.mrb[0].mxu0
        %v1215 = vadd.f32 %v923, %v1214
        %v1216 = vpop.f32.mrb[0].mxu0
        %v1217 = vpop.f32.mrb[0].mxu0
        %v1218 = vadd.f32 %v926, %v1217
        %v1219 = vpop.f32.mrb[0].mxu0
        %1220 = vdwg.mxu0
        %v1221 = vld [vmem:[%s228] sm:$0xe]
        %v1222 = vld [vmem:[%s228 + $0xc] sm:$0xe]
        %v1223 = vld [vmem:[%s228 + $0x18] sm:$0xe]
        %v1224 = vld [vmem:[%s228 + $0x24] sm:$0xe]
        %v1225 = vld [vmem:[%s228 + $0x30] sm:$0xe]
        %v1226 = vld [vmem:[%s228 + $0x3c] sm:$0xe]
        %v1227 = vld [vmem:[%s228 + $0x48] sm:$0xe]
        %v1228 = vld [vmem:[%s228 + $0x54] sm:$0xe]
        %v1229 = vld [vmem:[%s228 + $0x60] sm:$0xe]
        %v1230 = vld [vmem:[%s228 + $0x6c] sm:$0xe]
        %v1231 = vld [vmem:[%s228 + $0x78] sm:$0xe]
        %v1232 = vld [vmem:[%s228 + $0x84] sm:$0xe]
        %v1233 = vld [vmem:[%s228 + $0x90] sm:$0xe]
        %v1234 = vld [vmem:[%s228 + $0x9c] sm:$0xe]
        %v1235 = vld [vmem:[%s228 + $0xa8] sm:$0xe]
        %v1236 = vld [vmem:[%s228 + $0xb4] sm:$0xe]
        %vm1269 = vcmask 1042432
        %vm1270 = vcmask 1046532
        %vm1271 = vmor %vm1269, %vm1270
        %v1272 = vrot.slane %v1221, 5
        %v1273 = vrot.slane %v1272, 4
        %v1274 = vrot.slane %v230, 5
        %v1275 = vsel %vm1271, %v1273, %v1274
        %v1276 = vrot.slane %v1274, 4
        %v1277 = vrot.slane %v262, 5
        %v1278 = vsel %vm1271, %v1276, %v1277
        %v1279 = vrot.slane %v1222, 5
        %v1280 = vrot.slane %v1279, 4
        %v1281 = vrot.slane %v232, 5
        %v1282 = vsel %vm1271, %v1280, %v1281
        %v1283 = vrot.slane %v1281, 4
        %v1284 = vrot.slane %v263, 5
        %v1285 = vsel %vm1271, %v1283, %v1284
        %v1286 = vrot.slane %v1223, 5
        %v1287 = vrot.slane %v1286, 4
        %v1288 = vrot.slane %v234, 5
        %v1289 = vsel %vm1271, %v1287, %v1288
        %v1290 = vrot.slane %v1288, 4
        %v1291 = vrot.slane %v264, 5
        %v1292 = vsel %vm1271, %v1290, %v1291
        %v1293 = vrot.slane %v1224, 5
        %v1294 = vrot.slane %v1293, 4
        %v1295 = vrot.slane %v236, 5
        %v1296 = vsel %vm1271, %v1294, %v1295
        %v1297 = vrot.slane %v1295, 4
        %v1298 = vrot.slane %v265, 5
        %v1299 = vsel %vm1271, %v1297, %v1298
        %v1300 = vrot.slane %v1225, 5
        %v1301 = vrot.slane %v1300, 4
        %v1302 = vrot.slane %v238, 5
        %v1303 = vsel %vm1271, %v1301, %v1302
        %v1304 = vrot.slane %v1302, 4
        %v1305 = vrot.slane %v266, 5
        %v1306 = vsel %vm1271, %v1304, %v1305
        %v1307 = vrot.slane %v1226, 5
        %v1308 = vrot.slane %v1307, 4
        %v1309 = vrot.slane %v240, 5
        %v1310 = vsel %vm1271, %v1308, %v1309
        %v1311 = vrot.slane %v1309, 4
        %v1312 = vrot.slane %v267, 5
        %v1313 = vsel %vm1271, %v1311, %v1312
        %v1314 = vrot.slane %v1227, 5
        %v1315 = vrot.slane %v1314, 4
        %v1316 = vrot.slane %v242, 5
        %v1317 = vsel %vm1271, %v1315, %v1316
        %v1318 = vrot.slane %v1316, 4
        %v1319 = vrot.slane %v268, 5
        %v1320 = vsel %vm1271, %v1318, %v1319
        %v1321 = vrot.slane %v1228, 5
        %v1322 = vrot.slane %v1321, 4
        %v1323 = vrot.slane %v244, 5
        %v1324 = vsel %vm1271, %v1322, %v1323
        %v1325 = vrot.slane %v1323, 4
        %v1326 = vrot.slane %v269, 5
        %v1327 = vsel %vm1271, %v1325, %v1326
        %v1328 = vrot.slane %v1229, 5
        %v1329 = vrot.slane %v1328, 4
        %v1330 = vrot.slane %v246, 5
        %v1331 = vsel %vm1271, %v1329, %v1330
        %v1332 = vrot.slane %v1330, 4
        %v1333 = vrot.slane %v270, 5
        %v1334 = vsel %vm1271, %v1332, %v1333
        %v1335 = vrot.slane %v1230, 5
        %v1336 = vrot.slane %v1335, 4
        %v1337 = vrot.slane %v248, 5
        %v1338 = vsel %vm1271, %v1336, %v1337
        %v1339 = vrot.slane %v1337, 4
        %v1340 = vrot.slane %v271, 5
        %v1341 = vsel %vm1271, %v1339, %v1340
        %v1342 = vrot.slane %v1231, 5
        %v1343 = vrot.slane %v1342, 4
        %v1344 = vrot.slane %v250, 5
        %v1345 = vsel %vm1271, %v1343, %v1344
        %v1346 = vrot.slane %v1344, 4
        %v1347 = vrot.slane %v272, 5
        %v1348 = vsel %vm1271, %v1346, %v1347
        %v1349 = vrot.slane %v1232, 5
        %v1350 = vrot.slane %v1349, 4
        %v1351 = vrot.slane %v252, 5
        %v1352 = vsel %vm1271, %v1350, %v1351
        %v1353 = vrot.slane %v1351, 4
        %v1354 = vrot.slane %v273, 5
        %v1355 = vsel %vm1271, %v1353, %v1354
        %v1356 = vrot.slane %v1233, 5
        %v1357 = vrot.slane %v1356, 4
        %v1358 = vrot.slane %v254, 5
        %v1359 = vsel %vm1271, %v1357, %v1358
        %v1360 = vrot.slane %v1358, 4
        %v1361 = vrot.slane %v274, 5
        %v1362 = vsel %vm1271, %v1360, %v1361
        %v1363 = vrot.slane %v1234, 5
        %v1364 = vrot.slane %v1363, 4
        %v1365 = vrot.slane %v256, 5
        %v1366 = vsel %vm1271, %v1364, %v1365
        %v1367 = vrot.slane %v1365, 4
        %v1368 = vrot.slane %v275, 5
        %v1369 = vsel %vm1271, %v1367, %v1368
        %v1370 = vrot.slane %v1235, 5
        %v1371 = vrot.slane %v1370, 4
        %v1372 = vrot.slane %v258, 5
        %v1373 = vsel %vm1271, %v1371, %v1372
        %v1374 = vrot.slane %v1372, 4
        %v1375 = vrot.slane %v276, 5
        %v1376 = vsel %vm1271, %v1374, %v1375
        %v1377 = vrot.slane %v1236, 5
        %v1378 = vrot.slane %v1377, 4
        %v1379 = vrot.slane %v260, 5
        %v1380 = vsel %vm1271, %v1378, %v1379
        %v1381 = vrot.slane %v1379, 4
        %v1382 = vrot.slane %v277, 5
        %v1383 = vsel %vm1271, %v1381, %v1382
        %s1384 = scalar_lea.vmem %s219, 4
        %v1385 = vld [vmem:[%s1384] sm:$0x3]
        %v1386 = vunpack.c.l.b16 %v1275
        %v1387 = vunpack.c.l.b16 %v1278
        %v1388 = vunpack.c.l.b16 %v1282
        %v1389 = vunpack.c.l.b16 %v1285
        %v1390 = vunpack.c.l.b16 %v1289
        %v1391 = vunpack.c.l.b16 %v1292
        %v1392 = vunpack.c.l.b16 %v1296
        %v1393 = vunpack.c.l.b16 %v1299
        %v1394 = vunpack.c.l.b16 %v1303
        %v1395 = vunpack.c.l.b16 %v1306
        %v1396 = vunpack.c.l.b16 %v1310
        %v1397 = vunpack.c.l.b16 %v1313
        %v1398 = vunpack.c.l.b16 %v1317
        %v1399 = vunpack.c.l.b16 %v1320
        %v1400 = vunpack.c.l.b16 %v1324
        %v1401 = vunpack.c.l.b16 %v1327
        %v1402 = vunpack.c.l.b16 %v1331
        %v1403 = vunpack.c.l.b16 %v1334
        %v1404 = vunpack.c.l.b16 %v1338
        %v1405 = vunpack.c.l.b16 %v1341
        %v1406 = vunpack.c.l.b16 %v1345
        %v1407 = vunpack.c.l.b16 %v1348
        %v1408 = vunpack.c.l.b16 %v1352
        %v1409 = vunpack.c.l.b16 %v1355
        %v1410 = vunpack.c.l.b16 %v1359
        %v1411 = vunpack.c.l.b16 %v1362
        %v1412 = vunpack.c.l.b16 %v1366
        %v1413 = vunpack.c.l.b16 %v1369
        %v1414 = vunpack.c.l.b16 %v1373
        %v1415 = vunpack.c.l.b16 %v1376
        %v1416 = vunpack.c.l.b16 %v1380
        %v1417 = vunpack.c.l.b16 %v1383
        %v1418 = vpack.c.b16 %v1387, %v1386
        %v1419 = vpack.c.b16 %v1389, %v1388
        %v1420 = vpack.c.b16 %v1391, %v1390
        %v1421 = vpack.c.b16 %v1393, %v1392
        %v1422 = vpack.c.b16 %v1395, %v1394
        %v1423 = vpack.c.b16 %v1397, %v1396
        %v1424 = vpack.c.b16 %v1399, %v1398
        %v1425 = vpack.c.b16 %v1401, %v1400
        %v1426 = vpack.c.b16 %v1403, %v1402
        %v1427 = vpack.c.b16 %v1405, %v1404
        %v1428 = vpack.c.b16 %v1407, %v1406
        %v1429 = vpack.c.b16 %v1409, %v1408
        %v1430 = vpack.c.b16 %v1411, %v1410
        %v1431 = vpack.c.b16 %v1413, %v1412
        %v1432 = vpack.c.b16 %v1415, %v1414
        %v1433 = vpack.c.b16 %v1417, %v1416
        %v1435 = vsel %vm715, %v1418, 0
        %v1438 = vsel %vm715, %v1419, 0
        %v1441 = vsel %vm715, %v1420, 0
        %v1444 = vsel %vm715, %v1421, 0
        %v1447 = vsel %vm715, %v1422, 0
        %v1450 = vsel %vm715, %v1423, 0
        %v1453 = vsel %vm715, %v1424, 0
        %v1456 = vsel %vm715, %v1425, 0
        %v1459 = vsel %vm715, %v1426, 0
        %v1462 = vsel %vm715, %v1427, 0
        %v1465 = vsel %vm715, %v1428, 0
        %v1468 = vsel %vm715, %v1429, 0
        %v1471 = vsel %vm715, %v1430, 0
        %v1474 = vsel %vm715, %v1431, 0
        %v1477 = vsel %vm715, %v1432, 0
        %v1480 = vsel %vm715, %v1433, 0
        %v1483 = vsel %vm764, %v1385, 0
        %1485 = vmatprep.subr.bf16.mxu0 0
        %1486 = vmatpush1.bf16.msra.mxu0 %v1483
        %1487 = vmatprep.subr.bf16.mxu0 0
        %1488 = vmatpush1.bf16.msra.mxu0 0
        %1489 = vmatprep.subr.bf16.mxu0 0
        %1490 = vmatpush1.bf16.msra.mxu0 0
        %1491 = vmatprep.subr.bf16.mxu0 0
        %1492 = vmatpush1.bf16.msra.mxu0 0
        %1493 = vmatprep.subr.bf16.mxu0 0
        %1494 = vmatpush1.bf16.msra.mxu0 0
        %1495 = vmatprep.subr.bf16.mxu0 0
        %1496 = vmatpush1.bf16.msra.mxu0 0
        %1497 = vmatprep.subr.bf16.mxu0 0
        %1498 = vmatpush1.bf16.msra.mxu0 0
        %1499 = vmatprep.subr.bf16.mxu0 0
        %1500 = vmatpush1.bf16.msra.mxu0 0
        %1501 = vmatprep.subr.bf16.mxu0 0
        %1502 = vmatpush1.bf16.msra.mxu0 0
        %1503 = vmatprep.subr.bf16.mxu0 0
        %1504 = vmatpush1.bf16.msra.mxu0 0
        %1505 = vmatprep.subr.bf16.mxu0 0
        %1506 = vmatpush1.bf16.msra.mxu0 0
        %1507 = vmatprep.subr.bf16.mxu0 0
        %1508 = vmatpush1.bf16.msra.mxu0 0
        %1509 = vmatprep.subr.bf16.mxu0 0
        %1510 = vmatpush1.bf16.msra.mxu0 0
        %1511 = vmatprep.subr.bf16.mxu0 0
        %1512 = vmatpush1.bf16.msra.mxu0 0
        %1513 = vmatprep.subr.bf16.mxu0 0
        %1514 = vmatpush1.bf16.msra.mxu0 0
        %1515 = vmatprep.subr.bf16.mxu0 0
        %1516 = vmatpush1.bf16.msra.mxu0 0
        %1517 = vmatprep.mubr.bf16.mxu0 0
        %1518 = vmatmul.mubr.bf16.gmra.mrb[0].mxu0 %v1435
        %v1519 = vpop.f32.mrb[0].mxu0
        %v1520 = vadd.f32 0.0, %v1519
        %v1521 = vpop.f32.mrb[0].mxu0
        %v1522 = vpop.f32.mrb[0].mxu0
        %v1523 = vadd.f32 0.0, %v1522
        %v1524 = vpop.f32.mrb[0].mxu0
        %1525 = vmatprep.mubr.bf16.mxu0 0
        %1526 = vmatmul.mubr.bf16.gmra.mrb[0].mxu0 %v1438
        %v1527 = vpop.f32.mrb[0].mxu0
        %v1528 = vadd.f32 0.0, %v1527
        %v1529 = vpop.f32.mrb[0].mxu0
        %v1530 = vpop.f32.mrb[0].mxu0
        %v1531 = vadd.f32 0.0, %v1530
        %v1532 = vpop.f32.mrb[0].mxu0
        %1533 = vmatprep.mubr.bf16.mxu0 0
        %1534 = vmatmul.mubr.bf16.gmra.mrb[0].mxu0 %v1441
        %v1535 = vpop.f32.mrb[0].mxu0
        %v1536 = vadd.f32 0.0, %v1535
        %v1537 = vpop.f32.mrb[0].mxu0
        %v1538 = vpop.f32.mrb[0].mxu0
        %v1539 = vadd.f32 0.0, %v1538
        %v1540 = vpop.f32.mrb[0].mxu0
        %1541 = vmatprep.mubr.bf16.mxu0 0
        %1542 = vmatmul.mubr.bf16.gmra.mrb[0].mxu0 %v1444
        %v1543 = vpop.f32.mrb[0].mxu0
        %v1544 = vadd.f32 0.0, %v1543
        %v1545 = vpop.f32.mrb[0].mxu0
        %v1546 = vpop.f32.mrb[0].mxu0
        %v1547 = vadd.f32 0.0, %v1546
        %v1548 = vpop.f32.mrb[0].mxu0
        %1549 = vmatprep.mubr.bf16.mxu0 0
        %1550 = vmatmul.mubr.bf16.gmra.mrb[0].mxu0 %v1447
        %v1551 = vpop.f32.mrb[0].mxu0
        %v1552 = vadd.f32 0.0, %v1551
        %v1553 = vpop.f32.mrb[0].mxu0
        %v1554 = vpop.f32.mrb[0].mxu0
        %v1555 = vadd.f32 0.0, %v1554
        %v1556 = vpop.f32.mrb[0].mxu0
        %1557 = vmatprep.mubr.bf16.mxu0 0
        %1558 = vmatmul.mubr.bf16.gmra.mrb[0].mxu0 %v1450
        %v1559 = vpop.f32.mrb[0].mxu0
        %v1560 = vadd.f32 0.0, %v1559
        %v1561 = vpop.f32.mrb[0].mxu0
        %v1562 = vpop.f32.mrb[0].mxu0
        %v1563 = vadd.f32 0.0, %v1562
        %v1564 = vpop.f32.mrb[0].mxu0
        %1565 = vmatprep.mubr.bf16.mxu0 0
        %1566 = vmatmul.mubr.bf16.gmra.mrb[0].mxu0 %v1453
        %v1567 = vpop.f32.mrb[0].mxu0
        %v1568 = vadd.f32 0.0, %v1567
        %v1569 = vpop.f32.mrb[0].mxu0
        %v1570 = vpop.f32.mrb[0].mxu0
        %v1571 = vadd.f32 0.0, %v1570
        %v1572 = vpop.f32.mrb[0].mxu0
        %1573 = vmatprep.mubr.bf16.mxu0 0
        %1574 = vmatmul.mubr.bf16.gmra.mrb[0].mxu0 %v1456
        %v1575 = vpop.f32.mrb[0].mxu0
        %v1576 = vadd.f32 0.0, %v1575
        %v1577 = vpop.f32.mrb[0].mxu0
        %v1578 = vpop.f32.mrb[0].mxu0
        %v1579 = vadd.f32 0.0, %v1578
        %v1580 = vpop.f32.mrb[0].mxu0
        %1581 = vmatprep.mubr.bf16.mxu0 0
        %1582 = vmatmul.mubr.bf16.gmra.mrb[0].mxu0 %v1459
        %v1583 = vpop.f32.mrb[0].mxu0
        %v1584 = vadd.f32 0.0, %v1583
        %v1585 = vpop.f32.mrb[0].mxu0
        %v1586 = vpop.f32.mrb[0].mxu0
        %v1587 = vadd.f32 0.0, %v1586
        %v1588 = vpop.f32.mrb[0].mxu0
        %1589 = vmatprep.mubr.bf16.mxu0 0
        %1590 = vmatmul.mubr.bf16.gmra.mrb[0].mxu0 %v1462
        %v1591 = vpop.f32.mrb[0].mxu0
        %v1592 = vadd.f32 0.0, %v1591
        %v1593 = vpop.f32.mrb[0].mxu0
        %v1594 = vpop.f32.mrb[0].mxu0
        %v1595 = vadd.f32 0.0, %v1594
        %v1596 = vpop.f32.mrb[0].mxu0
        %1597 = vmatprep.mubr.bf16.mxu0 0
        %1598 = vmatmul.mubr.bf16.gmra.mrb[0].mxu0 %v1465
        %v1599 = vpop.f32.mrb[0].mxu0
        %v1600 = vadd.f32 0.0, %v1599
        %v1601 = vpop.f32.mrb[0].mxu0
        %v1602 = vpop.f32.mrb[0].mxu0
        %v1603 = vadd.f32 0.0, %v1602
        %v1604 = vpop.f32.mrb[0].mxu0
        %1605 = vmatprep.mubr.bf16.mxu0 0
        %1606 = vmatmul.mubr.bf16.gmra.mrb[0].mxu0 %v1468
        %v1607 = vpop.f32.mrb[0].mxu0
        %v1608 = vadd.f32 0.0, %v1607
        %v1609 = vpop.f32.mrb[0].mxu0
        %v1610 = vpop.f32.mrb[0].mxu0
        %v1611 = vadd.f32 0.0, %v1610
        %v1612 = vpop.f32.mrb[0].mxu0
        %1613 = vmatprep.mubr.bf16.mxu0 0
        %1614 = vmatmul.mubr.bf16.gmra.mrb[0].mxu0 %v1471
        %v1615 = vpop.f32.mrb[0].mxu0
        %v1616 = vadd.f32 0.0, %v1615
        %v1617 = vpop.f32.mrb[0].mxu0
        %v1618 = vpop.f32.mrb[0].mxu0
        %v1619 = vadd.f32 0.0, %v1618
        %v1620 = vpop.f32.mrb[0].mxu0
        %1621 = vmatprep.mubr.bf16.mxu0 0
        %1622 = vmatmul.mubr.bf16.gmra.mrb[0].mxu0 %v1474
        %v1623 = vpop.f32.mrb[0].mxu0
        %v1624 = vadd.f32 0.0, %v1623
        %v1625 = vpop.f32.mrb[0].mxu0
        %v1626 = vpop.f32.mrb[0].mxu0
        %v1627 = vadd.f32 0.0, %v1626
        %v1628 = vpop.f32.mrb[0].mxu0
        %1629 = vmatprep.mubr.bf16.mxu0 0
        %1630 = vmatmul.mubr.bf16.gmra.mrb[0].mxu0 %v1477
        %v1631 = vpop.f32.mrb[0].mxu0
        %v1632 = vadd.f32 0.0, %v1631
        %v1633 = vpop.f32.mrb[0].mxu0
        %v1634 = vpop.f32.mrb[0].mxu0
        %v1635 = vadd.f32 0.0, %v1634
        %v1636 = vpop.f32.mrb[0].mxu0
        %1637 = vmatprep.mubr.bf16.mxu0 0
        %1638 = vmatmul.mubr.bf16.gmra.mrb[0].mxu0 %v1480
        %v1639 = vpop.f32.mrb[0].mxu0
        %v1640 = vadd.f32 0.0, %v1639
        %v1641 = vpop.f32.mrb[0].mxu0
        %v1642 = vpop.f32.mrb[0].mxu0
        %v1643 = vadd.f32 0.0, %v1642
        %v1644 = vpop.f32.mrb[0].mxu0
        %1645 = vdwg.mxu0
        %v1646 = vadd.f32 %v1095, %v1520
        %v1647 = vadd.f32 %v1098, %v1523
        %v1648 = vadd.f32 %v1103, %v1528
        %v1649 = vadd.f32 %v1106, %v1531
        %v1650 = vadd.f32 %v1111, %v1536
        %v1651 = vadd.f32 %v1114, %v1539
        %v1652 = vadd.f32 %v1119, %v1544
        %v1653 = vadd.f32 %v1122, %v1547
        %v1654 = vadd.f32 %v1127, %v1552
        %v1655 = vadd.f32 %v1130, %v1555
        %v1656 = vadd.f32 %v1135, %v1560
        %v1657 = vadd.f32 %v1138, %v1563
        %v1658 = vadd.f32 %v1143, %v1568
        %v1659 = vadd.f32 %v1146, %v1571
        %v1660 = vadd.f32 %v1151, %v1576
        %v1661 = vadd.f32 %v1154, %v1579
        %v1662 = vadd.f32 %v1159, %v1584
        %v1663 = vadd.f32 %v1162, %v1587
        %v1664 = vadd.f32 %v1167, %v1592
        %v1665 = vadd.f32 %v1170, %v1595
        %v1666 = vadd.f32 %v1175, %v1600
        %v1667 = vadd.f32 %v1178, %v1603
        %v1668 = vadd.f32 %v1183, %v1608
        %v1669 = vadd.f32 %v1186, %v1611
        %v1670 = vadd.f32 %v1191, %v1616
        %v1671 = vadd.f32 %v1194, %v1619
        %v1672 = vadd.f32 %v1199, %v1624
        %v1673 = vadd.f32 %v1202, %v1627
        %v1674 = vadd.f32 %v1207, %v1632
        %v1675 = vadd.f32 %v1210, %v1635
        %v1676 = vadd.f32 %v1215, %v1640
        %v1677 = vadd.f32 %v1218, %v1643
        %s1678 = sadd.s32 %s225, 1
        %s1679 = smul.u32 %s1678, 3
        %s1680 = smul.addr %s1679, 4
        %s1681 = scalar_lea.vmem %s215, %s1680
        %v1682 = vld [vmem:[%s1681] sm:$0xf]
        %v1683 = vld [vmem:[%s1681 + $0x4] sm:$0xf]
        %v1684 = vld [vmem:[%s1681 + $0xc] sm:$0xf]
        %v1685 = vld [vmem:[%s1681 + $0x10] sm:$0xf]
        %v1686 = vld [vmem:[%s1681 + $0x18] sm:$0xf]
        %v1687 = vld [vmem:[%s1681 + $0x1c] sm:$0xf]
        %v1688 = vld [vmem:[%s1681 + $0x24] sm:$0xf]
        %v1689 = vld [vmem:[%s1681 + $0x28] sm:$0xf]
        %v1690 = vld [vmem:[%s1681 + $0x30] sm:$0xf]
        %v1691 = vld [vmem:[%s1681 + $0x34] sm:$0xf]
        %v1692 = vld [vmem:[%s1681 + $0x3c] sm:$0xf]
        %v1693 = vld [vmem:[%s1681 + $0x40] sm:$0xf]
        %v1694 = vld [vmem:[%s1681 + $0x48] sm:$0xf]
        %v1695 = vld [vmem:[%s1681 + $0x4c] sm:$0xf]
        %v1696 = vld [vmem:[%s1681 + $0x54] sm:$0xf]
        %v1697 = vld [vmem:[%s1681 + $0x58] sm:$0xf]
        %v1698 = vld [vmem:[%s1681 + $0x60] sm:$0xf]
        %v1699 = vld [vmem:[%s1681 + $0x64] sm:$0xf]
        %v1700 = vld [vmem:[%s1681 + $0x6c] sm:$0xf]
        %v1701 = vld [vmem:[%s1681 + $0x70] sm:$0xf]
        %v1702 = vld [vmem:[%s1681 + $0x78] sm:$0xf]
        %v1703 = vld [vmem:[%s1681 + $0x7c] sm:$0xf]
        %v1704 = vld [vmem:[%s1681 + $0x84] sm:$0xf]
        %v1705 = vld [vmem:[%s1681 + $0x88] sm:$0xf]
        %v1706 = vld [vmem:[%s1681 + $0x90] sm:$0xf]
        %v1707 = vld [vmem:[%s1681 + $0x94] sm:$0xf]
        %v1708 = vld [vmem:[%s1681 + $0x9c] sm:$0xf]
        %v1709 = vld [vmem:[%s1681 + $0xa0] sm:$0xf]
        %v1710 = vld [vmem:[%s1681 + $0xa8] sm:$0xf]
        %v1711 = vld [vmem:[%s1681 + $0xac] sm:$0xf]
        %v1712 = vld [vmem:[%s1681 + $0xb4] sm:$0xf]
        %v1713 = vld [vmem:[%s1681 + $0xb8] sm:$0xf]
        %s1714 = scalar_lea.vmem %s219, 6
        %v1715 = vld [vmem:[%s1714] sm:$0x3]
        %v1748 = vunpack.c.l.b16 %v1682
        %v1749 = vunpack.c.l.b16 %v1683
        %v1750 = vunpack.c.l.b16 %v1684
        %v1751 = vunpack.c.l.b16 %v1685
        %v1752 = vunpack.c.l.b16 %v1686
        %v1753 = vunpack.c.l.b16 %v1687
        %v1754 = vunpack.c.l.b16 %v1688
        %v1755 = vunpack.c.l.b16 %v1689
        %v1756 = vunpack.c.l.b16 %v1690
        %v1757 = vunpack.c.l.b16 %v1691
        %v1758 = vunpack.c.l.b16 %v1692
        %v1759 = vunpack.c.l.b16 %v1693
        %v1760 = vunpack.c.l.b16 %v1694
        %v1761 = vunpack.c.l.b16 %v1695
        %v1762 = vunpack.c.l.b16 %v1696
        %v1763 = vunpack.c.l.b16 %v1697
        %v1764 = vunpack.c.l.b16 %v1698
        %v1765 = vunpack.c.l.b16 %v1699
        %v1766 = vunpack.c.l.b16 %v1700
        %v1767 = vunpack.c.l.b16 %v1701
        %v1768 = vunpack.c.l.b16 %v1702
        %v1769 = vunpack.c.l.b16 %v1703
        %v1770 = vunpack.c.l.b16 %v1704
        %v1771 = vunpack.c.l.b16 %v1705
        %v1772 = vunpack.c.l.b16 %v1706
        %v1773 = vunpack.c.l.b16 %v1707
        %v1774 = vunpack.c.l.b16 %v1708
        %v1775 = vunpack.c.l.b16 %v1709
        %v1776 = vunpack.c.l.b16 %v1710
        %v1777 = vunpack.c.l.b16 %v1711
        %v1778 = vunpack.c.l.b16 %v1712
        %v1779 = vunpack.c.l.b16 %v1713
        %v1780 = vpack.c.b16 %v1749, %v1748
        %v1781 = vpack.c.b16 %v1751, %v1750
        %v1782 = vpack.c.b16 %v1753, %v1752
        %v1783 = vpack.c.b16 %v1755, %v1754
        %v1784 = vpack.c.b16 %v1757, %v1756
        %v1785 = vpack.c.b16 %v1759, %v1758
        %v1786 = vpack.c.b16 %v1761, %v1760
        %v1787 = vpack.c.b16 %v1763, %v1762
        %v1788 = vpack.c.b16 %v1765, %v1764
        %v1789 = vpack.c.b16 %v1767, %v1766
        %v1790 = vpack.c.b16 %v1769, %v1768
        %v1791 = vpack.c.b16 %v1771, %v1770
        %v1792 = vpack.c.b16 %v1773, %v1772
        %v1793 = vpack.c.b16 %v1775, %v1774
        %v1794 = vpack.c.b16 %v1777, %v1776
        %v1795 = vpack.c.b16 %v1779, %v1778
        %v1797 = vsel %vm715, %v1780, 0
        %v1800 = vsel %vm715, %v1781, 0
        %v1803 = vsel %vm715, %v1782, 0
        %v1806 = vsel %vm715, %v1783, 0
        %v1809 = vsel %vm715, %v1784, 0
        %v1812 = vsel %vm715, %v1785, 0
        %v1815 = vsel %vm715, %v1786, 0
        %v1818 = vsel %vm715, %v1787, 0
        %v1821 = vsel %vm715, %v1788, 0
        %v1824 = vsel %vm715, %v1789, 0
        %v1827 = vsel %vm715, %v1790, 0
        %v1830 = vsel %vm715, %v1791, 0
        %v1833 = vsel %vm715, %v1792, 0
        %v1836 = vsel %vm715, %v1793, 0
        %v1839 = vsel %vm715, %v1794, 0
        %v1842 = vsel %vm715, %v1795, 0
        %v1845 = vsel %vm764, %v1715, 0
        %1847 = vmatprep.subr.bf16.mxu0 0
        %1848 = vmatpush1.bf16.msra.mxu0 %v1845
        %1849 = vmatprep.subr.bf16.mxu0 0
        %1850 = vmatpush1.bf16.msra.mxu0 0
        %1851 = vmatprep.subr.bf16.mxu0 0
        %1852 = vmatpush1.bf16.msra.mxu0 0
        %1853 = vmatprep.subr.bf16.mxu0 0
        %1854 = vmatpush1.bf16.msra.mxu0 0
        %1855 = vmatprep.subr.bf16.mxu0 0
        %1856 = vmatpush1.bf16.msra.mxu0 0
        %1857 = vmatprep.subr.bf16.mxu0 0
        %1858 = vmatpush1.bf16.msra.mxu0 0
        %1859 = vmatprep.subr.bf16.mxu0 0
        %1860 = vmatpush1.bf16.msra.mxu0 0
        %1861 = vmatprep.subr.bf16.mxu0 0
        %1862 = vmatpush1.bf16.msra.mxu0 0
        %1863 = vmatprep.subr.bf16.mxu0 0
        %1864 = vmatpush1.bf16.msra.mxu0 0
        %1865 = vmatprep.subr.bf16.mxu0 0
        %1866 = vmatpush1.bf16.msra.mxu0 0
        %1867 = vmatprep.subr.bf16.mxu0 0
        %1868 = vmatpush1.bf16.msra.mxu0 0
        %1869 = vmatprep.subr.bf16.mxu0 0
        %1870 = vmatpush1.bf16.msra.mxu0 0
        %1871 = vmatprep.subr.bf16.mxu0 0
        %1872 = vmatpush1.bf16.msra.mxu0 0
        %1873 = vmatprep.subr.bf16.mxu0 0
        %1874 = vmatpush1.bf16.msra.mxu0 0
        %1875 = vmatprep.subr.bf16.mxu0 0
        %1876 = vmatpush1.bf16.msra.mxu0 0
        %1877 = vmatprep.subr.bf16.mxu0 0
        %1878 = vmatpush1.bf16.msra.mxu0 0
        %1879 = vmatprep.mubr.bf16.mxu0 0
        %1880 = vmatmul.mubr.bf16.gmra.mrb[0].mxu0 %v1797
        %v1881 = vpop.f32.mrb[0].mxu0
        %v1882 = vadd.f32 0.0, %v1881
        %v1883 = vpop.f32.mrb[0].mxu0
        %v1884 = vpop.f32.mrb[0].mxu0
        %v1885 = vadd.f32 0.0, %v1884
        %v1886 = vpop.f32.mrb[0].mxu0
        %1887 = vmatprep.mubr.bf16.mxu0 0
        %1888 = vmatmul.mubr.bf16.gmra.mrb[0].mxu0 %v1800
        %v1889 = vpop.f32.mrb[0].mxu0
        %v1890 = vadd.f32 0.0, %v1889
        %v1891 = vpop.f32.mrb[0].mxu0
        %v1892 = vpop.f32.mrb[0].mxu0
        %v1893 = vadd.f32 0.0, %v1892
        %v1894 = vpop.f32.mrb[0].mxu0
        %1895 = vmatprep.mubr.bf16.mxu0 0
        %1896 = vmatmul.mubr.bf16.gmra.mrb[0].mxu0 %v1803
        %v1897 = vpop.f32.mrb[0].mxu0
        %v1898 = vadd.f32 0.0, %v1897
        %v1899 = vpop.f32.mrb[0].mxu0
        %v1900 = vpop.f32.mrb[0].mxu0
        %v1901 = vadd.f32 0.0, %v1900
        %v1902 = vpop.f32.mrb[0].mxu0
        %1903 = vmatprep.mubr.bf16.mxu0 0
        %1904 = vmatmul.mubr.bf16.gmra.mrb[0].mxu0 %v1806
        %v1905 = vpop.f32.mrb[0].mxu0
        %v1906 = vadd.f32 0.0, %v1905
        %v1907 = vpop.f32.mrb[0].mxu0
        %v1908 = vpop.f32.mrb[0].mxu0
        %v1909 = vadd.f32 0.0, %v1908
        %v1910 = vpop.f32.mrb[0].mxu0
        %1911 = vmatprep.mubr.bf16.mxu0 0
        %1912 = vmatmul.mubr.bf16.gmra.mrb[0].mxu0 %v1809
        %v1913 = vpop.f32.mrb[0].mxu0
        %v1914 = vadd.f32 0.0, %v1913
        %v1915 = vpop.f32.mrb[0].mxu0
        %v1916 = vpop.f32.mrb[0].mxu0
        %v1917 = vadd.f32 0.0, %v1916
        %v1918 = vpop.f32.mrb[0].mxu0
        %1919 = vmatprep.mubr.bf16.mxu0 0
        %1920 = vmatmul.mubr.bf16.gmra.mrb[0].mxu0 %v1812
        %v1921 = vpop.f32.mrb[0].mxu0
        %v1922 = vadd.f32 0.0, %v1921
        %v1923 = vpop.f32.mrb[0].mxu0
        %v1924 = vpop.f32.mrb[0].mxu0
        %v1925 = vadd.f32 0.0, %v1924
        %v1926 = vpop.f32.mrb[0].mxu0
        %1927 = vmatprep.mubr.bf16.mxu0 0
        %1928 = vmatmul.mubr.bf16.gmra.mrb[0].mxu0 %v1815
        %v1929 = vpop.f32.mrb[0].mxu0
        %v1930 = vadd.f32 0.0, %v1929
        %v1931 = vpop.f32.mrb[0].mxu0
        %v1932 = vpop.f32.mrb[0].mxu0
        %v1933 = vadd.f32 0.0, %v1932
        %v1934 = vpop.f32.mrb[0].mxu0
        %1935 = vmatprep.mubr.bf16.mxu0 0
        %1936 = vmatmul.mubr.bf16.gmra.mrb[0].mxu0 %v1818
        %v1937 = vpop.f32.mrb[0].mxu0
        %v1938 = vadd.f32 0.0, %v1937
        %v1939 = vpop.f32.mrb[0].mxu0
        %v1940 = vpop.f32.mrb[0].mxu0
        %v1941 = vadd.f32 0.0, %v1940
        %v1942 = vpop.f32.mrb[0].mxu0
        %1943 = vmatprep.mubr.bf16.mxu0 0
        %1944 = vmatmul.mubr.bf16.gmra.mrb[0].mxu0 %v1821
        %v1945 = vpop.f32.mrb[0].mxu0
        %v1946 = vadd.f32 0.0, %v1945
        %v1947 = vpop.f32.mrb[0].mxu0
        %v1948 = vpop.f32.mrb[0].mxu0
        %v1949 = vadd.f32 0.0, %v1948
        %v1950 = vpop.f32.mrb[0].mxu0
        %1951 = vmatprep.mubr.bf16.mxu0 0
        %1952 = vmatmul.mubr.bf16.gmra.mrb[0].mxu0 %v1824
        %v1953 = vpop.f32.mrb[0].mxu0
        %v1954 = vadd.f32 0.0, %v1953
        %v1955 = vpop.f32.mrb[0].mxu0
        %v1956 = vpop.f32.mrb[0].mxu0
        %v1957 = vadd.f32 0.0, %v1956
        %v1958 = vpop.f32.mrb[0].mxu0
        %1959 = vmatprep.mubr.bf16.mxu0 0
        %1960 = vmatmul.mubr.bf16.gmra.mrb[0].mxu0 %v1827
        %v1961 = vpop.f32.mrb[0].mxu0
        %v1962 = vadd.f32 0.0, %v1961
        %v1963 = vpop.f32.mrb[0].mxu0
        %v1964 = vpop.f32.mrb[0].mxu0
        %v1965 = vadd.f32 0.0, %v1964
        %v1966 = vpop.f32.mrb[0].mxu0
        %1967 = vmatprep.mubr.bf16.mxu0 0
        %1968 = vmatmul.mubr.bf16.gmra.mrb[0].mxu0 %v1830
        %v1969 = vpop.f32.mrb[0].mxu0
        %v1970 = vadd.f32 0.0, %v1969
        %v1971 = vpop.f32.mrb[0].mxu0
        %v1972 = vpop.f32.mrb[0].mxu0
        %v1973 = vadd.f32 0.0, %v1972
        %v1974 = vpop.f32.mrb[0].mxu0
        %1975 = vmatprep.mubr.bf16.mxu0 0
        %1976 = vmatmul.mubr.bf16.gmra.mrb[0].mxu0 %v1833
        %v1977 = vpop.f32.mrb[0].mxu0
        %v1978 = vadd.f32 0.0, %v1977
        %v1979 = vpop.f32.mrb[0].mxu0
        %v1980 = vpop.f32.mrb[0].mxu0
        %v1981 = vadd.f32 0.0, %v1980
        %v1982 = vpop.f32.mrb[0].mxu0
        %1983 = vmatprep.mubr.bf16.mxu0 0
        %1984 = vmatmul.mubr.bf16.gmra.mrb[0].mxu0 %v1836
        %v1985 = vpop.f32.mrb[0].mxu0
        %v1986 = vadd.f32 0.0, %v1985
        %v1987 = vpop.f32.mrb[0].mxu0
        %v1988 = vpop.f32.mrb[0].mxu0
        %v1989 = vadd.f32 0.0, %v1988
        %v1990 = vpop.f32.mrb[0].mxu0
        %1991 = vmatprep.mubr.bf16.mxu0 0
        %1992 = vmatmul.mubr.bf16.gmra.mrb[0].mxu0 %v1839
        %v1993 = vpop.f32.mrb[0].mxu0
        %v1994 = vadd.f32 0.0, %v1993
        %v1995 = vpop.f32.mrb[0].mxu0
        %v1996 = vpop.f32.mrb[0].mxu0
        %v1997 = vadd.f32 0.0, %v1996
        %v1998 = vpop.f32.mrb[0].mxu0
        %1999 = vmatprep.mubr.bf16.mxu0 0
        %2000 = vmatmul.mubr.bf16.gmra.mrb[0].mxu0 %v1842
        %v2001 = vpop.f32.mrb[0].mxu0
        %v2002 = vadd.f32 0.0, %v2001
        %v2003 = vpop.f32.mrb[0].mxu0
        %v2004 = vpop.f32.mrb[0].mxu0
        %v2005 = vadd.f32 0.0, %v2004
        %v2006 = vpop.f32.mrb[0].mxu0
        %2007 = vdwg.mxu0
        %v2008 = vadd.f32 %v1646, %v1882
        %v2009 = vadd.f32 %v1647, %v1885
        %v2010 = vadd.f32 %v1648, %v1890
        %v2011 = vadd.f32 %v1649, %v1893
        %v2012 = vadd.f32 %v1650, %v1898
        %v2013 = vadd.f32 %v1651, %v1901
        %v2014 = vadd.f32 %v1652, %v1906
        %v2015 = vadd.f32 %v1653, %v1909
        %v2016 = vadd.f32 %v1654, %v1914
        %v2017 = vadd.f32 %v1655, %v1917
        %v2018 = vadd.f32 %v1656, %v1922
        %v2019 = vadd.f32 %v1657, %v1925
        %v2020 = vadd.f32 %v1658, %v1930
        %v2021 = vadd.f32 %v1659, %v1933
        %v2022 = vadd.f32 %v1660, %v1938
        %v2023 = vadd.f32 %v1661, %v1941
        %v2024 = vadd.f32 %v1662, %v1946
        %v2025 = vadd.f32 %v1663, %v1949
        %v2026 = vadd.f32 %v1664, %v1954
        %v2027 = vadd.f32 %v1665, %v1957
        %v2028 = vadd.f32 %v1666, %v1962
        %v2029 = vadd.f32 %v1667, %v1965
        %v2030 = vadd.f32 %v1668, %v1970
        %v2031 = vadd.f32 %v1669, %v1973
        %v2032 = vadd.f32 %v1670, %v1978
        %v2033 = vadd.f32 %v1671, %v1981
        %v2034 = vadd.f32 %v1672, %v1986
        %v2035 = vadd.f32 %v1673, %v1989
        %v2036 = vadd.f32 %v1674, %v1994
        %v2037 = vadd.f32 %v1675, %v1997
        %v2038 = vadd.f32 %v1676, %v2002
        %v2039 = vadd.f32 %v1677, %v2005
        %v2040 = vld [vmem:[%s1681] sm:$0xf]
        %v2041 = vld [vmem:[%s1681 + $0x4] sm:$0xf]
        %v2042 = vld [vmem:[%s1681 + $0x8] sm:$0x1]
        %v2043 = vld [vmem:[%s1681 + $0xc] sm:$0xf]
        %v2044 = vld [vmem:[%s1681 + $0x10] sm:$0xf]
        %v2045 = vld [vmem:[%s1681 + $0x14] sm:$0x1]
        %v2046 = vld [vmem:[%s1681 + $0x18] sm:$0xf]
        %v2047 = vld [vmem:[%s1681 + $0x1c] sm:$0xf]
        %v2048 = vld [vmem:[%s1681 + $0x20] sm:$0x1]
        %v2049 = vld [vmem:[%s1681 + $0x24] sm:$0xf]
        %v2050 = vld [vmem:[%s1681 + $0x28] sm:$0xf]
        %v2051 = vld [vmem:[%s1681 + $0x2c] sm:$0x1]
        %v2052 = vld [vmem:[%s1681 + $0x30] sm:$0xf]
        %v2053 = vld [vmem:[%s1681 + $0x34] sm:$0xf]
        %v2054 = vld [vmem:[%s1681 + $0x38] sm:$0x1]
        %v2055 = vld [vmem:[%s1681 + $0x3c] sm:$0xf]
        %v2056 = vld [vmem:[%s1681 + $0x40] sm:$0xf]
        %v2057 = vld [vmem:[%s1681 + $0x44] sm:$0x1]
        %v2058 = vld [vmem:[%s1681 + $0x48] sm:$0xf]
        %v2059 = vld [vmem:[%s1681 + $0x4c] sm:$0xf]
        %v2060 = vld [vmem:[%s1681 + $0x50] sm:$0x1]
        %v2061 = vld [vmem:[%s1681 + $0x54] sm:$0xf]
        %v2062 = vld [vmem:[%s1681 + $0x58] sm:$0xf]
        %v2063 = vld [vmem:[%s1681 + $0x5c] sm:$0x1]
        %v2064 = vld [vmem:[%s1681 + $0x60] sm:$0xf]
        %v2065 = vld [vmem:[%s1681 + $0x64] sm:$0xf]
        %v2066 = vld [vmem:[%s1681 + $0x68] sm:$0x1]
        %v2067 = vld [vmem:[%s1681 + $0x6c] sm:$0xf]
        %v2068 = vld [vmem:[%s1681 + $0x70] sm:$0xf]
        %v2069 = vld [vmem:[%s1681 + $0x74] sm:$0x1]
        %v2070 = vld [vmem:[%s1681 + $0x78] sm:$0xf]
        %v2071 = vld [vmem:[%s1681 + $0x7c] sm:$0xf]
        %v2072 = vld [vmem:[%s1681 + $0x80] sm:$0x1]
        %v2073 = vld [vmem:[%s1681 + $0x84] sm:$0xf]
        %v2074 = vld [vmem:[%s1681 + $0x88] sm:$0xf]
        %v2075 = vld [vmem:[%s1681 + $0x8c] sm:$0x1]
        %v2076 = vld [vmem:[%s1681 + $0x90] sm:$0xf]
        %v2077 = vld [vmem:[%s1681 + $0x94] sm:$0xf]
        %v2078 = vld [vmem:[%s1681 + $0x98] sm:$0x1]
        %v2079 = vld [vmem:[%s1681 + $0x9c] sm:$0xf]
        %v2080 = vld [vmem:[%s1681 + $0xa0] sm:$0xf]
        %v2081 = vld [vmem:[%s1681 + $0xa4] sm:$0x1]
        %v2082 = vld [vmem:[%s1681 + $0xa8] sm:$0xf]
        %v2083 = vld [vmem:[%s1681 + $0xac] sm:$0xf]
        %v2084 = vld [vmem:[%s1681 + $0xb0] sm:$0x1]
        %v2085 = vld [vmem:[%s1681 + $0xb4] sm:$0xf]
        %v2086 = vld [vmem:[%s1681 + $0xb8] sm:$0xf]
        %v2087 = vld [vmem:[%s1681 + $0xbc] sm:$0x1]
        %v2089 = vshrl.u32 %v2040, 16
        %v2091 = vrot.slane %v2089, 4
        %v2092 = vshll.u32 %v2040, 16
        %v2094 = vrot.slane %v2092, 5
        %v2095 = vor.u32 %v2091, %v2094
        %v2096 = vrot.slane %v2095, 4
        %v2098 = vshll.u32 %v2041, 16
        %v2100 = vrot.slane %v2098, 5
        %v2101 = vsel %vm280, %v2096, %v2100
        %v2102 = vshrl.u32 %v2041, 16
        %v2104 = vrot.slane %v2102, 4
        %v2105 = vor.u32 %v2104, %v2100
        %v2106 = vrot.slane %v2105, 4
        %v2108 = vshll.u32 %v2042, 16
        %v2110 = vrot.slane %v2108, 5
        %v2111 = vsel %vm280, %v2106, %v2110
        %v2113 = vshrl.u32 %v2043, 16
        %v2115 = vrot.slane %v2113, 4
        %v2116 = vshll.u32 %v2043, 16
        %v2118 = vrot.slane %v2116, 5
        %v2119 = vor.u32 %v2115, %v2118
        %v2120 = vrot.slane %v2119, 4
        %v2122 = vshll.u32 %v2044, 16
        %v2124 = vrot.slane %v2122, 5
        %v2125 = vsel %vm280, %v2120, %v2124
        %v2126 = vshrl.u32 %v2044, 16
        %v2128 = vrot.slane %v2126, 4
        %v2129 = vor.u32 %v2128, %v2124
        %v2130 = vrot.slane %v2129, 4
        %v2132 = vshll.u32 %v2045, 16
        %v2134 = vrot.slane %v2132, 5
        %v2135 = vsel %vm280, %v2130, %v2134
        %v2137 = vshrl.u32 %v2046, 16
        %v2139 = vrot.slane %v2137, 4
        %v2140 = vshll.u32 %v2046, 16
        %v2142 = vrot.slane %v2140, 5
        %v2143 = vor.u32 %v2139, %v2142
        %v2144 = vrot.slane %v2143, 4
        %v2146 = vshll.u32 %v2047, 16
        %v2148 = vrot.slane %v2146, 5
        %v2149 = vsel %vm280, %v2144, %v2148
        %v2150 = vshrl.u32 %v2047, 16
        %v2152 = vrot.slane %v2150, 4
        %v2153 = vor.u32 %v2152, %v2148
        %v2154 = vrot.slane %v2153, 4
        %v2156 = vshll.u32 %v2048, 16
        %v2158 = vrot.slane %v2156, 5
        %v2159 = vsel %vm280, %v2154, %v2158
        %v2161 = vshrl.u32 %v2049, 16
        %v2163 = vrot.slane %v2161, 4
        %v2164 = vshll.u32 %v2049, 16
        %v2166 = vrot.slane %v2164, 5
        %v2167 = vor.u32 %v2163, %v2166
        %v2168 = vrot.slane %v2167, 4
        %v2170 = vshll.u32 %v2050, 16
        %v2172 = vrot.slane %v2170, 5
        %v2173 = vsel %vm280, %v2168, %v2172
        %v2174 = vshrl.u32 %v2050, 16
        %v2176 = vrot.slane %v2174, 4
        %v2177 = vor.u32 %v2176, %v2172
        %v2178 = vrot.slane %v2177, 4
        %v2180 = vshll.u32 %v2051, 16
        %v2182 = vrot.slane %v2180, 5
        %v2183 = vsel %vm280, %v2178, %v2182
        %v2185 = vshrl.u32 %v2052, 16
        %v2187 = vrot.slane %v2185, 4
        %v2188 = vshll.u32 %v2052, 16
        %v2190 = vrot.slane %v2188, 5
        %v2191 = vor.u32 %v2187, %v2190
        %v2192 = vrot.slane %v2191, 4
        %v2194 = vshll.u32 %v2053, 16
        %v2196 = vrot.slane %v2194, 5
        %v2197 = vsel %vm280, %v2192, %v2196
        %v2198 = vshrl.u32 %v2053, 16
        %v2200 = vrot.slane %v2198, 4
        %v2201 = vor.u32 %v2200, %v2196
        %v2202 = vrot.slane %v2201, 4
        %v2204 = vshll.u32 %v2054, 16
        %v2206 = vrot.slane %v2204, 5
        %v2207 = vsel %vm280, %v2202, %v2206
        %v2209 = vshrl.u32 %v2055, 16
        %v2211 = vrot.slane %v2209, 4
        %v2212 = vshll.u32 %v2055, 16
        %v2214 = vrot.slane %v2212, 5
        %v2215 = vor.u32 %v2211, %v2214
        %v2216 = vrot.slane %v2215, 4
        %v2218 = vshll.u32 %v2056, 16
        %v2220 = vrot.slane %v2218, 5
        %v2221 = vsel %vm280, %v2216, %v2220
        %v2222 = vshrl.u32 %v2056, 16
        %v2224 = vrot.slane %v2222, 4
        %v2225 = vor.u32 %v2224, %v2220
        %v2226 = vrot.slane %v2225, 4
        %v2228 = vshll.u32 %v2057, 16
        %v2230 = vrot.slane %v2228, 5
        %v2231 = vsel %vm280, %v2226, %v2230
        %v2233 = vshrl.u32 %v2058, 16
        %v2235 = vrot.slane %v2233, 4
        %v2236 = vshll.u32 %v2058, 16
        %v2238 = vrot.slane %v2236, 5
        %v2239 = vor.u32 %v2235, %v2238
        %v2240 = vrot.slane %v2239, 4
        %v2242 = vshll.u32 %v2059, 16
        %v2244 = vrot.slane %v2242, 5
        %v2245 = vsel %vm280, %v2240, %v2244
        %v2246 = vshrl.u32 %v2059, 16
        %v2248 = vrot.slane %v2246, 4
        %v2249 = vor.u32 %v2248, %v2244
        %v2250 = vrot.slane %v2249, 4
        %v2252 = vshll.u32 %v2060, 16
        %v2254 = vrot.slane %v2252, 5
        %v2255 = vsel %vm280, %v2250, %v2254
        %v2257 = vshrl.u32 %v2061, 16
        %v2259 = vrot.slane %v2257, 4
        %v2260 = vshll.u32 %v2061, 16
        %v2262 = vrot.slane %v2260, 5
        %v2263 = vor.u32 %v2259, %v2262
        %v2264 = vrot.slane %v2263, 4
        %v2266 = vshll.u32 %v2062, 16
        %v2268 = vrot.slane %v2266, 5
        %v2269 = vsel %vm280, %v2264, %v2268
        %v2270 = vshrl.u32 %v2062, 16
        %v2272 = vrot.slane %v2270, 4
        %v2273 = vor.u32 %v2272, %v2268
        %v2274 = vrot.slane %v2273, 4
        %v2276 = vshll.u32 %v2063, 16
        %v2278 = vrot.slane %v2276, 5
        %v2279 = vsel %vm280, %v2274, %v2278
        %v2281 = vshrl.u32 %v2064, 16
        %v2283 = vrot.slane %v2281, 4
        %v2284 = vshll.u32 %v2064, 16
        %v2286 = vrot.slane %v2284, 5
        %v2287 = vor.u32 %v2283, %v2286
        %v2288 = vrot.slane %v2287, 4
        %v2290 = vshll.u32 %v2065, 16
        %v2292 = vrot.slane %v2290, 5
        %v2293 = vsel %vm280, %v2288, %v2292
        %v2294 = vshrl.u32 %v2065, 16
        %v2296 = vrot.slane %v2294, 4
        %v2297 = vor.u32 %v2296, %v2292
        %v2298 = vrot.slane %v2297, 4
        %v2300 = vshll.u32 %v2066, 16
        %v2302 = vrot.slane %v2300, 5
        %v2303 = vsel %vm280, %v2298, %v2302
        %v2305 = vshrl.u32 %v2067, 16
        %v2307 = vrot.slane %v2305, 4
        %v2308 = vshll.u32 %v2067, 16
        %v2310 = vrot.slane %v2308, 5
        %v2311 = vor.u32 %v2307, %v2310
        %v2312 = vrot.slane %v2311, 4
        %v2314 = vshll.u32 %v2068, 16
        %v2316 = vrot.slane %v2314, 5
        %v2317 = vsel %vm280, %v2312, %v2316
        %v2318 = vshrl.u32 %v2068, 16
        %v2320 = vrot.slane %v2318, 4
        %v2321 = vor.u32 %v2320, %v2316
        %v2322 = vrot.slane %v2321, 4
        %v2324 = vshll.u32 %v2069, 16
        %v2326 = vrot.slane %v2324, 5
        %v2327 = vsel %vm280, %v2322, %v2326
        %v2329 = vshrl.u32 %v2070, 16
        %v2331 = vrot.slane %v2329, 4
        %v2332 = vshll.u32 %v2070, 16
        %v2334 = vrot.slane %v2332, 5
        %v2335 = vor.u32 %v2331, %v2334
        %v2336 = vrot.slane %v2335, 4
        %v2338 = vshll.u32 %v2071, 16
        %v2340 = vrot.slane %v2338, 5
        %v2341 = vsel %vm280, %v2336, %v2340
        %v2342 = vshrl.u32 %v2071, 16
        %v2344 = vrot.slane %v2342, 4
        %v2345 = vor.u32 %v2344, %v2340
        %v2346 = vrot.slane %v2345, 4
        %v2348 = vshll.u32 %v2072, 16
        %v2350 = vrot.slane %v2348, 5
        %v2351 = vsel %vm280, %v2346, %v2350
        %v2353 = vshrl.u32 %v2073, 16
        %v2355 = vrot.slane %v2353, 4
        %v2356 = vshll.u32 %v2073, 16
        %v2358 = vrot.slane %v2356, 5
        %v2359 = vor.u32 %v2355, %v2358
        %v2360 = vrot.slane %v2359, 4
        %v2362 = vshll.u32 %v2074, 16
        %v2364 = vrot.slane %v2362, 5
        %v2365 = vsel %vm280, %v2360, %v2364
        %v2366 = vshrl.u32 %v2074, 16
        %v2368 = vrot.slane %v2366, 4
        %v2369 = vor.u32 %v2368, %v2364
        %v2370 = vrot.slane %v2369, 4
        %v2372 = vshll.u32 %v2075, 16
        %v2374 = vrot.slane %v2372, 5
        %v2375 = vsel %vm280, %v2370, %v2374
        %v2377 = vshrl.u32 %v2076, 16
        %v2379 = vrot.slane %v2377, 4
        %v2380 = vshll.u32 %v2076, 16
        %v2382 = vrot.slane %v2380, 5
        %v2383 = vor.u32 %v2379, %v2382
        %v2384 = vrot.slane %v2383, 4
        %v2386 = vshll.u32 %v2077, 16
        %v2388 = vrot.slane %v2386, 5
        %v2389 = vsel %vm280, %v2384, %v2388
        %v2390 = vshrl.u32 %v2077, 16
        %v2392 = vrot.slane %v2390, 4
        %v2393 = vor.u32 %v2392, %v2388
        %v2394 = vrot.slane %v2393, 4
        %v2396 = vshll.u32 %v2078, 16
        %v2398 = vrot.slane %v2396, 5
        %v2399 = vsel %vm280, %v2394, %v2398
        %v2401 = vshrl.u32 %v2079, 16
        %v2403 = vrot.slane %v2401, 4
        %v2404 = vshll.u32 %v2079, 16
        %v2406 = vrot.slane %v2404, 5
        %v2407 = vor.u32 %v2403, %v2406
        %v2408 = vrot.slane %v2407, 4
        %v2410 = vshll.u32 %v2080, 16
        %v2412 = vrot.slane %v2410, 5
        %v2413 = vsel %vm280, %v2408, %v2412
        %v2414 = vshrl.u32 %v2080, 16
        %v2416 = vrot.slane %v2414, 4
        %v2417 = vor.u32 %v2416, %v2412
        %v2418 = vrot.slane %v2417, 4
        %v2420 = vshll.u32 %v2081, 16
        %v2422 = vrot.slane %v2420, 5
        %v2423 = vsel %vm280, %v2418, %v2422
        %v2425 = vshrl.u32 %v2082, 16
        %v2427 = vrot.slane %v2425, 4
        %v2428 = vshll.u32 %v2082, 16
        %v2430 = vrot.slane %v2428, 5
        %v2431 = vor.u32 %v2427, %v2430
        %v2432 = vrot.slane %v2431, 4
        %v2434 = vshll.u32 %v2083, 16
        %v2436 = vrot.slane %v2434, 5
        %v2437 = vsel %vm280, %v2432, %v2436
        %v2438 = vshrl.u32 %v2083, 16
        %v2440 = vrot.slane %v2438, 4
        %v2441 = vor.u32 %v2440, %v2436
        %v2442 = vrot.slane %v2441, 4
        %v2444 = vshll.u32 %v2084, 16
        %v2446 = vrot.slane %v2444, 5
        %v2447 = vsel %vm280, %v2442, %v2446
        %v2449 = vshrl.u32 %v2085, 16
        %v2451 = vrot.slane %v2449, 4
        %v2452 = vshll.u32 %v2085, 16
        %v2454 = vrot.slane %v2452, 5
        %v2455 = vor.u32 %v2451, %v2454
        %v2456 = vrot.slane %v2455, 4
        %v2458 = vshll.u32 %v2086, 16
        %v2460 = vrot.slane %v2458, 5
        %v2461 = vsel %vm280, %v2456, %v2460
        %v2462 = vshrl.u32 %v2086, 16
        %v2464 = vrot.slane %v2462, 4
        %v2465 = vor.u32 %v2464, %v2460
        %v2466 = vrot.slane %v2465, 4
        %v2468 = vshll.u32 %v2087, 16
        %v2470 = vrot.slane %v2468, 5
        %v2471 = vsel %vm280, %v2466, %v2470
        %s2472 = scalar_lea.vmem %s219, 8
        %v2473 = vld [vmem:[%s2472] sm:$0x3]
        %v2474 = vunpack.c.l.b16 %v2101
        %v2475 = vunpack.c.l.b16 %v2111
        %v2476 = vunpack.c.l.b16 %v2125
        %v2477 = vunpack.c.l.b16 %v2135
        %v2478 = vunpack.c.l.b16 %v2149
        %v2479 = vunpack.c.l.b16 %v2159
        %v2480 = vunpack.c.l.b16 %v2173
        %v2481 = vunpack.c.l.b16 %v2183
        %v2482 = vunpack.c.l.b16 %v2197
        %v2483 = vunpack.c.l.b16 %v2207
        %v2484 = vunpack.c.l.b16 %v2221
        %v2485 = vunpack.c.l.b16 %v2231
        %v2486 = vunpack.c.l.b16 %v2245
        %v2487 = vunpack.c.l.b16 %v2255
        %v2488 = vunpack.c.l.b16 %v2269
        %v2489 = vunpack.c.l.b16 %v2279
        %v2490 = vunpack.c.l.b16 %v2293
        %v2491 = vunpack.c.l.b16 %v2303
        %v2492 = vunpack.c.l.b16 %v2317
        %v2493 = vunpack.c.l.b16 %v2327
        %v2494 = vunpack.c.l.b16 %v2341
        %v2495 = vunpack.c.l.b16 %v2351
        %v2496 = vunpack.c.l.b16 %v2365
        %v2497 = vunpack.c.l.b16 %v2375
        %v2498 = vunpack.c.l.b16 %v2389
        %v2499 = vunpack.c.l.b16 %v2399
        %v2500 = vunpack.c.l.b16 %v2413
        %v2501 = vunpack.c.l.b16 %v2423
        %v2502 = vunpack.c.l.b16 %v2437
        %v2503 = vunpack.c.l.b16 %v2447
        %v2504 = vunpack.c.l.b16 %v2461
        %v2505 = vunpack.c.l.b16 %v2471
        %v2506 = vpack.c.b16 %v2475, %v2474
        %v2507 = vpack.c.b16 %v2477, %v2476
        %v2508 = vpack.c.b16 %v2479, %v2478
        %v2509 = vpack.c.b16 %v2481, %v2480
        %v2510 = vpack.c.b16 %v2483, %v2482
        %v2511 = vpack.c.b16 %v2485, %v2484
        %v2512 = vpack.c.b16 %v2487, %v2486
        %v2513 = vpack.c.b16 %v2489, %v2488
        %v2514 = vpack.c.b16 %v2491, %v2490
        %v2515 = vpack.c.b16 %v2493, %v2492
        %v2516 = vpack.c.b16 %v2495, %v2494
        %v2517 = vpack.c.b16 %v2497, %v2496
        %v2518 = vpack.c.b16 %v2499, %v2498
        %v2519 = vpack.c.b16 %v2501, %v2500
        %v2520 = vpack.c.b16 %v2503, %v2502
        %v2521 = vpack.c.b16 %v2505, %v2504
        %v2523 = vsel %vm715, %v2506, 0
        %v2526 = vsel %vm715, %v2507, 0
        %v2529 = vsel %vm715, %v2508, 0
        %v2532 = vsel %vm715, %v2509, 0
        %v2535 = vsel %vm715, %v2510, 0
        %v2538 = vsel %vm715, %v2511, 0
        %v2541 = vsel %vm715, %v2512, 0
        %v2544 = vsel %vm715, %v2513, 0
        %v2547 = vsel %vm715, %v2514, 0
        %v2550 = vsel %vm715, %v2515, 0
        %v2553 = vsel %vm715, %v2516, 0
        %v2556 = vsel %vm715, %v2517, 0
        %v2559 = vsel %vm715, %v2518, 0
        %v2562 = vsel %vm715, %v2519, 0
        %v2565 = vsel %vm715, %v2520, 0
        %v2568 = vsel %vm715, %v2521, 0
        %v2571 = vsel %vm764, %v2473, 0
        %2573 = vmatprep.subr.bf16.mxu0 0
        %2574 = vmatpush1.bf16.msra.mxu0 %v2571
        %2575 = vmatprep.subr.bf16.mxu0 0
        %2576 = vmatpush1.bf16.msra.mxu0 0
        %2577 = vmatprep.subr.bf16.mxu0 0
        %2578 = vmatpush1.bf16.msra.mxu0 0
        %2579 = vmatprep.subr.bf16.mxu0 0
        %2580 = vmatpush1.bf16.msra.mxu0 0
        %2581 = vmatprep.subr.bf16.mxu0 0
        %2582 = vmatpush1.bf16.msra.mxu0 0
        %2583 = vmatprep.subr.bf16.mxu0 0
        %2584 = vmatpush1.bf16.msra.mxu0 0
        %2585 = vmatprep.subr.bf16.mxu0 0
        %2586 = vmatpush1.bf16.msra.mxu0 0
        %2587 = vmatprep.subr.bf16.mxu0 0
        %2588 = vmatpush1.bf16.msra.mxu0 0
        %2589 = vmatprep.subr.bf16.mxu0 0
        %2590 = vmatpush1.bf16.msra.mxu0 0
        %2591 = vmatprep.subr.bf16.mxu0 0
        %2592 = vmatpush1.bf16.msra.mxu0 0
        %2593 = vmatprep.subr.bf16.mxu0 0
        %2594 = vmatpush1.bf16.msra.mxu0 0
        %2595 = vmatprep.subr.bf16.mxu0 0
        %2596 = vmatpush1.bf16.msra.mxu0 0
        %2597 = vmatprep.subr.bf16.mxu0 0
        %2598 = vmatpush1.bf16.msra.mxu0 0
        %2599 = vmatprep.subr.bf16.mxu0 0
        %2600 = vmatpush1.bf16.msra.mxu0 0
        %2601 = vmatprep.subr.bf16.mxu0 0
        %2602 = vmatpush1.bf16.msra.mxu0 0
        %2603 = vmatprep.subr.bf16.mxu0 0
        %2604 = vmatpush1.bf16.msra.mxu0 0
        %2605 = vmatprep.mubr.bf16.mxu0 0
        %2606 = vmatmul.mubr.bf16.gmra.mrb[0].mxu0 %v2523
        %v2607 = vpop.f32.mrb[0].mxu0
        %v2608 = vadd.f32 0.0, %v2607
        %v2609 = vpop.f32.mrb[0].mxu0
        %v2610 = vpop.f32.mrb[0].mxu0
        %v2611 = vadd.f32 0.0, %v2610
        %v2612 = vpop.f32.mrb[0].mxu0
        %2613 = vmatprep.mubr.bf16.mxu0 0
        %2614 = vmatmul.mubr.bf16.gmra.mrb[0].mxu0 %v2526
        %v2615 = vpop.f32.mrb[0].mxu0
        %v2616 = vadd.f32 0.0, %v2615
        %v2617 = vpop.f32.mrb[0].mxu0
        %v2618 = vpop.f32.mrb[0].mxu0
        %v2619 = vadd.f32 0.0, %v2618
        %v2620 = vpop.f32.mrb[0].mxu0
        %2621 = vmatprep.mubr.bf16.mxu0 0
        %2622 = vmatmul.mubr.bf16.gmra.mrb[0].mxu0 %v2529
        %v2623 = vpop.f32.mrb[0].mxu0
        %v2624 = vadd.f32 0.0, %v2623
        %v2625 = vpop.f32.mrb[0].mxu0
        %v2626 = vpop.f32.mrb[0].mxu0
        %v2627 = vadd.f32 0.0, %v2626
        %v2628 = vpop.f32.mrb[0].mxu0
        %2629 = vmatprep.mubr.bf16.mxu0 0
        %2630 = vmatmul.mubr.bf16.gmra.mrb[0].mxu0 %v2532
        %v2631 = vpop.f32.mrb[0].mxu0
        %v2632 = vadd.f32 0.0, %v2631
        %v2633 = vpop.f32.mrb[0].mxu0
        %v2634 = vpop.f32.mrb[0].mxu0
        %v2635 = vadd.f32 0.0, %v2634
        %v2636 = vpop.f32.mrb[0].mxu0
        %2637 = vmatprep.mubr.bf16.mxu0 0
        %2638 = vmatmul.mubr.bf16.gmra.mrb[0].mxu0 %v2535
        %v2639 = vpop.f32.mrb[0].mxu0
        %v2640 = vadd.f32 0.0, %v2639
        %v2641 = vpop.f32.mrb[0].mxu0
        %v2642 = vpop.f32.mrb[0].mxu0
        %v2643 = vadd.f32 0.0, %v2642
        %v2644 = vpop.f32.mrb[0].mxu0
        %2645 = vmatprep.mubr.bf16.mxu0 0
        %2646 = vmatmul.mubr.bf16.gmra.mrb[0].mxu0 %v2538
        %v2647 = vpop.f32.mrb[0].mxu0
        %v2648 = vadd.f32 0.0, %v2647
        %v2649 = vpop.f32.mrb[0].mxu0
        %v2650 = vpop.f32.mrb[0].mxu0
        %v2651 = vadd.f32 0.0, %v2650
        %v2652 = vpop.f32.mrb[0].mxu0
        %2653 = vmatprep.mubr.bf16.mxu0 0
        %2654 = vmatmul.mubr.bf16.gmra.mrb[0].mxu0 %v2541
        %v2655 = vpop.f32.mrb[0].mxu0
        %v2656 = vadd.f32 0.0, %v2655
        %v2657 = vpop.f32.mrb[0].mxu0
        %v2658 = vpop.f32.mrb[0].mxu0
        %v2659 = vadd.f32 0.0, %v2658
        %v2660 = vpop.f32.mrb[0].mxu0
        %2661 = vmatprep.mubr.bf16.mxu0 0
        %2662 = vmatmul.mubr.bf16.gmra.mrb[0].mxu0 %v2544
        %v2663 = vpop.f32.mrb[0].mxu0
        %v2664 = vadd.f32 0.0, %v2663
        %v2665 = vpop.f32.mrb[0].mxu0
        %v2666 = vpop.f32.mrb[0].mxu0
        %v2667 = vadd.f32 0.0, %v2666
        %v2668 = vpop.f32.mrb[0].mxu0
        %2669 = vmatprep.mubr.bf16.mxu0 0
        %2670 = vmatmul.mubr.bf16.gmra.mrb[0].mxu0 %v2547
        %v2671 = vpop.f32.mrb[0].mxu0
        %v2672 = vadd.f32 0.0, %v2671
        %v2673 = vpop.f32.mrb[0].mxu0
        %v2674 = vpop.f32.mrb[0].mxu0
        %v2675 = vadd.f32 0.0, %v2674
        %v2676 = vpop.f32.mrb[0].mxu0
        %2677 = vmatprep.mubr.bf16.mxu0 0
        %2678 = vmatmul.mubr.bf16.gmra.mrb[0].mxu0 %v2550
        %v2679 = vpop.f32.mrb[0].mxu0
        %v2680 = vadd.f32 0.0, %v2679
        %v2681 = vpop.f32.mrb[0].mxu0
        %v2682 = vpop.f32.mrb[0].mxu0
        %v2683 = vadd.f32 0.0, %v2682
        %v2684 = vpop.f32.mrb[0].mxu0
        %2685 = vmatprep.mubr.bf16.mxu0 0
        %2686 = vmatmul.mubr.bf16.gmra.mrb[0].mxu0 %v2553
        %v2687 = vpop.f32.mrb[0].mxu0
        %v2688 = vadd.f32 0.0, %v2687
        %v2689 = vpop.f32.mrb[0].mxu0
        %v2690 = vpop.f32.mrb[0].mxu0
        %v2691 = vadd.f32 0.0, %v2690
        %v2692 = vpop.f32.mrb[0].mxu0
        %2693 = vmatprep.mubr.bf16.mxu0 0
        %2694 = vmatmul.mubr.bf16.gmra.mrb[0].mxu0 %v2556
        %v2695 = vpop.f32.mrb[0].mxu0
        %v2696 = vadd.f32 0.0, %v2695
        %v2697 = vpop.f32.mrb[0].mxu0
        %v2698 = vpop.f32.mrb[0].mxu0
        %v2699 = vadd.f32 0.0, %v2698
        %v2700 = vpop.f32.mrb[0].mxu0
        %2701 = vmatprep.mubr.bf16.mxu0 0
        %2702 = vmatmul.mubr.bf16.gmra.mrb[0].mxu0 %v2559
        %v2703 = vpop.f32.mrb[0].mxu0
        %v2704 = vadd.f32 0.0, %v2703
        %v2705 = vpop.f32.mrb[0].mxu0
        %v2706 = vpop.f32.mrb[0].mxu0
        %v2707 = vadd.f32 0.0, %v2706
        %v2708 = vpop.f32.mrb[0].mxu0
        %2709 = vmatprep.mubr.bf16.mxu0 0
        %2710 = vmatmul.mubr.bf16.gmra.mrb[0].mxu0 %v2562
        %v2711 = vpop.f32.mrb[0].mxu0
        %v2712 = vadd.f32 0.0, %v2711
        %v2713 = vpop.f32.mrb[0].mxu0
        %v2714 = vpop.f32.mrb[0].mxu0
        %v2715 = vadd.f32 0.0, %v2714
        %v2716 = vpop.f32.mrb[0].mxu0
        %2717 = vmatprep.mubr.bf16.mxu0 0
        %2718 = vmatmul.mubr.bf16.gmra.mrb[0].mxu0 %v2565
        %v2719 = vpop.f32.mrb[0].mxu0
        %v2720 = vadd.f32 0.0, %v2719
        %v2721 = vpop.f32.mrb[0].mxu0
        %v2722 = vpop.f32.mrb[0].mxu0
        %v2723 = vadd.f32 0.0, %v2722
        %v2724 = vpop.f32.mrb[0].mxu0
        %2725 = vmatprep.mubr.bf16.mxu0 0
        %2726 = vmatmul.mubr.bf16.gmra.mrb[0].mxu0 %v2568
        %v2727 = vpop.f32.mrb[0].mxu0
        %v2728 = vadd.f32 0.0, %v2727
        %v2729 = vpop.f32.mrb[0].mxu0
        %v2730 = vpop.f32.mrb[0].mxu0
        %v2731 = vadd.f32 0.0, %v2730
        %v2732 = vpop.f32.mrb[0].mxu0
        %2733 = vdwg.mxu0
        %v2734 = vadd.f32 %v2008, %v2608
        %v2735 = vadd.f32 %v2009, %v2611
        %v2736 = vadd.f32 %v2010, %v2616
        %v2737 = vadd.f32 %v2011, %v2619
        %v2738 = vadd.f32 %v2012, %v2624
        %v2739 = vadd.f32 %v2013, %v2627
        %v2740 = vadd.f32 %v2014, %v2632
        %v2741 = vadd.f32 %v2015, %v2635
        %v2742 = vadd.f32 %v2016, %v2640
        %v2743 = vadd.f32 %v2017, %v2643
        %v2744 = vadd.f32 %v2018, %v2648
        %v2745 = vadd.f32 %v2019, %v2651
        %v2746 = vadd.f32 %v2020, %v2656
        %v2747 = vadd.f32 %v2021, %v2659
        %v2748 = vadd.f32 %v2022, %v2664
        %v2749 = vadd.f32 %v2023, %v2667
        %v2750 = vadd.f32 %v2024, %v2672
        %v2751 = vadd.f32 %v2025, %v2675
        %v2752 = vadd.f32 %v2026, %v2680
        %v2753 = vadd.f32 %v2027, %v2683
        %v2754 = vadd.f32 %v2028, %v2688
        %v2755 = vadd.f32 %v2029, %v2691
        %v2756 = vadd.f32 %v2030, %v2696
        %v2757 = vadd.f32 %v2031, %v2699
        %v2758 = vadd.f32 %v2032, %v2704
        %v2759 = vadd.f32 %v2033, %v2707
        %v2760 = vadd.f32 %v2034, %v2712
        %v2761 = vadd.f32 %v2035, %v2715
        %v2762 = vadd.f32 %v2036, %v2720
        %v2763 = vadd.f32 %v2037, %v2723
        %v2764 = vadd.f32 %v2038, %v2728
        %v2765 = vadd.f32 %v2039, %v2731
        %v2766 = vld [vmem:[%s1681] sm:$0xe]
        %v2767 = vld [vmem:[%s1681 + $0xc] sm:$0xe]
        %v2768 = vld [vmem:[%s1681 + $0x18] sm:$0xe]
        %v2769 = vld [vmem:[%s1681 + $0x24] sm:$0xe]
        %v2770 = vld [vmem:[%s1681 + $0x30] sm:$0xe]
        %v2771 = vld [vmem:[%s1681 + $0x3c] sm:$0xe]
        %v2772 = vld [vmem:[%s1681 + $0x48] sm:$0xe]
        %v2773 = vld [vmem:[%s1681 + $0x54] sm:$0xe]
        %v2774 = vld [vmem:[%s1681 + $0x60] sm:$0xe]
        %v2775 = vld [vmem:[%s1681 + $0x6c] sm:$0xe]
        %v2776 = vld [vmem:[%s1681 + $0x78] sm:$0xe]
        %v2777 = vld [vmem:[%s1681 + $0x84] sm:$0xe]
        %v2778 = vld [vmem:[%s1681 + $0x90] sm:$0xe]
        %v2779 = vld [vmem:[%s1681 + $0x9c] sm:$0xe]
        %v2780 = vld [vmem:[%s1681 + $0xa8] sm:$0xe]
        %v2781 = vld [vmem:[%s1681 + $0xb4] sm:$0xe]
        %v2830 = vrot.slane %v2766, 5
        %v2831 = vrot.slane %v2830, 4
        %v2832 = vrot.slane %v2041, 5
        %v2833 = vsel %vm1271, %v2831, %v2832
        %v2834 = vrot.slane %v2832, 4
        %v2835 = vrot.slane %v2042, 5
        %v2836 = vsel %vm1271, %v2834, %v2835
        %v2837 = vrot.slane %v2767, 5
        %v2838 = vrot.slane %v2837, 4
        %v2839 = vrot.slane %v2044, 5
        %v2840 = vsel %vm1271, %v2838, %v2839
        %v2841 = vrot.slane %v2839, 4
        %v2842 = vrot.slane %v2045, 5
        %v2843 = vsel %vm1271, %v2841, %v2842
        %v2844 = vrot.slane %v2768, 5
        %v2845 = vrot.slane %v2844, 4
        %v2846 = vrot.slane %v2047, 5
        %v2847 = vsel %vm1271, %v2845, %v2846
        %v2848 = vrot.slane %v2846, 4
        %v2849 = vrot.slane %v2048, 5
        %v2850 = vsel %vm1271, %v2848, %v2849
        %v2851 = vrot.slane %v2769, 5
        %v2852 = vrot.slane %v2851, 4
        %v2853 = vrot.slane %v2050, 5
        %v2854 = vsel %vm1271, %v2852, %v2853
        %v2855 = vrot.slane %v2853, 4
        %v2856 = vrot.slane %v2051, 5
        %v2857 = vsel %vm1271, %v2855, %v2856
        %v2858 = vrot.slane %v2770, 5
        %v2859 = vrot.slane %v2858, 4
        %v2860 = vrot.slane %v2053, 5
        %v2861 = vsel %vm1271, %v2859, %v2860
        %v2862 = vrot.slane %v2860, 4
        %v2863 = vrot.slane %v2054, 5
        %v2864 = vsel %vm1271, %v2862, %v2863
        %v2865 = vrot.slane %v2771, 5
        %v2866 = vrot.slane %v2865, 4
        %v2867 = vrot.slane %v2056, 5
        %v2868 = vsel %vm1271, %v2866, %v2867
        %v2869 = vrot.slane %v2867, 4
        %v2870 = vrot.slane %v2057, 5
        %v2871 = vsel %vm1271, %v2869, %v2870
        %v2872 = vrot.slane %v2772, 5
        %v2873 = vrot.slane %v2872, 4
        %v2874 = vrot.slane %v2059, 5
        %v2875 = vsel %vm1271, %v2873, %v2874
        %v2876 = vrot.slane %v2874, 4
        %v2877 = vrot.slane %v2060, 5
        %v2878 = vsel %vm1271, %v2876, %v2877
        %v2879 = vrot.slane %v2773, 5
        %v2880 = vrot.slane %v2879, 4
        %v2881 = vrot.slane %v2062, 5
        %v2882 = vsel %vm1271, %v2880, %v2881
        %v2883 = vrot.slane %v2881, 4
        %v2884 = vrot.slane %v2063, 5
        %v2885 = vsel %vm1271, %v2883, %v2884
        %v2886 = vrot.slane %v2774, 5
        %v2887 = vrot.slane %v2886, 4
        %v2888 = vrot.slane %v2065, 5
        %v2889 = vsel %vm1271, %v2887, %v2888
        %v2890 = vrot.slane %v2888, 4
        %v2891 = vrot.slane %v2066, 5
        %v2892 = vsel %vm1271, %v2890, %v2891
        %v2893 = vrot.slane %v2775, 5
        %v2894 = vrot.slane %v2893, 4
        %v2895 = vrot.slane %v2068, 5
        %v2896 = vsel %vm1271, %v2894, %v2895
        %v2897 = vrot.slane %v2895, 4
        %v2898 = vrot.slane %v2069, 5
        %v2899 = vsel %vm1271, %v2897, %v2898
        %v2900 = vrot.slane %v2776, 5
        %v2901 = vrot.slane %v2900, 4
        %v2902 = vrot.slane %v2071, 5
        %v2903 = vsel %vm1271, %v2901, %v2902
        %v2904 = vrot.slane %v2902, 4
        %v2905 = vrot.slane %v2072, 5
        %v2906 = vsel %vm1271, %v2904, %v2905
        %v2907 = vrot.slane %v2777, 5
        %v2908 = vrot.slane %v2907, 4
        %v2909 = vrot.slane %v2074, 5
        %v2910 = vsel %vm1271, %v2908, %v2909
        %v2911 = vrot.slane %v2909, 4
        %v2912 = vrot.slane %v2075, 5
        %v2913 = vsel %vm1271, %v2911, %v2912
        %v2914 = vrot.slane %v2778, 5
        %v2915 = vrot.slane %v2914, 4
        %v2916 = vrot.slane %v2077, 5
        %v2917 = vsel %vm1271, %v2915, %v2916
        %v2918 = vrot.slane %v2916, 4
        %v2919 = vrot.slane %v2078, 5
        %v2920 = vsel %vm1271, %v2918, %v2919
        %v2921 = vrot.slane %v2779, 5
        %v2922 = vrot.slane %v2921, 4
        %v2923 = vrot.slane %v2080, 5
        %v2924 = vsel %vm1271, %v2922, %v2923
        %v2925 = vrot.slane %v2923, 4
        %v2926 = vrot.slane %v2081, 5
        %v2927 = vsel %vm1271, %v2925, %v2926
        %v2928 = vrot.slane %v2780, 5
        %v2929 = vrot.slane %v2928, 4
        %v2930 = vrot.slane %v2083, 5
        %v2931 = vsel %vm1271, %v2929, %v2930
        %v2932 = vrot.slane %v2930, 4
        %v2933 = vrot.slane %v2084, 5
        %v2934 = vsel %vm1271, %v2932, %v2933
        %v2935 = vrot.slane %v2781, 5
        %v2936 = vrot.slane %v2935, 4
        %v2937 = vrot.slane %v2086, 5
        %v2938 = vsel %vm1271, %v2936, %v2937
        %v2939 = vrot.slane %v2937, 4
        %v2940 = vrot.slane %v2087, 5
        %v2941 = vsel %vm1271, %v2939, %v2940
        %s2942 = scalar_lea.vmem %s219, 10
        %v2943 = vld [vmem:[%s2942] sm:$0x3]
        %v2944 = vunpack.c.l.b16 %v2833
        %v2945 = vunpack.c.l.b16 %v2836
        %v2946 = vunpack.c.l.b16 %v2840
        %v2947 = vunpack.c.l.b16 %v2843
        %v2948 = vunpack.c.l.b16 %v2847
        %v2949 = vunpack.c.l.b16 %v2850
        %v2950 = vunpack.c.l.b16 %v2854
        %v2951 = vunpack.c.l.b16 %v2857
        %v2952 = vunpack.c.l.b16 %v2861
        %v2953 = vunpack.c.l.b16 %v2864
        %v2954 = vunpack.c.l.b16 %v2868
        %v2955 = vunpack.c.l.b16 %v2871
        %v2956 = vunpack.c.l.b16 %v2875
        %v2957 = vunpack.c.l.b16 %v2878
        %v2958 = vunpack.c.l.b16 %v2882
        %v2959 = vunpack.c.l.b16 %v2885
        %v2960 = vunpack.c.l.b16 %v2889
        %v2961 = vunpack.c.l.b16 %v2892
        %v2962 = vunpack.c.l.b16 %v2896
        %v2963 = vunpack.c.l.b16 %v2899
        %v2964 = vunpack.c.l.b16 %v2903
        %v2965 = vunpack.c.l.b16 %v2906
        %v2966 = vunpack.c.l.b16 %v2910
        %v2967 = vunpack.c.l.b16 %v2913
        %v2968 = vunpack.c.l.b16 %v2917
        %v2969 = vunpack.c.l.b16 %v2920
        %v2970 = vunpack.c.l.b16 %v2924
        %v2971 = vunpack.c.l.b16 %v2927
        %v2972 = vunpack.c.l.b16 %v2931
        %v2973 = vunpack.c.l.b16 %v2934
        %v2974 = vunpack.c.l.b16 %v2938
        %v2975 = vunpack.c.l.b16 %v2941
        %v2976 = vpack.c.b16 %v2945, %v2944
        %v2977 = vpack.c.b16 %v2947, %v2946
        %v2978 = vpack.c.b16 %v2949, %v2948
        %v2979 = vpack.c.b16 %v2951, %v2950
        %v2980 = vpack.c.b16 %v2953, %v2952
        %v2981 = vpack.c.b16 %v2955, %v2954
        %v2982 = vpack.c.b16 %v2957, %v2956
        %v2983 = vpack.c.b16 %v2959, %v2958
        %v2984 = vpack.c.b16 %v2961, %v2960
        %v2985 = vpack.c.b16 %v2963, %v2962
        %v2986 = vpack.c.b16 %v2965, %v2964
        %v2987 = vpack.c.b16 %v2967, %v2966
        %v2988 = vpack.c.b16 %v2969, %v2968
        %v2989 = vpack.c.b16 %v2971, %v2970
        %v2990 = vpack.c.b16 %v2973, %v2972
        %v2991 = vpack.c.b16 %v2975, %v2974
        %v2993 = vsel %vm715, %v2976, 0
        %v2996 = vsel %vm715, %v2977, 0
        %v2999 = vsel %vm715, %v2978, 0
        %v3002 = vsel %vm715, %v2979, 0
        %v3005 = vsel %vm715, %v2980, 0
        %v3008 = vsel %vm715, %v2981, 0
        %v3011 = vsel %vm715, %v2982, 0
        %v3014 = vsel %vm715, %v2983, 0
        %v3017 = vsel %vm715, %v2984, 0
        %v3020 = vsel %vm715, %v2985, 0
        %v3023 = vsel %vm715, %v2986, 0
        %v3026 = vsel %vm715, %v2987, 0
        %v3029 = vsel %vm715, %v2988, 0
        %v3032 = vsel %vm715, %v2989, 0
        %v3035 = vsel %vm715, %v2990, 0
        %v3038 = vsel %vm715, %v2991, 0
        %v3041 = vsel %vm764, %v2943, 0
        %3043 = vmatprep.subr.bf16.mxu0 0
        %3044 = vmatpush1.bf16.msra.mxu0 %v3041
        %3045 = vmatprep.subr.bf16.mxu0 0
        %3046 = vmatpush1.bf16.msra.mxu0 0
        %3047 = vmatprep.subr.bf16.mxu0 0
        %3048 = vmatpush1.bf16.msra.mxu0 0
        %3049 = vmatprep.subr.bf16.mxu0 0
        %3050 = vmatpush1.bf16.msra.mxu0 0
        %3051 = vmatprep.subr.bf16.mxu0 0
        %3052 = vmatpush1.bf16.msra.mxu0 0
        %3053 = vmatprep.subr.bf16.mxu0 0
        %3054 = vmatpush1.bf16.msra.mxu0 0
        %3055 = vmatprep.subr.bf16.mxu0 0
        %3056 = vmatpush1.bf16.msra.mxu0 0
        %3057 = vmatprep.subr.bf16.mxu0 0
        %3058 = vmatpush1.bf16.msra.mxu0 0
        %3059 = vmatprep.subr.bf16.mxu0 0
        %3060 = vmatpush1.bf16.msra.mxu0 0
        %3061 = vmatprep.subr.bf16.mxu0 0
        %3062 = vmatpush1.bf16.msra.mxu0 0
        %3063 = vmatprep.subr.bf16.mxu0 0
        %3064 = vmatpush1.bf16.msra.mxu0 0
        %3065 = vmatprep.subr.bf16.mxu0 0
        %3066 = vmatpush1.bf16.msra.mxu0 0
        %3067 = vmatprep.subr.bf16.mxu0 0
        %3068 = vmatpush1.bf16.msra.mxu0 0
        %3069 = vmatprep.subr.bf16.mxu0 0
        %3070 = vmatpush1.bf16.msra.mxu0 0
        %3071 = vmatprep.subr.bf16.mxu0 0
        %3072 = vmatpush1.bf16.msra.mxu0 0
        %3073 = vmatprep.subr.bf16.mxu0 0
        %3074 = vmatpush1.bf16.msra.mxu0 0
        %3075 = vmatprep.mubr.bf16.mxu0 0
        %3076 = vmatmul.mubr.bf16.gmra.mrb[0].mxu0 %v2993
        %v3077 = vpop.f32.mrb[0].mxu0
        %v3078 = vadd.f32 0.0, %v3077
        %v3079 = vpop.f32.mrb[0].mxu0
        %v3080 = vpop.f32.mrb[0].mxu0
        %v3081 = vadd.f32 0.0, %v3080
        %v3082 = vpop.f32.mrb[0].mxu0
        %3083 = vmatprep.mubr.bf16.mxu0 0
        %3084 = vmatmul.mubr.bf16.gmra.mrb[0].mxu0 %v2996
        %v3085 = vpop.f32.mrb[0].mxu0
        %v3086 = vadd.f32 0.0, %v3085
        %v3087 = vpop.f32.mrb[0].mxu0
        %v3088 = vpop.f32.mrb[0].mxu0
        %v3089 = vadd.f32 0.0, %v3088
        %v3090 = vpop.f32.mrb[0].mxu0
        %3091 = vmatprep.mubr.bf16.mxu0 0
        %3092 = vmatmul.mubr.bf16.gmra.mrb[0].mxu0 %v2999
        %v3093 = vpop.f32.mrb[0].mxu0
        %v3094 = vadd.f32 0.0, %v3093
        %v3095 = vpop.f32.mrb[0].mxu0
        %v3096 = vpop.f32.mrb[0].mxu0
        %v3097 = vadd.f32 0.0, %v3096
        %v3098 = vpop.f32.mrb[0].mxu0
        %3099 = vmatprep.mubr.bf16.mxu0 0
        %3100 = vmatmul.mubr.bf16.gmra.mrb[0].mxu0 %v3002
        %v3101 = vpop.f32.mrb[0].mxu0
        %v3102 = vadd.f32 0.0, %v3101
        %v3103 = vpop.f32.mrb[0].mxu0
        %v3104 = vpop.f32.mrb[0].mxu0
        %v3105 = vadd.f32 0.0, %v3104
        %v3106 = vpop.f32.mrb[0].mxu0
        %3107 = vmatprep.mubr.bf16.mxu0 0
        %3108 = vmatmul.mubr.bf16.gmra.mrb[0].mxu0 %v3005
        %v3109 = vpop.f32.mrb[0].mxu0
        %v3110 = vadd.f32 0.0, %v3109
        %v3111 = vpop.f32.mrb[0].mxu0
        %v3112 = vpop.f32.mrb[0].mxu0
        %v3113 = vadd.f32 0.0, %v3112
        %v3114 = vpop.f32.mrb[0].mxu0
        %3115 = vmatprep.mubr.bf16.mxu0 0
        %3116 = vmatmul.mubr.bf16.gmra.mrb[0].mxu0 %v3008
        %v3117 = vpop.f32.mrb[0].mxu0
        %v3118 = vadd.f32 0.0, %v3117
        %v3119 = vpop.f32.mrb[0].mxu0
        %v3120 = vpop.f32.mrb[0].mxu0
        %v3121 = vadd.f32 0.0, %v3120
        %v3122 = vpop.f32.mrb[0].mxu0
        %3123 = vmatprep.mubr.bf16.mxu0 0
        %3124 = vmatmul.mubr.bf16.gmra.mrb[0].mxu0 %v3011
        %v3125 = vpop.f32.mrb[0].mxu0
        %v3126 = vadd.f32 0.0, %v3125
        %v3127 = vpop.f32.mrb[0].mxu0
        %v3128 = vpop.f32.mrb[0].mxu0
        %v3129 = vadd.f32 0.0, %v3128
        %v3130 = vpop.f32.mrb[0].mxu0
        %3131 = vmatprep.mubr.bf16.mxu0 0
        %3132 = vmatmul.mubr.bf16.gmra.mrb[0].mxu0 %v3014
        %v3133 = vpop.f32.mrb[0].mxu0
        %v3134 = vadd.f32 0.0, %v3133
        %v3135 = vpop.f32.mrb[0].mxu0
        %v3136 = vpop.f32.mrb[0].mxu0
        %v3137 = vadd.f32 0.0, %v3136
        %v3138 = vpop.f32.mrb[0].mxu0
        %3139 = vmatprep.mubr.bf16.mxu0 0
        %3140 = vmatmul.mubr.bf16.gmra.mrb[0].mxu0 %v3017
        %v3141 = vpop.f32.mrb[0].mxu0
        %v3142 = vadd.f32 0.0, %v3141
        %v3143 = vpop.f32.mrb[0].mxu0
        %v3144 = vpop.f32.mrb[0].mxu0
        %v3145 = vadd.f32 0.0, %v3144
        %v3146 = vpop.f32.mrb[0].mxu0
        %3147 = vmatprep.mubr.bf16.mxu0 0
        %3148 = vmatmul.mubr.bf16.gmra.mrb[0].mxu0 %v3020
        %v3149 = vpop.f32.mrb[0].mxu0
        %v3150 = vadd.f32 0.0, %v3149
        %v3151 = vpop.f32.mrb[0].mxu0
        %v3152 = vpop.f32.mrb[0].mxu0
        %v3153 = vadd.f32 0.0, %v3152
        %v3154 = vpop.f32.mrb[0].mxu0
        %3155 = vmatprep.mubr.bf16.mxu0 0
        %3156 = vmatmul.mubr.bf16.gmra.mrb[0].mxu0 %v3023
        %v3157 = vpop.f32.mrb[0].mxu0
        %v3158 = vadd.f32 0.0, %v3157
        %v3159 = vpop.f32.mrb[0].mxu0
        %v3160 = vpop.f32.mrb[0].mxu0
        %v3161 = vadd.f32 0.0, %v3160
        %v3162 = vpop.f32.mrb[0].mxu0
        %3163 = vmatprep.mubr.bf16.mxu0 0
        %3164 = vmatmul.mubr.bf16.gmra.mrb[0].mxu0 %v3026
        %v3165 = vpop.f32.mrb[0].mxu0
        %v3166 = vadd.f32 0.0, %v3165
        %v3167 = vpop.f32.mrb[0].mxu0
        %v3168 = vpop.f32.mrb[0].mxu0
        %v3169 = vadd.f32 0.0, %v3168
        %v3170 = vpop.f32.mrb[0].mxu0
        %3171 = vmatprep.mubr.bf16.mxu0 0
        %3172 = vmatmul.mubr.bf16.gmra.mrb[0].mxu0 %v3029
        %v3173 = vpop.f32.mrb[0].mxu0
        %v3174 = vadd.f32 0.0, %v3173
        %v3175 = vpop.f32.mrb[0].mxu0
        %v3176 = vpop.f32.mrb[0].mxu0
        %v3177 = vadd.f32 0.0, %v3176
        %v3178 = vpop.f32.mrb[0].mxu0
        %3179 = vmatprep.mubr.bf16.mxu0 0
        %3180 = vmatmul.mubr.bf16.gmra.mrb[0].mxu0 %v3032
        %v3181 = vpop.f32.mrb[0].mxu0
        %v3182 = vadd.f32 0.0, %v3181
        %v3183 = vpop.f32.mrb[0].mxu0
        %v3184 = vpop.f32.mrb[0].mxu0
        %v3185 = vadd.f32 0.0, %v3184
        %v3186 = vpop.f32.mrb[0].mxu0
        %3187 = vmatprep.mubr.bf16.mxu0 0
        %3188 = vmatmul.mubr.bf16.gmra.mrb[0].mxu0 %v3035
        %v3189 = vpop.f32.mrb[0].mxu0
        %v3190 = vadd.f32 0.0, %v3189
        %v3191 = vpop.f32.mrb[0].mxu0
        %v3192 = vpop.f32.mrb[0].mxu0
        %v3193 = vadd.f32 0.0, %v3192
        %v3194 = vpop.f32.mrb[0].mxu0
        %3195 = vmatprep.mubr.bf16.mxu0 0
        %3196 = vmatmul.mubr.bf16.gmra.mrb[0].mxu0 %v3038
        %v3197 = vpop.f32.mrb[0].mxu0
        %v3198 = vadd.f32 0.0, %v3197
        %v3199 = vpop.f32.mrb[0].mxu0
        %v3200 = vpop.f32.mrb[0].mxu0
        %v3201 = vadd.f32 0.0, %v3200
        %v3202 = vpop.f32.mrb[0].mxu0
        %3203 = vdwg.mxu0
        %v3204 = vadd.f32 %v2734, %v3078
        %v3205 = vadd.f32 %v2735, %v3081
        %v3206 = vadd.f32 %v2736, %v3086
        %v3207 = vadd.f32 %v2737, %v3089
        %v3208 = vadd.f32 %v2738, %v3094
        %v3209 = vadd.f32 %v2739, %v3097
        %v3210 = vadd.f32 %v2740, %v3102
        %v3211 = vadd.f32 %v2741, %v3105
        %v3212 = vadd.f32 %v2742, %v3110
        %v3213 = vadd.f32 %v2743, %v3113
        %v3214 = vadd.f32 %v2744, %v3118
        %v3215 = vadd.f32 %v2745, %v3121
        %v3216 = vadd.f32 %v2746, %v3126
        %v3217 = vadd.f32 %v2747, %v3129
        %v3218 = vadd.f32 %v2748, %v3134
        %v3219 = vadd.f32 %v2749, %v3137
        %v3220 = vadd.f32 %v2750, %v3142
        %v3221 = vadd.f32 %v2751, %v3145
        %v3222 = vadd.f32 %v2752, %v3150
        %v3223 = vadd.f32 %v2753, %v3153
        %v3224 = vadd.f32 %v2754, %v3158
        %v3225 = vadd.f32 %v2755, %v3161
        %v3226 = vadd.f32 %v2756, %v3166
        %v3227 = vadd.f32 %v2757, %v3169
        %v3228 = vadd.f32 %v2758, %v3174
        %v3229 = vadd.f32 %v2759, %v3177
        %v3230 = vadd.f32 %v2760, %v3182
        %v3231 = vadd.f32 %v2761, %v3185
        %v3232 = vadd.f32 %v2762, %v3190
        %v3233 = vadd.f32 %v2763, %v3193
        %v3234 = vadd.f32 %v2764, %v3198
        %v3235 = vadd.f32 %v2765, %v3201
        %s3236 = sadd.s32 %s225, 2
        %s3237 = smul.u32 %s3236, 3
        %s3238 = smul.addr %s3237, 4
        %s3239 = scalar_lea.vmem %s215, %s3238
        %v3240 = vld [vmem:[%s3239] sm:$0xf]
        %v3241 = vld [vmem:[%s3239 + $0x4] sm:$0xf]
        %v3242 = vld [vmem:[%s3239 + $0xc] sm:$0xf]
        %v3243 = vld [vmem:[%s3239 + $0x10] sm:$0xf]
        %v3244 = vld [vmem:[%s3239 + $0x18] sm:$0xf]
        %v3245 = vld [vmem:[%s3239 + $0x1c] sm:$0xf]
        %v3246 = vld [vmem:[%s3239 + $0x24] sm:$0xf]
        %v3247 = vld [vmem:[%s3239 + $0x28] sm:$0xf]
        %v3248 = vld [vmem:[%s3239 + $0x30] sm:$0xf]
        %v3249 = vld [vmem:[%s3239 + $0x34] sm:$0xf]
        %v3250 = vld [vmem:[%s3239 + $0x3c] sm:$0xf]
        %v3251 = vld [vmem:[%s3239 + $0x40] sm:$0xf]
        %v3252 = vld [vmem:[%s3239 + $0x48] sm:$0xf]
        %v3253 = vld [vmem:[%s3239 + $0x4c] sm:$0xf]
        %v3254 = vld [vmem:[%s3239 + $0x54] sm:$0xf]
        %v3255 = vld [vmem:[%s3239 + $0x58] sm:$0xf]
        %v3256 = vld [vmem:[%s3239 + $0x60] sm:$0xf]
        %v3257 = vld [vmem:[%s3239 + $0x64] sm:$0xf]
        %v3258 = vld [vmem:[%s3239 + $0x6c] sm:$0xf]
        %v3259 = vld [vmem:[%s3239 + $0x70] sm:$0xf]
        %v3260 = vld [vmem:[%s3239 + $0x78] sm:$0xf]
        %v3261 = vld [vmem:[%s3239 + $0x7c] sm:$0xf]
        %v3262 = vld [vmem:[%s3239 + $0x84] sm:$0xf]
        %v3263 = vld [vmem:[%s3239 + $0x88] sm:$0xf]
        %v3264 = vld [vmem:[%s3239 + $0x90] sm:$0xf]
        %v3265 = vld [vmem:[%s3239 + $0x94] sm:$0xf]
        %v3266 = vld [vmem:[%s3239 + $0x9c] sm:$0xf]
        %v3267 = vld [vmem:[%s3239 + $0xa0] sm:$0xf]
        %v3268 = vld [vmem:[%s3239 + $0xa8] sm:$0xf]
        %v3269 = vld [vmem:[%s3239 + $0xac] sm:$0xf]
        %v3270 = vld [vmem:[%s3239 + $0xb4] sm:$0xf]
        %v3271 = vld [vmem:[%s3239 + $0xb8] sm:$0xf]
        %s3272 = scalar_lea.vmem %s219, 12
        %v3273 = vld [vmem:[%s3272] sm:$0x3]
        %v3306 = vunpack.c.l.b16 %v3240
        %v3307 = vunpack.c.l.b16 %v3241
        %v3308 = vunpack.c.l.b16 %v3242
        %v3309 = vunpack.c.l.b16 %v3243
        %v3310 = vunpack.c.l.b16 %v3244
        %v3311 = vunpack.c.l.b16 %v3245
        %v3312 = vunpack.c.l.b16 %v3246
        %v3313 = vunpack.c.l.b16 %v3247
        %v3314 = vunpack.c.l.b16 %v3248
        %v3315 = vunpack.c.l.b16 %v3249
        %v3316 = vunpack.c.l.b16 %v3250
        %v3317 = vunpack.c.l.b16 %v3251
        %v3318 = vunpack.c.l.b16 %v3252
        %v3319 = vunpack.c.l.b16 %v3253
        %v3320 = vunpack.c.l.b16 %v3254
        %v3321 = vunpack.c.l.b16 %v3255
        %v3322 = vunpack.c.l.b16 %v3256
        %v3323 = vunpack.c.l.b16 %v3257
        %v3324 = vunpack.c.l.b16 %v3258
        %v3325 = vunpack.c.l.b16 %v3259
        %v3326 = vunpack.c.l.b16 %v3260
        %v3327 = vunpack.c.l.b16 %v3261
        %v3328 = vunpack.c.l.b16 %v3262
        %v3329 = vunpack.c.l.b16 %v3263
        %v3330 = vunpack.c.l.b16 %v3264
        %v3331 = vunpack.c.l.b16 %v3265
        %v3332 = vunpack.c.l.b16 %v3266
        %v3333 = vunpack.c.l.b16 %v3267
        %v3334 = vunpack.c.l.b16 %v3268
        %v3335 = vunpack.c.l.b16 %v3269
        %v3336 = vunpack.c.l.b16 %v3270
        %v3337 = vunpack.c.l.b16 %v3271
        %v3338 = vpack.c.b16 %v3307, %v3306
        %v3339 = vpack.c.b16 %v3309, %v3308
        %v3340 = vpack.c.b16 %v3311, %v3310
        %v3341 = vpack.c.b16 %v3313, %v3312
        %v3342 = vpack.c.b16 %v3315, %v3314
        %v3343 = vpack.c.b16 %v3317, %v3316
        %v3344 = vpack.c.b16 %v3319, %v3318
        %v3345 = vpack.c.b16 %v3321, %v3320
        %v3346 = vpack.c.b16 %v3323, %v3322
        %v3347 = vpack.c.b16 %v3325, %v3324
        %v3348 = vpack.c.b16 %v3327, %v3326
        %v3349 = vpack.c.b16 %v3329, %v3328
        %v3350 = vpack.c.b16 %v3331, %v3330
        %v3351 = vpack.c.b16 %v3333, %v3332
        %v3352 = vpack.c.b16 %v3335, %v3334
        %v3353 = vpack.c.b16 %v3337, %v3336
        %v3355 = vsel %vm715, %v3338, 0
        %v3358 = vsel %vm715, %v3339, 0
        %v3361 = vsel %vm715, %v3340, 0
        %v3364 = vsel %vm715, %v3341, 0
        %v3367 = vsel %vm715, %v3342, 0
        %v3370 = vsel %vm715, %v3343, 0
        %v3373 = vsel %vm715, %v3344, 0
        %v3376 = vsel %vm715, %v3345, 0
        %v3379 = vsel %vm715, %v3346, 0
        %v3382 = vsel %vm715, %v3347, 0
        %v3385 = vsel %vm715, %v3348, 0
        %v3388 = vsel %vm715, %v3349, 0
        %v3391 = vsel %vm715, %v3350, 0
        %v3394 = vsel %vm715, %v3351, 0
        %v3397 = vsel %vm715, %v3352, 0
        %v3400 = vsel %vm715, %v3353, 0
        %v3403 = vsel %vm764, %v3273, 0
        %3405 = vmatprep.subr.bf16.mxu0 0
        %3406 = vmatpush1.bf16.msra.mxu0 %v3403
        %3407 = vmatprep.subr.bf16.mxu0 0
        %3408 = vmatpush1.bf16.msra.mxu0 0
        %3409 = vmatprep.subr.bf16.mxu0 0
        %3410 = vmatpush1.bf16.msra.mxu0 0
        %3411 = vmatprep.subr.bf16.mxu0 0
        %3412 = vmatpush1.bf16.msra.mxu0 0
        %3413 = vmatprep.subr.bf16.mxu0 0
        %3414 = vmatpush1.bf16.msra.mxu0 0
        %3415 = vmatprep.subr.bf16.mxu0 0
        %3416 = vmatpush1.bf16.msra.mxu0 0
        %3417 = vmatprep.subr.bf16.mxu0 0
        %3418 = vmatpush1.bf16.msra.mxu0 0
        %3419 = vmatprep.subr.bf16.mxu0 0
        %3420 = vmatpush1.bf16.msra.mxu0 0
        %3421 = vmatprep.subr.bf16.mxu0 0
        %3422 = vmatpush1.bf16.msra.mxu0 0
        %3423 = vmatprep.subr.bf16.mxu0 0
        %3424 = vmatpush1.bf16.msra.mxu0 0
        %3425 = vmatprep.subr.bf16.mxu0 0
        %3426 = vmatpush1.bf16.msra.mxu0 0
        %3427 = vmatprep.subr.bf16.mxu0 0
        %3428 = vmatpush1.bf16.msra.mxu0 0
        %3429 = vmatprep.subr.bf16.mxu0 0
        %3430 = vmatpush1.bf16.msra.mxu0 0
        %3431 = vmatprep.subr.bf16.mxu0 0
        %3432 = vmatpush1.bf16.msra.mxu0 0
        %3433 = vmatprep.subr.bf16.mxu0 0
        %3434 = vmatpush1.bf16.msra.mxu0 0
        %3435 = vmatprep.subr.bf16.mxu0 0
        %3436 = vmatpush1.bf16.msra.mxu0 0
        %3437 = vmatprep.mubr.bf16.mxu0 0
        %3438 = vmatmul.mubr.bf16.gmra.mrb[0].mxu0 %v3355
        %v3439 = vpop.f32.mrb[0].mxu0
        %v3440 = vadd.f32 0.0, %v3439
        %v3441 = vpop.f32.mrb[0].mxu0
        %v3442 = vpop.f32.mrb[0].mxu0
        %v3443 = vadd.f32 0.0, %v3442
        %v3444 = vpop.f32.mrb[0].mxu0
        %3445 = vmatprep.mubr.bf16.mxu0 0
        %3446 = vmatmul.mubr.bf16.gmra.mrb[0].mxu0 %v3358
        %v3447 = vpop.f32.mrb[0].mxu0
        %v3448 = vadd.f32 0.0, %v3447
        %v3449 = vpop.f32.mrb[0].mxu0
        %v3450 = vpop.f32.mrb[0].mxu0
        %v3451 = vadd.f32 0.0, %v3450
        %v3452 = vpop.f32.mrb[0].mxu0
        %3453 = vmatprep.mubr.bf16.mxu0 0
        %3454 = vmatmul.mubr.bf16.gmra.mrb[0].mxu0 %v3361
        %v3455 = vpop.f32.mrb[0].mxu0
        %v3456 = vadd.f32 0.0, %v3455
        %v3457 = vpop.f32.mrb[0].mxu0
        %v3458 = vpop.f32.mrb[0].mxu0
        %v3459 = vadd.f32 0.0, %v3458
        %v3460 = vpop.f32.mrb[0].mxu0
        %3461 = vmatprep.mubr.bf16.mxu0 0
        %3462 = vmatmul.mubr.bf16.gmra.mrb[0].mxu0 %v3364
        %v3463 = vpop.f32.mrb[0].mxu0
        %v3464 = vadd.f32 0.0, %v3463
        %v3465 = vpop.f32.mrb[0].mxu0
        %v3466 = vpop.f32.mrb[0].mxu0
        %v3467 = vadd.f32 0.0, %v3466
        %v3468 = vpop.f32.mrb[0].mxu0
        %3469 = vmatprep.mubr.bf16.mxu0 0
        %3470 = vmatmul.mubr.bf16.gmra.mrb[0].mxu0 %v3367
        %v3471 = vpop.f32.mrb[0].mxu0
        %v3472 = vadd.f32 0.0, %v3471
        %v3473 = vpop.f32.mrb[0].mxu0
        %v3474 = vpop.f32.mrb[0].mxu0
        %v3475 = vadd.f32 0.0, %v3474
        %v3476 = vpop.f32.mrb[0].mxu0
        %3477 = vmatprep.mubr.bf16.mxu0 0
        %3478 = vmatmul.mubr.bf16.gmra.mrb[0].mxu0 %v3370
        %v3479 = vpop.f32.mrb[0].mxu0
        %v3480 = vadd.f32 0.0, %v3479
        %v3481 = vpop.f32.mrb[0].mxu0
        %v3482 = vpop.f32.mrb[0].mxu0
        %v3483 = vadd.f32 0.0, %v3482
        %v3484 = vpop.f32.mrb[0].mxu0
        %3485 = vmatprep.mubr.bf16.mxu0 0
        %3486 = vmatmul.mubr.bf16.gmra.mrb[0].mxu0 %v3373
        %v3487 = vpop.f32.mrb[0].mxu0
        %v3488 = vadd.f32 0.0, %v3487
        %v3489 = vpop.f32.mrb[0].mxu0
        %v3490 = vpop.f32.mrb[0].mxu0
        %v3491 = vadd.f32 0.0, %v3490
        %v3492 = vpop.f32.mrb[0].mxu0
        %3493 = vmatprep.mubr.bf16.mxu0 0
        %3494 = vmatmul.mubr.bf16.gmra.mrb[0].mxu0 %v3376
        %v3495 = vpop.f32.mrb[0].mxu0
        %v3496 = vadd.f32 0.0, %v3495
        %v3497 = vpop.f32.mrb[0].mxu0
        %v3498 = vpop.f32.mrb[0].mxu0
        %v3499 = vadd.f32 0.0, %v3498
        %v3500 = vpop.f32.mrb[0].mxu0
        %3501 = vmatprep.mubr.bf16.mxu0 0
        %3502 = vmatmul.mubr.bf16.gmra.mrb[0].mxu0 %v3379
        %v3503 = vpop.f32.mrb[0].mxu0
        %v3504 = vadd.f32 0.0, %v3503
        %v3505 = vpop.f32.mrb[0].mxu0
        %v3506 = vpop.f32.mrb[0].mxu0
        %v3507 = vadd.f32 0.0, %v3506
        %v3508 = vpop.f32.mrb[0].mxu0
        %3509 = vmatprep.mubr.bf16.mxu0 0
        %3510 = vmatmul.mubr.bf16.gmra.mrb[0].mxu0 %v3382
        %v3511 = vpop.f32.mrb[0].mxu0
        %v3512 = vadd.f32 0.0, %v3511
        %v3513 = vpop.f32.mrb[0].mxu0
        %v3514 = vpop.f32.mrb[0].mxu0
        %v3515 = vadd.f32 0.0, %v3514
        %v3516 = vpop.f32.mrb[0].mxu0
        %3517 = vmatprep.mubr.bf16.mxu0 0
        %3518 = vmatmul.mubr.bf16.gmra.mrb[0].mxu0 %v3385
        %v3519 = vpop.f32.mrb[0].mxu0
        %v3520 = vadd.f32 0.0, %v3519
        %v3521 = vpop.f32.mrb[0].mxu0
        %v3522 = vpop.f32.mrb[0].mxu0
        %v3523 = vadd.f32 0.0, %v3522
        %v3524 = vpop.f32.mrb[0].mxu0
        %3525 = vmatprep.mubr.bf16.mxu0 0
        %3526 = vmatmul.mubr.bf16.gmra.mrb[0].mxu0 %v3388
        %v3527 = vpop.f32.mrb[0].mxu0
        %v3528 = vadd.f32 0.0, %v3527
        %v3529 = vpop.f32.mrb[0].mxu0
        %v3530 = vpop.f32.mrb[0].mxu0
        %v3531 = vadd.f32 0.0, %v3530
        %v3532 = vpop.f32.mrb[0].mxu0
        %3533 = vmatprep.mubr.bf16.mxu0 0
        %3534 = vmatmul.mubr.bf16.gmra.mrb[0].mxu0 %v3391
        %v3535 = vpop.f32.mrb[0].mxu0
        %v3536 = vadd.f32 0.0, %v3535
        %v3537 = vpop.f32.mrb[0].mxu0
        %v3538 = vpop.f32.mrb[0].mxu0
        %v3539 = vadd.f32 0.0, %v3538
        %v3540 = vpop.f32.mrb[0].mxu0
        %3541 = vmatprep.mubr.bf16.mxu0 0
        %3542 = vmatmul.mubr.bf16.gmra.mrb[0].mxu0 %v3394
        %v3543 = vpop.f32.mrb[0].mxu0
        %v3544 = vadd.f32 0.0, %v3543
        %v3545 = vpop.f32.mrb[0].mxu0
        %v3546 = vpop.f32.mrb[0].mxu0
        %v3547 = vadd.f32 0.0, %v3546
        %v3548 = vpop.f32.mrb[0].mxu0
        %3549 = vmatprep.mubr.bf16.mxu0 0
        %3550 = vmatmul.mubr.bf16.gmra.mrb[0].mxu0 %v3397
        %v3551 = vpop.f32.mrb[0].mxu0
        %v3552 = vadd.f32 0.0, %v3551
        %v3553 = vpop.f32.mrb[0].mxu0
        %v3554 = vpop.f32.mrb[0].mxu0
        %v3555 = vadd.f32 0.0, %v3554
        %v3556 = vpop.f32.mrb[0].mxu0
        %3557 = vmatprep.mubr.bf16.mxu0 0
        %3558 = vmatmul.mubr.bf16.gmra.mrb[0].mxu0 %v3400
        %v3559 = vpop.f32.mrb[0].mxu0
        %v3560 = vadd.f32 0.0, %v3559
        %v3561 = vpop.f32.mrb[0].mxu0
        %v3562 = vpop.f32.mrb[0].mxu0
        %v3563 = vadd.f32 0.0, %v3562
        %v3564 = vpop.f32.mrb[0].mxu0
        %3565 = vdwg.mxu0
        %v3566 = vadd.f32 %v3204, %v3440
        %v3567 = vadd.f32 %v3205, %v3443
        %v3568 = vadd.f32 %v3206, %v3448
        %v3569 = vadd.f32 %v3207, %v3451
        %v3570 = vadd.f32 %v3208, %v3456
        %v3571 = vadd.f32 %v3209, %v3459
        %v3572 = vadd.f32 %v3210, %v3464
        %v3573 = vadd.f32 %v3211, %v3467
        %v3574 = vadd.f32 %v3212, %v3472
        %v3575 = vadd.f32 %v3213, %v3475
        %v3576 = vadd.f32 %v3214, %v3480
        %v3577 = vadd.f32 %v3215, %v3483
        %v3578 = vadd.f32 %v3216, %v3488
        %v3579 = vadd.f32 %v3217, %v3491
        %v3580 = vadd.f32 %v3218, %v3496
        %v3581 = vadd.f32 %v3219, %v3499
        %v3582 = vadd.f32 %v3220, %v3504
        %v3583 = vadd.f32 %v3221, %v3507
        %v3584 = vadd.f32 %v3222, %v3512
        %v3585 = vadd.f32 %v3223, %v3515
        %v3586 = vadd.f32 %v3224, %v3520
        %v3587 = vadd.f32 %v3225, %v3523
        %v3588 = vadd.f32 %v3226, %v3528
        %v3589 = vadd.f32 %v3227, %v3531
        %v3590 = vadd.f32 %v3228, %v3536
        %v3591 = vadd.f32 %v3229, %v3539
        %v3592 = vadd.f32 %v3230, %v3544
        %v3593 = vadd.f32 %v3231, %v3547
        %v3594 = vadd.f32 %v3232, %v3552
        %v3595 = vadd.f32 %v3233, %v3555
        %v3596 = vadd.f32 %v3234, %v3560
        %v3597 = vadd.f32 %v3235, %v3563
        %v3598 = vld [vmem:[%s3239] sm:$0xf]
        %v3599 = vld [vmem:[%s3239 + $0x4] sm:$0xf]
        %v3600 = vld [vmem:[%s3239 + $0x8] sm:$0x1]
        %v3601 = vld [vmem:[%s3239 + $0xc] sm:$0xf]
        %v3602 = vld [vmem:[%s3239 + $0x10] sm:$0xf]
        %v3603 = vld [vmem:[%s3239 + $0x14] sm:$0x1]
        %v3604 = vld [vmem:[%s3239 + $0x18] sm:$0xf]
        %v3605 = vld [vmem:[%s3239 + $0x1c] sm:$0xf]
        %v3606 = vld [vmem:[%s3239 + $0x20] sm:$0x1]
        %v3607 = vld [vmem:[%s3239 + $0x24] sm:$0xf]
        %v3608 = vld [vmem:[%s3239 + $0x28] sm:$0xf]
        %v3609 = vld [vmem:[%s3239 + $0x2c] sm:$0x1]
        %v3610 = vld [vmem:[%s3239 + $0x30] sm:$0xf]
        %v3611 = vld [vmem:[%s3239 + $0x34] sm:$0xf]
        %v3612 = vld [vmem:[%s3239 + $0x38] sm:$0x1]
        %v3613 = vld [vmem:[%s3239 + $0x3c] sm:$0xf]
        %v3614 = vld [vmem:[%s3239 + $0x40] sm:$0xf]
        %v3615 = vld [vmem:[%s3239 + $0x44] sm:$0x1]
        %v3616 = vld [vmem:[%s3239 + $0x48] sm:$0xf]
        %v3617 = vld [vmem:[%s3239 + $0x4c] sm:$0xf]
        %v3618 = vld [vmem:[%s3239 + $0x50] sm:$0x1]
        %v3619 = vld [vmem:[%s3239 + $0x54] sm:$0xf]
        %v3620 = vld [vmem:[%s3239 + $0x58] sm:$0xf]
        %v3621 = vld [vmem:[%s3239 + $0x5c] sm:$0x1]
        %v3622 = vld [vmem:[%s3239 + $0x60] sm:$0xf]
        %v3623 = vld [vmem:[%s3239 + $0x64] sm:$0xf]
        %v3624 = vld [vmem:[%s3239 + $0x68] sm:$0x1]
        %v3625 = vld [vmem:[%s3239 + $0x6c] sm:$0xf]
        %v3626 = vld [vmem:[%s3239 + $0x70] sm:$0xf]
        %v3627 = vld [vmem:[%s3239 + $0x74] sm:$0x1]
        %v3628 = vld [vmem:[%s3239 + $0x78] sm:$0xf]
        %v3629 = vld [vmem:[%s3239 + $0x7c] sm:$0xf]
        %v3630 = vld [vmem:[%s3239 + $0x80] sm:$0x1]
        %v3631 = vld [vmem:[%s3239 + $0x84] sm:$0xf]
        %v3632 = vld [vmem:[%s3239 + $0x88] sm:$0xf]
        %v3633 = vld [vmem:[%s3239 + $0x8c] sm:$0x1]
        %v3634 = vld [vmem:[%s3239 + $0x90] sm:$0xf]
        %v3635 = vld [vmem:[%s3239 + $0x94] sm:$0xf]
        %v3636 = vld [vmem:[%s3239 + $0x98] sm:$0x1]
        %v3637 = vld [vmem:[%s3239 + $0x9c] sm:$0xf]
        %v3638 = vld [vmem:[%s3239 + $0xa0] sm:$0xf]
        %v3639 = vld [vmem:[%s3239 + $0xa4] sm:$0x1]
        %v3640 = vld [vmem:[%s3239 + $0xa8] sm:$0xf]
        %v3641 = vld [vmem:[%s3239 + $0xac] sm:$0xf]
        %v3642 = vld [vmem:[%s3239 + $0xb0] sm:$0x1]
        %v3643 = vld [vmem:[%s3239 + $0xb4] sm:$0xf]
        %v3644 = vld [vmem:[%s3239 + $0xb8] sm:$0xf]
        %v3645 = vld [vmem:[%s3239 + $0xbc] sm:$0x1]
        %v3647 = vshrl.u32 %v3598, 16
        %v3649 = vrot.slane %v3647, 4
        %v3650 = vshll.u32 %v3598, 16
        %v3652 = vrot.slane %v3650, 5
        %v3653 = vor.u32 %v3649, %v3652
        %v3654 = vrot.slane %v3653, 4
        %v3656 = vshll.u32 %v3599, 16
        %v3658 = vrot.slane %v3656, 5
        %v3659 = vsel %vm280, %v3654, %v3658
        %v3660 = vshrl.u32 %v3599, 16
        %v3662 = vrot.slane %v3660, 4
        %v3663 = vor.u32 %v3662, %v3658
        %v3664 = vrot.slane %v3663, 4
        %v3666 = vshll.u32 %v3600, 16
        %v3668 = vrot.slane %v3666, 5
        %v3669 = vsel %vm280, %v3664, %v3668
        %v3671 = vshrl.u32 %v3601, 16
        %v3673 = vrot.slane %v3671, 4
        %v3674 = vshll.u32 %v3601, 16
        %v3676 = vrot.slane %v3674, 5
        %v3677 = vor.u32 %v3673, %v3676
        %v3678 = vrot.slane %v3677, 4
        %v3680 = vshll.u32 %v3602, 16
        %v3682 = vrot.slane %v3680, 5
        %v3683 = vsel %vm280, %v3678, %v3682
        %v3684 = vshrl.u32 %v3602, 16
        %v3686 = vrot.slane %v3684, 4
        %v3687 = vor.u32 %v3686, %v3682
        %v3688 = vrot.slane %v3687, 4
        %v3690 = vshll.u32 %v3603, 16
        %v3692 = vrot.slane %v3690, 5
        %v3693 = vsel %vm280, %v3688, %v3692
        %v3695 = vshrl.u32 %v3604, 16
        %v3697 = vrot.slane %v3695, 4
        %v3698 = vshll.u32 %v3604, 16
        %v3700 = vrot.slane %v3698, 5
        %v3701 = vor.u32 %v3697, %v3700
        %v3702 = vrot.slane %v3701, 4
        %v3704 = vshll.u32 %v3605, 16
        %v3706 = vrot.slane %v3704, 5
        %v3707 = vsel %vm280, %v3702, %v3706
        %v3708 = vshrl.u32 %v3605, 16
        %v3710 = vrot.slane %v3708, 4
        %v3711 = vor.u32 %v3710, %v3706
        %v3712 = vrot.slane %v3711, 4
        %v3714 = vshll.u32 %v3606, 16
        %v3716 = vrot.slane %v3714, 5
        %v3717 = vsel %vm280, %v3712, %v3716
        %v3719 = vshrl.u32 %v3607, 16
        %v3721 = vrot.slane %v3719, 4
        %v3722 = vshll.u32 %v3607, 16
        %v3724 = vrot.slane %v3722, 5
        %v3725 = vor.u32 %v3721, %v3724
        %v3726 = vrot.slane %v3725, 4
        %v3728 = vshll.u32 %v3608, 16
        %v3730 = vrot.slane %v3728, 5
        %v3731 = vsel %vm280, %v3726, %v3730
        %v3732 = vshrl.u32 %v3608, 16
        %v3734 = vrot.slane %v3732, 4
        %v3735 = vor.u32 %v3734, %v3730
        %v3736 = vrot.slane %v3735, 4
        %v3738 = vshll.u32 %v3609, 16
        %v3740 = vrot.slane %v3738, 5
        %v3741 = vsel %vm280, %v3736, %v3740
        %v3743 = vshrl.u32 %v3610, 16
        %v3745 = vrot.slane %v3743, 4
        %v3746 = vshll.u32 %v3610, 16
        %v3748 = vrot.slane %v3746, 5
        %v3749 = vor.u32 %v3745, %v3748
        %v3750 = vrot.slane %v3749, 4
        %v3752 = vshll.u32 %v3611, 16
        %v3754 = vrot.slane %v3752, 5
        %v3755 = vsel %vm280, %v3750, %v3754
        %v3756 = vshrl.u32 %v3611, 16
        %v3758 = vrot.slane %v3756, 4
        %v3759 = vor.u32 %v3758, %v3754
        %v3760 = vrot.slane %v3759, 4
        %v3762 = vshll.u32 %v3612, 16
        %v3764 = vrot.slane %v3762, 5
        %v3765 = vsel %vm280, %v3760, %v3764
        %v3767 = vshrl.u32 %v3613, 16
        %v3769 = vrot.slane %v3767, 4
        %v3770 = vshll.u32 %v3613, 16
        %v3772 = vrot.slane %v3770, 5
        %v3773 = vor.u32 %v3769, %v3772
        %v3774 = vrot.slane %v3773, 4
        %v3776 = vshll.u32 %v3614, 16
        %v3778 = vrot.slane %v3776, 5
        %v3779 = vsel %vm280, %v3774, %v3778
        %v3780 = vshrl.u32 %v3614, 16
        %v3782 = vrot.slane %v3780, 4
        %v3783 = vor.u32 %v3782, %v3778
        %v3784 = vrot.slane %v3783, 4
        %v3786 = vshll.u32 %v3615, 16
        %v3788 = vrot.slane %v3786, 5
        %v3789 = vsel %vm280, %v3784, %v3788
        %v3791 = vshrl.u32 %v3616, 16
        %v3793 = vrot.slane %v3791, 4
        %v3794 = vshll.u32 %v3616, 16
        %v3796 = vrot.slane %v3794, 5
        %v3797 = vor.u32 %v3793, %v3796
        %v3798 = vrot.slane %v3797, 4
        %v3800 = vshll.u32 %v3617, 16
        %v3802 = vrot.slane %v3800, 5
        %v3803 = vsel %vm280, %v3798, %v3802
        %v3804 = vshrl.u32 %v3617, 16
        %v3806 = vrot.slane %v3804, 4
        %v3807 = vor.u32 %v3806, %v3802
        %v3808 = vrot.slane %v3807, 4
        %v3810 = vshll.u32 %v3618, 16
        %v3812 = vrot.slane %v3810, 5
        %v3813 = vsel %vm280, %v3808, %v3812
        %v3815 = vshrl.u32 %v3619, 16
        %v3817 = vrot.slane %v3815, 4
        %v3818 = vshll.u32 %v3619, 16
        %v3820 = vrot.slane %v3818, 5
        %v3821 = vor.u32 %v3817, %v3820
        %v3822 = vrot.slane %v3821, 4
        %v3824 = vshll.u32 %v3620, 16
        %v3826 = vrot.slane %v3824, 5
        %v3827 = vsel %vm280, %v3822, %v3826
        %v3828 = vshrl.u32 %v3620, 16
        %v3830 = vrot.slane %v3828, 4
        %v3831 = vor.u32 %v3830, %v3826
        %v3832 = vrot.slane %v3831, 4
        %v3834 = vshll.u32 %v3621, 16
        %v3836 = vrot.slane %v3834, 5
        %v3837 = vsel %vm280, %v3832, %v3836
        %v3839 = vshrl.u32 %v3622, 16
        %v3841 = vrot.slane %v3839, 4
        %v3842 = vshll.u32 %v3622, 16
        %v3844 = vrot.slane %v3842, 5
        %v3845 = vor.u32 %v3841, %v3844
        %v3846 = vrot.slane %v3845, 4
        %v3848 = vshll.u32 %v3623, 16
        %v3850 = vrot.slane %v3848, 5
        %v3851 = vsel %vm280, %v3846, %v3850
        %v3852 = vshrl.u32 %v3623, 16
        %v3854 = vrot.slane %v3852, 4
        %v3855 = vor.u32 %v3854, %v3850
        %v3856 = vrot.slane %v3855, 4
        %v3858 = vshll.u32 %v3624, 16
        %v3860 = vrot.slane %v3858, 5
        %v3861 = vsel %vm280, %v3856, %v3860
        %v3863 = vshrl.u32 %v3625, 16
        %v3865 = vrot.slane %v3863, 4
        %v3866 = vshll.u32 %v3625, 16
        %v3868 = vrot.slane %v3866, 5
        %v3869 = vor.u32 %v3865, %v3868
        %v3870 = vrot.slane %v3869, 4
        %v3872 = vshll.u32 %v3626, 16
        %v3874 = vrot.slane %v3872, 5
        %v3875 = vsel %vm280, %v3870, %v3874
        %v3876 = vshrl.u32 %v3626, 16
        %v3878 = vrot.slane %v3876, 4
        %v3879 = vor.u32 %v3878, %v3874
        %v3880 = vrot.slane %v3879, 4
        %v3882 = vshll.u32 %v3627, 16
        %v3884 = vrot.slane %v3882, 5
        %v3885 = vsel %vm280, %v3880, %v3884
        %v3887 = vshrl.u32 %v3628, 16
        %v3889 = vrot.slane %v3887, 4
        %v3890 = vshll.u32 %v3628, 16
        %v3892 = vrot.slane %v3890, 5
        %v3893 = vor.u32 %v3889, %v3892
        %v3894 = vrot.slane %v3893, 4
        %v3896 = vshll.u32 %v3629, 16
        %v3898 = vrot.slane %v3896, 5
        %v3899 = vsel %vm280, %v3894, %v3898
        %v3900 = vshrl.u32 %v3629, 16
        %v3902 = vrot.slane %v3900, 4
        %v3903 = vor.u32 %v3902, %v3898
        %v3904 = vrot.slane %v3903, 4
        %v3906 = vshll.u32 %v3630, 16
        %v3908 = vrot.slane %v3906, 5
        %v3909 = vsel %vm280, %v3904, %v3908
        %v3911 = vshrl.u32 %v3631, 16
        %v3913 = vrot.slane %v3911, 4
        %v3914 = vshll.u32 %v3631, 16
        %v3916 = vrot.slane %v3914, 5
        %v3917 = vor.u32 %v3913, %v3916
        %v3918 = vrot.slane %v3917, 4
        %v3920 = vshll.u32 %v3632, 16
        %v3922 = vrot.slane %v3920, 5
        %v3923 = vsel %vm280, %v3918, %v3922
        %v3924 = vshrl.u32 %v3632, 16
        %v3926 = vrot.slane %v3924, 4
        %v3927 = vor.u32 %v3926, %v3922
        %v3928 = vrot.slane %v3927, 4
        %v3930 = vshll.u32 %v3633, 16
        %v3932 = vrot.slane %v3930, 5
        %v3933 = vsel %vm280, %v3928, %v3932
        %v3935 = vshrl.u32 %v3634, 16
        %v3937 = vrot.slane %v3935, 4
        %v3938 = vshll.u32 %v3634, 16
        %v3940 = vrot.slane %v3938, 5
        %v3941 = vor.u32 %v3937, %v3940
        %v3942 = vrot.slane %v3941, 4
        %v3944 = vshll.u32 %v3635, 16
        %v3946 = vrot.slane %v3944, 5
        %v3947 = vsel %vm280, %v3942, %v3946
        %v3948 = vshrl.u32 %v3635, 16
        %v3950 = vrot.slane %v3948, 4
        %v3951 = vor.u32 %v3950, %v3946
        %v3952 = vrot.slane %v3951, 4
        %v3954 = vshll.u32 %v3636, 16
        %v3956 = vrot.slane %v3954, 5
        %v3957 = vsel %vm280, %v3952, %v3956
        %v3959 = vshrl.u32 %v3637, 16
        %v3961 = vrot.slane %v3959, 4
        %v3962 = vshll.u32 %v3637, 16
        %v3964 = vrot.slane %v3962, 5
        %v3965 = vor.u32 %v3961, %v3964
        %v3966 = vrot.slane %v3965, 4
        %v3968 = vshll.u32 %v3638, 16
        %v3970 = vrot.slane %v3968, 5
        %v3971 = vsel %vm280, %v3966, %v3970
        %v3972 = vshrl.u32 %v3638, 16
        %v3974 = vrot.slane %v3972, 4
        %v3975 = vor.u32 %v3974, %v3970
        %v3976 = vrot.slane %v3975, 4
        %v3978 = vshll.u32 %v3639, 16
        %v3980 = vrot.slane %v3978, 5
        %v3981 = vsel %vm280, %v3976, %v3980
        %v3983 = vshrl.u32 %v3640, 16
        %v3985 = vrot.slane %v3983, 4
        %v3986 = vshll.u32 %v3640, 16
        %v3988 = vrot.slane %v3986, 5
        %v3989 = vor.u32 %v3985, %v3988
        %v3990 = vrot.slane %v3989, 4
        %v3992 = vshll.u32 %v3641, 16
        %v3994 = vrot.slane %v3992, 5
        %v3995 = vsel %vm280, %v3990, %v3994
        %v3996 = vshrl.u32 %v3641, 16
        %v3998 = vrot.slane %v3996, 4
        %v3999 = vor.u32 %v3998, %v3994
        %v4000 = vrot.slane %v3999, 4
        %v4002 = vshll.u32 %v3642, 16
        %v4004 = vrot.slane %v4002, 5
        %v4005 = vsel %vm280, %v4000, %v4004
        %v4007 = vshrl.u32 %v3643, 16
        %v4009 = vrot.slane %v4007, 4
        %v4010 = vshll.u32 %v3643, 16
        %v4012 = vrot.slane %v4010, 5
        %v4013 = vor.u32 %v4009, %v4012
        %v4014 = vrot.slane %v4013, 4
        %v4016 = vshll.u32 %v3644, 16
        %v4018 = vrot.slane %v4016, 5
        %v4019 = vsel %vm280, %v4014, %v4018
        %v4020 = vshrl.u32 %v3644, 16
        %v4022 = vrot.slane %v4020, 4
        %v4023 = vor.u32 %v4022, %v4018
        %v4024 = vrot.slane %v4023, 4
        %v4026 = vshll.u32 %v3645, 16
        %v4028 = vrot.slane %v4026, 5
        %v4029 = vsel %vm280, %v4024, %v4028
        %s4030 = scalar_lea.vmem %s219, 14
        %v4031 = vld [vmem:[%s4030] sm:$0x3]
        %v4032 = vunpack.c.l.b16 %v3659
        %v4033 = vunpack.c.l.b16 %v3669
        %v4034 = vunpack.c.l.b16 %v3683
        %v4035 = vunpack.c.l.b16 %v3693
        %v4036 = vunpack.c.l.b16 %v3707
        %v4037 = vunpack.c.l.b16 %v3717
        %v4038 = vunpack.c.l.b16 %v3731
        %v4039 = vunpack.c.l.b16 %v3741
        %v4040 = vunpack.c.l.b16 %v3755
        %v4041 = vunpack.c.l.b16 %v3765
        %v4042 = vunpack.c.l.b16 %v3779
        %v4043 = vunpack.c.l.b16 %v3789
        %v4044 = vunpack.c.l.b16 %v3803
        %v4045 = vunpack.c.l.b16 %v3813
        %v4046 = vunpack.c.l.b16 %v3827
        %v4047 = vunpack.c.l.b16 %v3837
        %v4048 = vunpack.c.l.b16 %v3851
        %v4049 = vunpack.c.l.b16 %v3861
        %v4050 = vunpack.c.l.b16 %v3875
        %v4051 = vunpack.c.l.b16 %v3885
        %v4052 = vunpack.c.l.b16 %v3899
        %v4053 = vunpack.c.l.b16 %v3909
        %v4054 = vunpack.c.l.b16 %v3923
        %v4055 = vunpack.c.l.b16 %v3933
        %v4056 = vunpack.c.l.b16 %v3947
        %v4057 = vunpack.c.l.b16 %v3957
        %v4058 = vunpack.c.l.b16 %v3971
        %v4059 = vunpack.c.l.b16 %v3981
        %v4060 = vunpack.c.l.b16 %v3995
        %v4061 = vunpack.c.l.b16 %v4005
        %v4062 = vunpack.c.l.b16 %v4019
        %v4063 = vunpack.c.l.b16 %v4029
        %v4064 = vpack.c.b16 %v4033, %v4032
        %v4065 = vpack.c.b16 %v4035, %v4034
        %v4066 = vpack.c.b16 %v4037, %v4036
        %v4067 = vpack.c.b16 %v4039, %v4038
        %v4068 = vpack.c.b16 %v4041, %v4040
        %v4069 = vpack.c.b16 %v4043, %v4042
        %v4070 = vpack.c.b16 %v4045, %v4044
        %v4071 = vpack.c.b16 %v4047, %v4046
        %v4072 = vpack.c.b16 %v4049, %v4048
        %v4073 = vpack.c.b16 %v4051, %v4050
        %v4074 = vpack.c.b16 %v4053, %v4052
        %v4075 = vpack.c.b16 %v4055, %v4054
        %v4076 = vpack.c.b16 %v4057, %v4056
        %v4077 = vpack.c.b16 %v4059, %v4058
        %v4078 = vpack.c.b16 %v4061, %v4060
        %v4079 = vpack.c.b16 %v4063, %v4062
        %v4081 = vsel %vm715, %v4064, 0
        %v4084 = vsel %vm715, %v4065, 0
        %v4087 = vsel %vm715, %v4066, 0
        %v4090 = vsel %vm715, %v4067, 0
        %v4093 = vsel %vm715, %v4068, 0
        %v4096 = vsel %vm715, %v4069, 0
        %v4099 = vsel %vm715, %v4070, 0
        %v4102 = vsel %vm715, %v4071, 0
        %v4105 = vsel %vm715, %v4072, 0
        %v4108 = vsel %vm715, %v4073, 0
        %v4111 = vsel %vm715, %v4074, 0
        %v4114 = vsel %vm715, %v4075, 0
        %v4117 = vsel %vm715, %v4076, 0
        %v4120 = vsel %vm715, %v4077, 0
        %v4123 = vsel %vm715, %v4078, 0
        %v4126 = vsel %vm715, %v4079, 0
        %v4129 = vsel %vm764, %v4031, 0
        %4131 = vmatprep.subr.bf16.mxu0 0
        %4132 = vmatpush1.bf16.msra.mxu0 %v4129
        %4133 = vmatprep.subr.bf16.mxu0 0
        %4134 = vmatpush1.bf16.msra.mxu0 0
        %4135 = vmatprep.subr.bf16.mxu0 0
        %4136 = vmatpush1.bf16.msra.mxu0 0
        %4137 = vmatprep.subr.bf16.mxu0 0
        %4138 = vmatpush1.bf16.msra.mxu0 0
        %4139 = vmatprep.subr.bf16.mxu0 0
        %4140 = vmatpush1.bf16.msra.mxu0 0
        %4141 = vmatprep.subr.bf16.mxu0 0
        %4142 = vmatpush1.bf16.msra.mxu0 0
        %4143 = vmatprep.subr.bf16.mxu0 0
        %4144 = vmatpush1.bf16.msra.mxu0 0
        %4145 = vmatprep.subr.bf16.mxu0 0
        %4146 = vmatpush1.bf16.msra.mxu0 0
        %4147 = vmatprep.subr.bf16.mxu0 0
        %4148 = vmatpush1.bf16.msra.mxu0 0
        %4149 = vmatprep.subr.bf16.mxu0 0
        %4150 = vmatpush1.bf16.msra.mxu0 0
        %4151 = vmatprep.subr.bf16.mxu0 0
        %4152 = vmatpush1.bf16.msra.mxu0 0
        %4153 = vmatprep.subr.bf16.mxu0 0
        %4154 = vmatpush1.bf16.msra.mxu0 0
        %4155 = vmatprep.subr.bf16.mxu0 0
        %4156 = vmatpush1.bf16.msra.mxu0 0
        %4157 = vmatprep.subr.bf16.mxu0 0
        %4158 = vmatpush1.bf16.msra.mxu0 0
        %4159 = vmatprep.subr.bf16.mxu0 0
        %4160 = vmatpush1.bf16.msra.mxu0 0
        %4161 = vmatprep.subr.bf16.mxu0 0
        %4162 = vmatpush1.bf16.msra.mxu0 0
        %4163 = vmatprep.mubr.bf16.mxu0 0
        %4164 = vmatmul.mubr.bf16.gmra.mrb[0].mxu0 %v4081
        %v4165 = vpop.f32.mrb[0].mxu0
        %v4166 = vadd.f32 0.0, %v4165
        %v4167 = vpop.f32.mrb[0].mxu0
        %v4168 = vpop.f32.mrb[0].mxu0
        %v4169 = vadd.f32 0.0, %v4168
        %v4170 = vpop.f32.mrb[0].mxu0
        %4171 = vmatprep.mubr.bf16.mxu0 0
        %4172 = vmatmul.mubr.bf16.gmra.mrb[0].mxu0 %v4084
        %v4173 = vpop.f32.mrb[0].mxu0
        %v4174 = vadd.f32 0.0, %v4173
        %v4175 = vpop.f32.mrb[0].mxu0
        %v4176 = vpop.f32.mrb[0].mxu0
        %v4177 = vadd.f32 0.0, %v4176
        %v4178 = vpop.f32.mrb[0].mxu0
        %4179 = vmatprep.mubr.bf16.mxu0 0
        %4180 = vmatmul.mubr.bf16.gmra.mrb[0].mxu0 %v4087
        %v4181 = vpop.f32.mrb[0].mxu0
        %v4182 = vadd.f32 0.0, %v4181
        %v4183 = vpop.f32.mrb[0].mxu0
        %v4184 = vpop.f32.mrb[0].mxu0
        %v4185 = vadd.f32 0.0, %v4184
        %v4186 = vpop.f32.mrb[0].mxu0
        %4187 = vmatprep.mubr.bf16.mxu0 0
        %4188 = vmatmul.mubr.bf16.gmra.mrb[0].mxu0 %v4090
        %v4189 = vpop.f32.mrb[0].mxu0
        %v4190 = vadd.f32 0.0, %v4189
        %v4191 = vpop.f32.mrb[0].mxu0
        %v4192 = vpop.f32.mrb[0].mxu0
        %v4193 = vadd.f32 0.0, %v4192
        %v4194 = vpop.f32.mrb[0].mxu0
        %4195 = vmatprep.mubr.bf16.mxu0 0
        %4196 = vmatmul.mubr.bf16.gmra.mrb[0].mxu0 %v4093
        %v4197 = vpop.f32.mrb[0].mxu0
        %v4198 = vadd.f32 0.0, %v4197
        %v4199 = vpop.f32.mrb[0].mxu0
        %v4200 = vpop.f32.mrb[0].mxu0
        %v4201 = vadd.f32 0.0, %v4200
        %v4202 = vpop.f32.mrb[0].mxu0
        %4203 = vmatprep.mubr.bf16.mxu0 0
        %4204 = vmatmul.mubr.bf16.gmra.mrb[0].mxu0 %v4096
        %v4205 = vpop.f32.mrb[0].mxu0
        %v4206 = vadd.f32 0.0, %v4205
        %v4207 = vpop.f32.mrb[0].mxu0
        %v4208 = vpop.f32.mrb[0].mxu0
        %v4209 = vadd.f32 0.0, %v4208
        %v4210 = vpop.f32.mrb[0].mxu0
        %4211 = vmatprep.mubr.bf16.mxu0 0
        %4212 = vmatmul.mubr.bf16.gmra.mrb[0].mxu0 %v4099
        %v4213 = vpop.f32.mrb[0].mxu0
        %v4214 = vadd.f32 0.0, %v4213
        %v4215 = vpop.f32.mrb[0].mxu0
        %v4216 = vpop.f32.mrb[0].mxu0
        %v4217 = vadd.f32 0.0, %v4216
        %v4218 = vpop.f32.mrb[0].mxu0
        %4219 = vmatprep.mubr.bf16.mxu0 0
        %4220 = vmatmul.mubr.bf16.gmra.mrb[0].mxu0 %v4102
        %v4221 = vpop.f32.mrb[0].mxu0
        %v4222 = vadd.f32 0.0, %v4221
        %v4223 = vpop.f32.mrb[0].mxu0
        %v4224 = vpop.f32.mrb[0].mxu0
        %v4225 = vadd.f32 0.0, %v4224
        %v4226 = vpop.f32.mrb[0].mxu0
        %4227 = vmatprep.mubr.bf16.mxu0 0
        %4228 = vmatmul.mubr.bf16.gmra.mrb[0].mxu0 %v4105
        %v4229 = vpop.f32.mrb[0].mxu0
        %v4230 = vadd.f32 0.0, %v4229
        %v4231 = vpop.f32.mrb[0].mxu0
        %v4232 = vpop.f32.mrb[0].mxu0
        %v4233 = vadd.f32 0.0, %v4232
        %v4234 = vpop.f32.mrb[0].mxu0
        %4235 = vmatprep.mubr.bf16.mxu0 0
        %4236 = vmatmul.mubr.bf16.gmra.mrb[0].mxu0 %v4108
        %v4237 = vpop.f32.mrb[0].mxu0
        %v4238 = vadd.f32 0.0, %v4237
        %v4239 = vpop.f32.mrb[0].mxu0
        %v4240 = vpop.f32.mrb[0].mxu0
        %v4241 = vadd.f32 0.0, %v4240
        %v4242 = vpop.f32.mrb[0].mxu0
        %4243 = vmatprep.mubr.bf16.mxu0 0
        %4244 = vmatmul.mubr.bf16.gmra.mrb[0].mxu0 %v4111
        %v4245 = vpop.f32.mrb[0].mxu0
        %v4246 = vadd.f32 0.0, %v4245
        %v4247 = vpop.f32.mrb[0].mxu0
        %v4248 = vpop.f32.mrb[0].mxu0
        %v4249 = vadd.f32 0.0, %v4248
        %v4250 = vpop.f32.mrb[0].mxu0
        %4251 = vmatprep.mubr.bf16.mxu0 0
        %4252 = vmatmul.mubr.bf16.gmra.mrb[0].mxu0 %v4114
        %v4253 = vpop.f32.mrb[0].mxu0
        %v4254 = vadd.f32 0.0, %v4253
        %v4255 = vpop.f32.mrb[0].mxu0
        %v4256 = vpop.f32.mrb[0].mxu0
        %v4257 = vadd.f32 0.0, %v4256
        %v4258 = vpop.f32.mrb[0].mxu0
        %4259 = vmatprep.mubr.bf16.mxu0 0
        %4260 = vmatmul.mubr.bf16.gmra.mrb[0].mxu0 %v4117
        %v4261 = vpop.f32.mrb[0].mxu0
        %v4262 = vadd.f32 0.0, %v4261
        %v4263 = vpop.f32.mrb[0].mxu0
        %v4264 = vpop.f32.mrb[0].mxu0
        %v4265 = vadd.f32 0.0, %v4264
        %v4266 = vpop.f32.mrb[0].mxu0
        %4267 = vmatprep.mubr.bf16.mxu0 0
        %4268 = vmatmul.mubr.bf16.gmra.mrb[0].mxu0 %v4120
        %v4269 = vpop.f32.mrb[0].mxu0
        %v4270 = vadd.f32 0.0, %v4269
        %v4271 = vpop.f32.mrb[0].mxu0
        %v4272 = vpop.f32.mrb[0].mxu0
        %v4273 = vadd.f32 0.0, %v4272
        %v4274 = vpop.f32.mrb[0].mxu0
        %4275 = vmatprep.mubr.bf16.mxu0 0
        %4276 = vmatmul.mubr.bf16.gmra.mrb[0].mxu0 %v4123
        %v4277 = vpop.f32.mrb[0].mxu0
        %v4278 = vadd.f32 0.0, %v4277
        %v4279 = vpop.f32.mrb[0].mxu0
        %v4280 = vpop.f32.mrb[0].mxu0
        %v4281 = vadd.f32 0.0, %v4280
        %v4282 = vpop.f32.mrb[0].mxu0
        %4283 = vmatprep.mubr.bf16.mxu0 0
        %4284 = vmatmul.mubr.bf16.gmra.mrb[0].mxu0 %v4126
        %v4285 = vpop.f32.mrb[0].mxu0
        %v4286 = vadd.f32 0.0, %v4285
        %v4287 = vpop.f32.mrb[0].mxu0
        %v4288 = vpop.f32.mrb[0].mxu0
        %v4289 = vadd.f32 0.0, %v4288
        %v4290 = vpop.f32.mrb[0].mxu0
        %4291 = vdwg.mxu0
        %v4292 = vadd.f32 %v3566, %v4166
        %v4293 = vadd.f32 %v3567, %v4169
        %v4294 = vadd.f32 %v3568, %v4174
        %v4295 = vadd.f32 %v3569, %v4177
        %v4296 = vadd.f32 %v3570, %v4182
        %v4297 = vadd.f32 %v3571, %v4185
        %v4298 = vadd.f32 %v3572, %v4190
        %v4299 = vadd.f32 %v3573, %v4193
        %v4300 = vadd.f32 %v3574, %v4198
        %v4301 = vadd.f32 %v3575, %v4201
        %v4302 = vadd.f32 %v3576, %v4206
        %v4303 = vadd.f32 %v3577, %v4209
        %v4304 = vadd.f32 %v3578, %v4214
        %v4305 = vadd.f32 %v3579, %v4217
        %v4306 = vadd.f32 %v3580, %v4222
        %v4307 = vadd.f32 %v3581, %v4225
        %v4308 = vadd.f32 %v3582, %v4230
        %v4309 = vadd.f32 %v3583, %v4233
        %v4310 = vadd.f32 %v3584, %v4238
        %v4311 = vadd.f32 %v3585, %v4241
        %v4312 = vadd.f32 %v3586, %v4246
        %v4313 = vadd.f32 %v3587, %v4249
        %v4314 = vadd.f32 %v3588, %v4254
        %v4315 = vadd.f32 %v3589, %v4257
        %v4316 = vadd.f32 %v3590, %v4262
        %v4317 = vadd.f32 %v3591, %v4265
        %v4318 = vadd.f32 %v3592, %v4270
        %v4319 = vadd.f32 %v3593, %v4273
        %v4320 = vadd.f32 %v3594, %v4278
        %v4321 = vadd.f32 %v3595, %v4281
        %v4322 = vadd.f32 %v3596, %v4286
        %v4323 = vadd.f32 %v3597, %v4289
        %v4324 = vld [vmem:[%s3239] sm:$0xe]
        %v4325 = vld [vmem:[%s3239 + $0xc] sm:$0xe]
        %v4326 = vld [vmem:[%s3239 + $0x18] sm:$0xe]
        %v4327 = vld [vmem:[%s3239 + $0x24] sm:$0xe]
        %v4328 = vld [vmem:[%s3239 + $0x30] sm:$0xe]
        %v4329 = vld [vmem:[%s3239 + $0x3c] sm:$0xe]
        %v4330 = vld [vmem:[%s3239 + $0x48] sm:$0xe]
        %v4331 = vld [vmem:[%s3239 + $0x54] sm:$0xe]
        %v4332 = vld [vmem:[%s3239 + $0x60] sm:$0xe]
        %v4333 = vld [vmem:[%s3239 + $0x6c] sm:$0xe]
        %v4334 = vld [vmem:[%s3239 + $0x78] sm:$0xe]
        %v4335 = vld [vmem:[%s3239 + $0x84] sm:$0xe]
        %v4336 = vld [vmem:[%s3239 + $0x90] sm:$0xe]
        %v4337 = vld [vmem:[%s3239 + $0x9c] sm:$0xe]
        %v4338 = vld [vmem:[%s3239 + $0xa8] sm:$0xe]
        %v4339 = vld [vmem:[%s3239 + $0xb4] sm:$0xe]
        %v4388 = vrot.slane %v4324, 5
        %v4389 = vrot.slane %v4388, 4
        %v4390 = vrot.slane %v3599, 5
        %v4391 = vsel %vm1271, %v4389, %v4390
        %v4392 = vrot.slane %v4390, 4
        %v4393 = vrot.slane %v3600, 5
        %v4394 = vsel %vm1271, %v4392, %v4393
        %v4395 = vrot.slane %v4325, 5
        %v4396 = vrot.slane %v4395, 4
        %v4397 = vrot.slane %v3602, 5
        %v4398 = vsel %vm1271, %v4396, %v4397
        %v4399 = vrot.slane %v4397, 4
        %v4400 = vrot.slane %v3603, 5
        %v4401 = vsel %vm1271, %v4399, %v4400
        %v4402 = vrot.slane %v4326, 5
        %v4403 = vrot.slane %v4402, 4
        %v4404 = vrot.slane %v3605, 5
        %v4405 = vsel %vm1271, %v4403, %v4404
        %v4406 = vrot.slane %v4404, 4
        %v4407 = vrot.slane %v3606, 5
        %v4408 = vsel %vm1271, %v4406, %v4407
        %v4409 = vrot.slane %v4327, 5
        %v4410 = vrot.slane %v4409, 4
        %v4411 = vrot.slane %v3608, 5
        %v4412 = vsel %vm1271, %v4410, %v4411
        %v4413 = vrot.slane %v4411, 4
        %v4414 = vrot.slane %v3609, 5
        %v4415 = vsel %vm1271, %v4413, %v4414
        %v4416 = vrot.slane %v4328, 5
        %v4417 = vrot.slane %v4416, 4
        %v4418 = vrot.slane %v3611, 5
        %v4419 = vsel %vm1271, %v4417, %v4418
        %v4420 = vrot.slane %v4418, 4
        %v4421 = vrot.slane %v3612, 5
        %v4422 = vsel %vm1271, %v4420, %v4421
        %v4423 = vrot.slane %v4329, 5
        %v4424 = vrot.slane %v4423, 4
        %v4425 = vrot.slane %v3614, 5
        %v4426 = vsel %vm1271, %v4424, %v4425
        %v4427 = vrot.slane %v4425, 4
        %v4428 = vrot.slane %v3615, 5
        %v4429 = vsel %vm1271, %v4427, %v4428
        %v4430 = vrot.slane %v4330, 5
        %v4431 = vrot.slane %v4430, 4
        %v4432 = vrot.slane %v3617, 5
        %v4433 = vsel %vm1271, %v4431, %v4432
        %v4434 = vrot.slane %v4432, 4
        %v4435 = vrot.slane %v3618, 5
        %v4436 = vsel %vm1271, %v4434, %v4435
        %v4437 = vrot.slane %v4331, 5
        %v4438 = vrot.slane %v4437, 4
        %v4439 = vrot.slane %v3620, 5
        %v4440 = vsel %vm1271, %v4438, %v4439
        %v4441 = vrot.slane %v4439, 4
        %v4442 = vrot.slane %v3621, 5
        %v4443 = vsel %vm1271, %v4441, %v4442
        %v4444 = vrot.slane %v4332, 5
        %v4445 = vrot.slane %v4444, 4
        %v4446 = vrot.slane %v3623, 5
        %v4447 = vsel %vm1271, %v4445, %v4446
        %v4448 = vrot.slane %v4446, 4
        %v4449 = vrot.slane %v3624, 5
        %v4450 = vsel %vm1271, %v4448, %v4449
        %v4451 = vrot.slane %v4333, 5
        %v4452 = vrot.slane %v4451, 4
        %v4453 = vrot.slane %v3626, 5
        %v4454 = vsel %vm1271, %v4452, %v4453
        %v4455 = vrot.slane %v4453, 4
        %v4456 = vrot.slane %v3627, 5
        %v4457 = vsel %vm1271, %v4455, %v4456
        %v4458 = vrot.slane %v4334, 5
        %v4459 = vrot.slane %v4458, 4
        %v4460 = vrot.slane %v3629, 5
        %v4461 = vsel %vm1271, %v4459, %v4460
        %v4462 = vrot.slane %v4460, 4
        %v4463 = vrot.slane %v3630, 5
        %v4464 = vsel %vm1271, %v4462, %v4463
        %v4465 = vrot.slane %v4335, 5
        %v4466 = vrot.slane %v4465, 4
        %v4467 = vrot.slane %v3632, 5
        %v4468 = vsel %vm1271, %v4466, %v4467
        %v4469 = vrot.slane %v4467, 4
        %v4470 = vrot.slane %v3633, 5
        %v4471 = vsel %vm1271, %v4469, %v4470
        %v4472 = vrot.slane %v4336, 5
        %v4473 = vrot.slane %v4472, 4
        %v4474 = vrot.slane %v3635, 5
        %v4475 = vsel %vm1271, %v4473, %v4474
        %v4476 = vrot.slane %v4474, 4
        %v4477 = vrot.slane %v3636, 5
        %v4478 = vsel %vm1271, %v4476, %v4477
        %v4479 = vrot.slane %v4337, 5
        %v4480 = vrot.slane %v4479, 4
        %v4481 = vrot.slane %v3638, 5
        %v4482 = vsel %vm1271, %v4480, %v4481
        %v4483 = vrot.slane %v4481, 4
        %v4484 = vrot.slane %v3639, 5
        %v4485 = vsel %vm1271, %v4483, %v4484
        %v4486 = vrot.slane %v4338, 5
        %v4487 = vrot.slane %v4486, 4
        %v4488 = vrot.slane %v3641, 5
        %v4489 = vsel %vm1271, %v4487, %v4488
        %v4490 = vrot.slane %v4488, 4
        %v4491 = vrot.slane %v3642, 5
        %v4492 = vsel %vm1271, %v4490, %v4491
        %v4493 = vrot.slane %v4339, 5
        %v4494 = vrot.slane %v4493, 4
        %v4495 = vrot.slane %v3644, 5
        %v4496 = vsel %vm1271, %v4494, %v4495
        %v4497 = vrot.slane %v4495, 4
        %v4498 = vrot.slane %v3645, 5
        %v4499 = vsel %vm1271, %v4497, %v4498
        %s4500 = scalar_lea.vmem %s219, 16
        %v4501 = vld [vmem:[%s4500] sm:$0x3]
        %v4502 = vunpack.c.l.b16 %v4391
        %v4503 = vunpack.c.l.b16 %v4394
        %v4504 = vunpack.c.l.b16 %v4398
        %v4505 = vunpack.c.l.b16 %v4401
        %v4506 = vunpack.c.l.b16 %v4405
        %v4507 = vunpack.c.l.b16 %v4408
        %v4508 = vunpack.c.l.b16 %v4412
        %v4509 = vunpack.c.l.b16 %v4415
        %v4510 = vunpack.c.l.b16 %v4419
        %v4511 = vunpack.c.l.b16 %v4422
        %v4512 = vunpack.c.l.b16 %v4426
        %v4513 = vunpack.c.l.b16 %v4429
        %v4514 = vunpack.c.l.b16 %v4433
        %v4515 = vunpack.c.l.b16 %v4436
        %v4516 = vunpack.c.l.b16 %v4440
        %v4517 = vunpack.c.l.b16 %v4443
        %v4518 = vunpack.c.l.b16 %v4447
        %v4519 = vunpack.c.l.b16 %v4450
        %v4520 = vunpack.c.l.b16 %v4454
        %v4521 = vunpack.c.l.b16 %v4457
        %v4522 = vunpack.c.l.b16 %v4461
        %v4523 = vunpack.c.l.b16 %v4464
        %v4524 = vunpack.c.l.b16 %v4468
        %v4525 = vunpack.c.l.b16 %v4471
        %v4526 = vunpack.c.l.b16 %v4475
        %v4527 = vunpack.c.l.b16 %v4478
        %v4528 = vunpack.c.l.b16 %v4482
        %v4529 = vunpack.c.l.b16 %v4485
        %v4530 = vunpack.c.l.b16 %v4489
        %v4531 = vunpack.c.l.b16 %v4492
        %v4532 = vunpack.c.l.b16 %v4496
        %v4533 = vunpack.c.l.b16 %v4499
        %v4534 = vpack.c.b16 %v4503, %v4502
        %v4535 = vpack.c.b16 %v4505, %v4504
        %v4536 = vpack.c.b16 %v4507, %v4506
        %v4537 = vpack.c.b16 %v4509, %v4508
        %v4538 = vpack.c.b16 %v4511, %v4510
        %v4539 = vpack.c.b16 %v4513, %v4512
        %v4540 = vpack.c.b16 %v4515, %v4514
        %v4541 = vpack.c.b16 %v4517, %v4516
        %v4542 = vpack.c.b16 %v4519, %v4518
        %v4543 = vpack.c.b16 %v4521, %v4520
        %v4544 = vpack.c.b16 %v4523, %v4522
        %v4545 = vpack.c.b16 %v4525, %v4524
        %v4546 = vpack.c.b16 %v4527, %v4526
        %v4547 = vpack.c.b16 %v4529, %v4528
        %v4548 = vpack.c.b16 %v4531, %v4530
        %v4549 = vpack.c.b16 %v4533, %v4532
        %v4551 = vsel %vm715, %v4534, 0
        %v4554 = vsel %vm715, %v4535, 0
        %v4557 = vsel %vm715, %v4536, 0
        %v4560 = vsel %vm715, %v4537, 0
        %v4563 = vsel %vm715, %v4538, 0
        %v4566 = vsel %vm715, %v4539, 0
        %v4569 = vsel %vm715, %v4540, 0
        %v4572 = vsel %vm715, %v4541, 0
        %v4575 = vsel %vm715, %v4542, 0
        %v4578 = vsel %vm715, %v4543, 0
        %v4581 = vsel %vm715, %v4544, 0
        %v4584 = vsel %vm715, %v4545, 0
        %v4587 = vsel %vm715, %v4546, 0
        %v4590 = vsel %vm715, %v4547, 0
        %v4593 = vsel %vm715, %v4548, 0
        %v4596 = vsel %vm715, %v4549, 0
        %v4599 = vsel %vm764, %v4501, 0
        %4601 = vmatprep.subr.bf16.mxu0 0
        %4602 = vmatpush1.bf16.msra.mxu0 %v4599
        %4603 = vmatprep.subr.bf16.mxu0 0
        %4604 = vmatpush1.bf16.msra.mxu0 0
        %4605 = vmatprep.subr.bf16.mxu0 0
        %4606 = vmatpush1.bf16.msra.mxu0 0
        %4607 = vmatprep.subr.bf16.mxu0 0
        %4608 = vmatpush1.bf16.msra.mxu0 0
        %4609 = vmatprep.subr.bf16.mxu0 0
        %4610 = vmatpush1.bf16.msra.mxu0 0
        %4611 = vmatprep.subr.bf16.mxu0 0
        %4612 = vmatpush1.bf16.msra.mxu0 0
        %4613 = vmatprep.subr.bf16.mxu0 0
        %4614 = vmatpush1.bf16.msra.mxu0 0
        %4615 = vmatprep.subr.bf16.mxu0 0
        %4616 = vmatpush1.bf16.msra.mxu0 0
        %4617 = vmatprep.subr.bf16.mxu0 0
        %4618 = vmatpush1.bf16.msra.mxu0 0
        %4619 = vmatprep.subr.bf16.mxu0 0
        %4620 = vmatpush1.bf16.msra.mxu0 0
        %4621 = vmatprep.subr.bf16.mxu0 0
        %4622 = vmatpush1.bf16.msra.mxu0 0
        %4623 = vmatprep.subr.bf16.mxu0 0
        %4624 = vmatpush1.bf16.msra.mxu0 0
        %4625 = vmatprep.subr.bf16.mxu0 0
        %4626 = vmatpush1.bf16.msra.mxu0 0
        %4627 = vmatprep.subr.bf16.mxu0 0
        %4628 = vmatpush1.bf16.msra.mxu0 0
        %4629 = vmatprep.subr.bf16.mxu0 0
        %4630 = vmatpush1.bf16.msra.mxu0 0
        %4631 = vmatprep.subr.bf16.mxu0 0
        %4632 = vmatpush1.bf16.msra.mxu0 0
        %4633 = vmatprep.mubr.bf16.mxu0 0
        %4634 = vmatmul.mubr.bf16.gmra.mrb[0].mxu0 %v4551
        %v4635 = vpop.f32.mrb[0].mxu0
        %v4636 = vadd.f32 0.0, %v4635
        %v4637 = vpop.f32.mrb[0].mxu0
        %v4638 = vpop.f32.mrb[0].mxu0
        %v4639 = vadd.f32 0.0, %v4638
        %v4640 = vpop.f32.mrb[0].mxu0
        %4641 = vmatprep.mubr.bf16.mxu0 0
        %4642 = vmatmul.mubr.bf16.gmra.mrb[0].mxu0 %v4554
        %v4643 = vpop.f32.mrb[0].mxu0
        %v4644 = vadd.f32 0.0, %v4643
        %v4645 = vpop.f32.mrb[0].mxu0
        %v4646 = vpop.f32.mrb[0].mxu0
        %v4647 = vadd.f32 0.0, %v4646
        %v4648 = vpop.f32.mrb[0].mxu0
        %4649 = vmatprep.mubr.bf16.mxu0 0
        %4650 = vmatmul.mubr.bf16.gmra.mrb[0].mxu0 %v4557
        %v4651 = vpop.f32.mrb[0].mxu0
        %v4652 = vadd.f32 0.0, %v4651
        %v4653 = vpop.f32.mrb[0].mxu0
        %v4654 = vpop.f32.mrb[0].mxu0
        %v4655 = vadd.f32 0.0, %v4654
        %v4656 = vpop.f32.mrb[0].mxu0
        %4657 = vmatprep.mubr.bf16.mxu0 0
        %4658 = vmatmul.mubr.bf16.gmra.mrb[0].mxu0 %v4560
        %v4659 = vpop.f32.mrb[0].mxu0
        %v4660 = vadd.f32 0.0, %v4659
        %v4661 = vpop.f32.mrb[0].mxu0
        %v4662 = vpop.f32.mrb[0].mxu0
        %v4663 = vadd.f32 0.0, %v4662
        %v4664 = vpop.f32.mrb[0].mxu0
        %4665 = vmatprep.mubr.bf16.mxu0 0
        %4666 = vmatmul.mubr.bf16.gmra.mrb[0].mxu0 %v4563
        %v4667 = vpop.f32.mrb[0].mxu0
        %v4668 = vadd.f32 0.0, %v4667
        %v4669 = vpop.f32.mrb[0].mxu0
        %v4670 = vpop.f32.mrb[0].mxu0
        %v4671 = vadd.f32 0.0, %v4670
        %v4672 = vpop.f32.mrb[0].mxu0
        %4673 = vmatprep.mubr.bf16.mxu0 0
        %4674 = vmatmul.mubr.bf16.gmra.mrb[0].mxu0 %v4566
        %v4675 = vpop.f32.mrb[0].mxu0
        %v4676 = vadd.f32 0.0, %v4675
        %v4677 = vpop.f32.mrb[0].mxu0
        %v4678 = vpop.f32.mrb[0].mxu0
        %v4679 = vadd.f32 0.0, %v4678
        %v4680 = vpop.f32.mrb[0].mxu0
        %4681 = vmatprep.mubr.bf16.mxu0 0
        %4682 = vmatmul.mubr.bf16.gmra.mrb[0].mxu0 %v4569
        %v4683 = vpop.f32.mrb[0].mxu0
        %v4684 = vadd.f32 0.0, %v4683
        %v4685 = vpop.f32.mrb[0].mxu0
        %v4686 = vpop.f32.mrb[0].mxu0
        %v4687 = vadd.f32 0.0, %v4686
        %v4688 = vpop.f32.mrb[0].mxu0
        %4689 = vmatprep.mubr.bf16.mxu0 0
        %4690 = vmatmul.mubr.bf16.gmra.mrb[0].mxu0 %v4572
        %v4691 = vpop.f32.mrb[0].mxu0
        %v4692 = vadd.f32 0.0, %v4691
        %v4693 = vpop.f32.mrb[0].mxu0
        %v4694 = vpop.f32.mrb[0].mxu0
        %v4695 = vadd.f32 0.0, %v4694
        %v4696 = vpop.f32.mrb[0].mxu0
        %4697 = vmatprep.mubr.bf16.mxu0 0
        %4698 = vmatmul.mubr.bf16.gmra.mrb[0].mxu0 %v4575
        %v4699 = vpop.f32.mrb[0].mxu0
        %v4700 = vadd.f32 0.0, %v4699
        %v4701 = vpop.f32.mrb[0].mxu0
        %v4702 = vpop.f32.mrb[0].mxu0
        %v4703 = vadd.f32 0.0, %v4702
        %v4704 = vpop.f32.mrb[0].mxu0
        %4705 = vmatprep.mubr.bf16.mxu0 0
        %4706 = vmatmul.mubr.bf16.gmra.mrb[0].mxu0 %v4578
        %v4707 = vpop.f32.mrb[0].mxu0
        %v4708 = vadd.f32 0.0, %v4707
        %v4709 = vpop.f32.mrb[0].mxu0
        %v4710 = vpop.f32.mrb[0].mxu0
        %v4711 = vadd.f32 0.0, %v4710
        %v4712 = vpop.f32.mrb[0].mxu0
        %4713 = vmatprep.mubr.bf16.mxu0 0
        %4714 = vmatmul.mubr.bf16.gmra.mrb[0].mxu0 %v4581
        %v4715 = vpop.f32.mrb[0].mxu0
        %v4716 = vadd.f32 0.0, %v4715
        %v4717 = vpop.f32.mrb[0].mxu0
        %v4718 = vpop.f32.mrb[0].mxu0
        %v4719 = vadd.f32 0.0, %v4718
        %v4720 = vpop.f32.mrb[0].mxu0
        %4721 = vmatprep.mubr.bf16.mxu0 0
        %4722 = vmatmul.mubr.bf16.gmra.mrb[0].mxu0 %v4584
        %v4723 = vpop.f32.mrb[0].mxu0
        %v4724 = vadd.f32 0.0, %v4723
        %v4725 = vpop.f32.mrb[0].mxu0
        %v4726 = vpop.f32.mrb[0].mxu0
        %v4727 = vadd.f32 0.0, %v4726
        %v4728 = vpop.f32.mrb[0].mxu0
        %4729 = vmatprep.mubr.bf16.mxu0 0
        %4730 = vmatmul.mubr.bf16.gmra.mrb[0].mxu0 %v4587
        %v4731 = vpop.f32.mrb[0].mxu0
        %v4732 = vadd.f32 0.0, %v4731
        %v4733 = vpop.f32.mrb[0].mxu0
        %v4734 = vpop.f32.mrb[0].mxu0
        %v4735 = vadd.f32 0.0, %v4734
        %v4736 = vpop.f32.mrb[0].mxu0
        %4737 = vmatprep.mubr.bf16.mxu0 0
        %4738 = vmatmul.mubr.bf16.gmra.mrb[0].mxu0 %v4590
        %v4739 = vpop.f32.mrb[0].mxu0
        %v4740 = vadd.f32 0.0, %v4739
        %v4741 = vpop.f32.mrb[0].mxu0
        %v4742 = vpop.f32.mrb[0].mxu0
        %v4743 = vadd.f32 0.0, %v4742
        %v4744 = vpop.f32.mrb[0].mxu0
        %4745 = vmatprep.mubr.bf16.mxu0 0
        %4746 = vmatmul.mubr.bf16.gmra.mrb[0].mxu0 %v4593
        %v4747 = vpop.f32.mrb[0].mxu0
        %v4748 = vadd.f32 0.0, %v4747
        %v4749 = vpop.f32.mrb[0].mxu0
        %v4750 = vpop.f32.mrb[0].mxu0
        %v4751 = vadd.f32 0.0, %v4750
        %v4752 = vpop.f32.mrb[0].mxu0
        %4753 = vmatprep.mubr.bf16.mxu0 0
        %4754 = vmatmul.mubr.bf16.gmra.mrb[0].mxu0 %v4596
        %v4755 = vpop.f32.mrb[0].mxu0
        %v4756 = vadd.f32 0.0, %v4755
        %v4757 = vpop.f32.mrb[0].mxu0
        %v4758 = vpop.f32.mrb[0].mxu0
        %v4759 = vadd.f32 0.0, %v4758
        %v4760 = vpop.f32.mrb[0].mxu0
        %4761 = vdwg.mxu0
        %v4762 = vadd.f32 %v4292, %v4636
        %v4763 = vadd.f32 %v4293, %v4639
        %v4764 = vadd.f32 %v4294, %v4644
        %v4765 = vadd.f32 %v4295, %v4647
        %v4766 = vadd.f32 %v4296, %v4652
        %v4767 = vadd.f32 %v4297, %v4655
        %v4768 = vadd.f32 %v4298, %v4660
        %v4769 = vadd.f32 %v4299, %v4663
        %v4770 = vadd.f32 %v4300, %v4668
        %v4771 = vadd.f32 %v4301, %v4671
        %v4772 = vadd.f32 %v4302, %v4676
        %v4773 = vadd.f32 %v4303, %v4679
        %v4774 = vadd.f32 %v4304, %v4684
        %v4775 = vadd.f32 %v4305, %v4687
        %v4776 = vadd.f32 %v4306, %v4692
        %v4777 = vadd.f32 %v4307, %v4695
        %v4778 = vadd.f32 %v4308, %v4700
        %v4779 = vadd.f32 %v4309, %v4703
        %v4780 = vadd.f32 %v4310, %v4708
        %v4781 = vadd.f32 %v4311, %v4711
        %v4782 = vadd.f32 %v4312, %v4716
        %v4783 = vadd.f32 %v4313, %v4719
        %v4784 = vadd.f32 %v4314, %v4724
        %v4785 = vadd.f32 %v4315, %v4727
        %v4786 = vadd.f32 %v4316, %v4732
        %v4787 = vadd.f32 %v4317, %v4735
        %v4788 = vadd.f32 %v4318, %v4740
        %v4789 = vadd.f32 %v4319, %v4743
        %v4790 = vadd.f32 %v4320, %v4748
        %v4791 = vadd.f32 %v4321, %v4751
        %v4792 = vadd.f32 %v4322, %v4756
        %v4793 = vadd.f32 %v4323, %v4759
        %v4794 = vld [vmem:[%s222] sm:$0x1]
        %v4796 = vlaneseq
        %v4797 = vshrl.u32 %v4796, 7
        %v4798 = vsub.s32 0, %v4797
        %v4799 = vrot.slane %v4794, %v4798
        %v4801 = vadd.f32 %v4762, %v4799
        %v4802 = vadd.f32 %v4763, %v4799
        %v4803 = vadd.f32 %v4764, %v4799
        %v4804 = vadd.f32 %v4765, %v4799
        %v4805 = vadd.f32 %v4766, %v4799
        %v4806 = vadd.f32 %v4767, %v4799
        %v4807 = vadd.f32 %v4768, %v4799
        %v4808 = vadd.f32 %v4769, %v4799
        %v4809 = vadd.f32 %v4770, %v4799
        %v4810 = vadd.f32 %v4771, %v4799
        %v4811 = vadd.f32 %v4772, %v4799
        %v4812 = vadd.f32 %v4773, %v4799
        %v4813 = vadd.f32 %v4774, %v4799
        %v4814 = vadd.f32 %v4775, %v4799
        %v4815 = vadd.f32 %v4776, %v4799
        %v4816 = vadd.f32 %v4777, %v4799
        %v4817 = vadd.f32 %v4778, %v4799
        %v4818 = vadd.f32 %v4779, %v4799
        %v4819 = vadd.f32 %v4780, %v4799
        %v4820 = vadd.f32 %v4781, %v4799
        %v4821 = vadd.f32 %v4782, %v4799
        %v4822 = vadd.f32 %v4783, %v4799
        %v4823 = vadd.f32 %v4784, %v4799
        %v4824 = vadd.f32 %v4785, %v4799
        %v4825 = vadd.f32 %v4786, %v4799
        %v4826 = vadd.f32 %v4787, %v4799
        %v4827 = vadd.f32 %v4788, %v4799
        %v4828 = vadd.f32 %v4789, %v4799
        %v4829 = vadd.f32 %v4790, %v4799
        %v4830 = vadd.f32 %v4791, %v4799
        %v4831 = vadd.f32 %v4792, %v4799
        %v4832 = vadd.f32 %v4793, %v4799
        %v4833 = vmax.f32 %v4801, 0.0
        %v4834 = vmax.f32 %v4802, 0.0
        %v4835 = vmax.f32 %v4803, 0.0
        %v4836 = vmax.f32 %v4804, 0.0
        %v4837 = vmax.f32 %v4805, 0.0
        %v4838 = vmax.f32 %v4806, 0.0
        %v4839 = vmax.f32 %v4807, 0.0
        %v4840 = vmax.f32 %v4808, 0.0
        %v4841 = vmax.f32 %v4809, 0.0
        %v4842 = vmax.f32 %v4810, 0.0
        %v4843 = vmax.f32 %v4811, 0.0
        %v4844 = vmax.f32 %v4812, 0.0
        %v4845 = vmax.f32 %v4813, 0.0
        %v4846 = vmax.f32 %v4814, 0.0
        %v4847 = vmax.f32 %v4815, 0.0
        %v4848 = vmax.f32 %v4816, 0.0
        %v4849 = vmax.f32 %v4817, 0.0
        %v4850 = vmax.f32 %v4818, 0.0
        %v4851 = vmax.f32 %v4819, 0.0
        %v4852 = vmax.f32 %v4820, 0.0
        %v4853 = vmax.f32 %v4821, 0.0
        %v4854 = vmax.f32 %v4822, 0.0
        %v4855 = vmax.f32 %v4823, 0.0
        %v4856 = vmax.f32 %v4824, 0.0
        %v4857 = vmax.f32 %v4825, 0.0
        %v4858 = vmax.f32 %v4826, 0.0
        %v4859 = vmax.f32 %v4827, 0.0
        %v4860 = vmax.f32 %v4828, 0.0
        %v4861 = vmax.f32 %v4829, 0.0
        %v4862 = vmax.f32 %v4830, 0.0
        %v4863 = vmax.f32 %v4831, 0.0
        %v4864 = vmax.f32 %v4832, 0.0
        %4865 = vst [vmem:[%s210] sm:$0xff] %v4833
        %4866 = vst [vmem:[%s210 + $0x8] sm:$0xff] %v4834
        %4867 = vst [vmem:[%s210 + $0x10] sm:$0xff] %v4835
        %4868 = vst [vmem:[%s210 + $0x18] sm:$0xff] %v4836
        %4869 = vst [vmem:[%s210 + $0x20] sm:$0xff] %v4837
        %4870 = vst [vmem:[%s210 + $0x28] sm:$0xff] %v4838
        %4871 = vst [vmem:[%s210 + $0x30] sm:$0xff] %v4839
        %4872 = vst [vmem:[%s210 + $0x38] sm:$0xff] %v4840
        %4873 = vst [vmem:[%s210 + $0x40] sm:$0xff] %v4841
        %4874 = vst [vmem:[%s210 + $0x48] sm:$0xff] %v4842
        %4875 = vst [vmem:[%s210 + $0x50] sm:$0xff] %v4843
        %4876 = vst [vmem:[%s210 + $0x58] sm:$0xff] %v4844
        %4877 = vst [vmem:[%s210 + $0x60] sm:$0xff] %v4845
        %4878 = vst [vmem:[%s210 + $0x68] sm:$0xff] %v4846
        %4879 = vst [vmem:[%s210 + $0x70] sm:$0xff] %v4847
        %4880 = vst [vmem:[%s210 + $0x78] sm:$0xff] %v4848
        %4881 = vst [vmem:[%s210 + $0x80] sm:$0xff] %v4849
        %4882 = vst [vmem:[%s210 + $0x88] sm:$0xff] %v4850
        %4883 = vst [vmem:[%s210 + $0x90] sm:$0xff] %v4851
        %4884 = vst [vmem:[%s210 + $0x98] sm:$0xff] %v4852
        %4885 = vst [vmem:[%s210 + $0xa0] sm:$0xff] %v4853
        %4886 = vst [vmem:[%s210 + $0xa8] sm:$0xff] %v4854
        %4887 = vst [vmem:[%s210 + $0xb0] sm:$0xff] %v4855
        %4888 = vst [vmem:[%s210 + $0xb8] sm:$0xff] %v4856
        %4889 = vst [vmem:[%s210 + $0xc0] sm:$0xff] %v4857
        %4890 = vst [vmem:[%s210 + $0xc8] sm:$0xff] %v4858
        %4891 = vst [vmem:[%s210 + $0xd0] sm:$0xff] %v4859
        %4892 = vst [vmem:[%s210 + $0xd8] sm:$0xff] %v4860
        %4893 = vst [vmem:[%s210 + $0xe0] sm:$0xff] %v4861
        %4894 = vst [vmem:[%s210 + $0xe8] sm:$0xff] %v4862
        %4895 = vst [vmem:[%s210 + $0xf0] sm:$0xff] %v4863
        %4896 = vst [vmem:[%s210 + $0xf8] sm:$0xff] %v4864
        %s4897 = sand.u32 %s126, 1
        %s4898 = scalar_lea.sflag [#allocation3], %s4897
        %s4899 = sand.u32 %s126, 1
        %s4900 = smul.addr %s4899, 256
        %s4901 = scalar_lea.vmem [#allocation2], %s4900
        // Predicated region
        $region33: #{tpu_custom_call.1} parent=31 // pred_check
          %p4902 = pneg %p136
        $region34: #{tpu_custom_call.1} parent=31 // pred_check_branch
          %4904 = sbr.rel (%p4902) target = $region36
        $region35: #{tpu_custom_call.1} parent=31 // pred_region
          %s4905 = smul.u32 16, %s24
          %s4907 = ssub.s32 4096, 4096
          %4908 = vsyncadd %s4898, %s4907
          %s4909 = smul.addr %s4905, 2
          %s4910 = sadd.s32 %s23, %s4909
          %s4911 = smul.addr %s22, 32
          %s4912 = sadd.s32 %s4910, %s4911
          %s4913 = smul.addr %s4912, 128
          %s4914 = scalar_lea.hbm %s3, %s4913
          %s4915 = sshll.u32 %s4901, 4
          %s4916 = int_to_ptr.vmem [resolvable:$true] %s4915
          %4921 = dma.vmem_to_hbm [thread:$0]  %s4916, 4096, %s4914, %s4898, 128, 128, 8
        $region36: #{tpu_custom_call.1} parent=31 // pred_fallthru
          _
      $region32: #{tpu_custom_call.1} parent=5 // pred_fallthru
        _
      %p4922 = scmp.le.s32.totalorder 2, %s12
      // Predicated region
      $region37: #{tpu_custom_call.1} parent=5 // pred_check
        %p4923 = pneg %p4922
      $region38: #{tpu_custom_call.1} parent=5 // pred_check_branch
        %4925 = sbr.rel (%p4923) target = $region40
      $region39: #{tpu_custom_call.1} parent=5 // pred_region
        %s4926 = ssub.s32 %s12, 2
        // Predicated region
        $region41: #{tpu_custom_call.1} parent=39 // pred_check
          %p4927 = pneg %p142
        $region42: #{tpu_custom_call.1} parent=39 // pred_check_branch
          %4929 = sbr.rel (%p4927) target = $region44
        $region43: #{tpu_custom_call.1} parent=39 // pred_region
          %s4930 = sand.u32 %s127, 1
          %s4931 = scalar_lea.sflag [#allocation3], %s4930
          %s4932 = sand.u32 %s127, 1
          %s4933 = smul.addr %s4932, 256
          %s4934 = scalar_lea.vmem [#allocation2], %s4933
          %4935 = dma.done %s4931, 4096
        $region44: #{tpu_custom_call.1} parent=39 // pred_fallthru
          _
      $region40: #{tpu_custom_call.1} parent=5 // pred_fallthru
        _
    $region6: #{tpu_custom_call.1} parent=1 // loop_footer
      %s16 = sadd.s32 1, %s12
    $region7: #{tpu_custom_call.1} parent=1 // loop_footer_branch
      %11 = sbr.rel target = $region3
    $region8: #{tpu_custom_call.1} parent=1 // loop_exit
      _
    %4936 = vsyncpa [#allocation3], 1
    %s4937 = scalar_lea.sflag [#allocation3], 1
    %4938 = vsyncpa %s4937, 1

</llo_original>
